<compile_context>
chip_gen: v7x
topology: tpu7x:2x2x1
jax: 0.10.0
libtpu: 0.0.40
codegen_flags: <defaults>
</compile_context>

<pallas_src>
import functools

import jax
import jax.numpy as jnp
from jax.experimental import pallas as pl
from jax.experimental.pallas import tpu as pltpu


# ---------------------------------------------------------------------------
# Pallas kernel: fused (to_q|to_k|to_v 1x1conv+BN+ReLU) -> 4 sequentially
# gated attention heads -> 1x1conv+BN+ReLU -> residual (v + gamma*y)
# ---------------------------------------------------------------------------
def _mh_attention_kernel(xq_ref, xk_ref, xv_ref, w_ref, b_ref, gamma_ref,
                         o_ref, res_ref, *, heads, dim_head, tq, mm_dtype):
    # xq/xk/xv_ref : (C, N)   f32 inputs (channels-first, N on lanes)
    # w_ref        : (4, C, C) 1x1-conv weights with BN scale folded in, mm_dtype
    # b_ref        : (C, 4)   folded conv+BN bias per branch, f32
    # gamma_ref    : (1, 1)   residual gate scalar (SMEM), f32
    # o_ref        : (C, N)   output, f32
    # res_ref      : (C, N)   f32 VMEM scratch holding the concatenated heads
    f32 = jnp.float32
    dh = dim_head
    N = xq_ref.shape[1]
    n_tiles = N // tq
    approx = mm_dtype != jnp.float32   # exact reciprocal on the f32-exact path

    def conv_bn_relu(x_ref, idx):
        # 1x1 conv == (C,C) @ (C,N); BN scale folded into W, bias folded into b.
        x = x_ref[...].astype(mm_dtype)                       # in-kernel cast
        y = jnp.dot(w_ref[idx], x, preferred_element_type=f32)
        return jnp.maximum(y + b_ref[:, idx:idx + 1], 0.0)    # (C, N) f32

    q = conv_bn_relu(xq_ref, 0)
    k = conv_bn_relu(xk_ref, 1)
    v = conv_bn_relu(xv_ref, 2)

    q_mm = q.astype(mm_dtype)                                 # (C, N)
    k_t = jnp.transpose(k).astype(mm_dtype)                   # (N, C), one transpose
    v_mm = v.astype(mm_dtype)                                 # (C, N)

    # NOTE: the PyTorch module defines self.scale but never applies it.
    # TODO(synk): on v6e/v7x the exp below could run in bf16 (bf16 EUP) for ~2x
    # exp throughput; kept f32 here for portability to v5e and tight tolerances.
    for i in range(heads):                                    # heads == 4, static
        kh_t = k_t[:, i * dh:(i + 1) * dh]                    # (N, dh)
        qh = q_mm[i * dh:(i + 1) * dh, :]                     # (dh, N)
        vh = v_mm[i * dh:(i + 1) * dh, :]                     # (dh, N)
        if i == 0:
            v_used = vh
        else:
            # Cross-head gating: sigmoid of the previous head's (normalized)
            # output, read from the result scratch; sigmoid via one tanh (EUP).
            prev = res_ref[pl.ds((i - 1) * dh, dh), :]        # (dh, N) f32
            gate = 0.5 * (jnp.tanh(0.5 * prev) + 1.0)
            v_used = vh * gate.astype(mm_dtype)

        for t in range(n_tiles):                              # static query tiling
            q0 = t * tq
            q_tile = qh[:, q0:q0 + tq]                        # (dh, Tq)
            # scores_t[nk, nq] = sum_c k[c,nk] * q[c,nq]  (softmax over nk = axis 0)
            scores = jnp.dot(kh_t, q_tile, preferred_element_type=f32)  # (N, Tq)
            m = jnp.max(scores, axis=0, keepdims=True)        # (1, Tq)
            e = jnp.exp(scores - m)                           # (N, Tq) f32
            ssum = jnp.sum(e, axis=0, keepdims=True)          # (1, Tq)
            # Deferred normalization: AV on un-normalized exponentials ...
            out_u = jnp.dot(v_used, e.astype(mm_dtype),
                            preferred_element_type=f32)       # (dh, Tq) f32
            # ... then rescale the small (dh, Tq) slab (lane-aligned broadcast).
            inv = pl.reciprocal(ssum, approx=approx)          # (1, Tq)
            res_ref[pl.ds(i * dh, dh), pl.ds(q0, tq)] = out_u * inv

    yc = jnp.dot(w_ref[3], res_ref[...].astype(mm_dtype),
                 preferred_element_type=f32)                  # (C, N) f32
    yc = jnp.maximum(yc + b_ref[:, 3:4], 0.0)

    gamma = gamma_ref[0, 0]
    o_ref[...] = (xv_ref[...] + gamma * yc).astype(o_ref.dtype)


# ---------------------------------------------------------------------------
# Wrapper helpers
# ---------------------------------------------------------------------------
def _pick_query_tile(N, max_tq=512):
    if N <= max_tq:
        return N
    for t in (512, 384, 256, 128):
        if N % t == 0:
            return t
    return N   # TODO(synk): ragged N (not multiple of 128) falls back to untiled.


def _vmem_limit_bytes(C, N, tq):
    f32b = 4
    est = (
        3 * 2 * C * N * f32b        # q/k/v f32 inputs, double-buffered
        + 2 * C * N * f32b          # f32 output, double-buffered
        + C * N * f32b              # result scratch
        + 5 * C * N * f32b          # q/k/v activations + bf16 copies + k^T
        + 3 * N * tq * f32b         # score / exp slabs per query tile
        + 4 * C * C * f32b          # packed weights (double-buffered)
        + (4 << 20)                 # headroom for temporaries / spills
    )
    try:
        cap = pltpu.get_tpu_info().vmem_capacity_bytes - (16 << 20)
    except Exception:
        cap = 48 << 20              # conservative: fits v7x's 64 MiB physical VMEM
    return int(min(max(est, 32 << 20), cap))


# ---------------------------------------------------------------------------
# Wrapper: layout-free glue (squeeze, BN folding into weights, pallas_call).
# ---------------------------------------------------------------------------
def cci_transformer_layer_forward(n1, n2, n3, params, *, heads=4, dim_head=32,
                                  use_bf16=True, max_query_tile=512):
    """n1, n2, n3 : (B, C, N, 1) NCHW (q, k, v), float32; C == heads * dim_head.
    Returns (B, C, N, 1) float32 (eval-mode BatchNorm), matching PyTorch."""
    B, C, N, W = n1.shape
    assert W == 1 and C == heads * dim_head
    mm_dtype = jnp.bfloat16 if use_bf16 else jnp.float32

    # Inputs stay f32: no wrapper-side cast pass over HBM. The kernel casts to
    # bf16 right before each matmul and the residual uses the true f32 v.
    xq = n1[..., 0]
    xk = n2[..., 0]
    xv = n3[..., 0]

    # Fold eval-mode BN into the 1x1-conv weights/bias (f32), cast weights once.
    names = ("to_q", "to_k", "to_v", "conv")
    w_cols, b_cols = [], []
    for nm in names:
        p = params[nm]
        s = p["g"] / jnp.sqrt(p["v"] + 1e-5)
        w_cols.append(p["w"][:, :, 0, 0] * s[:, None])        # W' = s * W
        b_cols.append((p["cb"] - p["m"]) * s + p["b"])        # b' = (cb-m)*s + b
    w_all = jnp.stack(w_cols).astype(mm_dtype)                # (4, C, C)
    b_all = jnp.stack(b_cols, axis=1).astype(jnp.float32)     # (C, 4)
    gamma = jnp.asarray(params["gamma"], jnp.float32).reshape(1, 1)

    tq = _pick_query_tile(N, max_query_tile)
    assert N % tq == 0

    kernel = functools.partial(_mh_attention_kernel, heads=heads,
                               dim_head=dim_head, tq=tq, mm_dtype=mm_dtype)
    out = pl.pallas_call(
        kernel,
        out_shape=jax.ShapeDtypeStruct((B, C, N), jnp.float32),
        grid_spec=pltpu.PrefetchScalarGridSpec(
            num_scalar_prefetch=0,
            grid=(B,),
            in_specs=[
                pl.BlockSpec((None, C, N), lambda b: (b, 0, 0)),    # x_q (f32)
                pl.BlockSpec((None, C, N), lambda b: (b, 0, 0)),    # x_k (f32)
                pl.BlockSpec((None, C, N), lambda b: (b, 0, 0)),    # x_v (f32)
                pl.BlockSpec((4, C, C), lambda b: (0, 0, 0)),       # folded weights
                pl.BlockSpec((C, 4), lambda b: (0, 0)),             # folded biases
                pl.BlockSpec(memory_space=pltpu.MemorySpace.SMEM),  # gamma scalar
            ],
            out_specs=pl.BlockSpec((None, C, N), lambda b: (b, 0, 0)),
            scratch_shapes=[pltpu.VMEM((C, N), jnp.float32)],       # head concat
        ),
        compiler_params=pltpu.CompilerParams(
            dimension_semantics=("parallel",),
            vmem_limit_bytes=_vmem_limit_bytes(C, N, tq),
        ),
    )(xq, xk, xv, w_all, b_all, gamma)
    # TODO(synk): for B=1 on v7x, only one of the two TensorCores is used (the
    # gating chain forbids a parallel head/query grid axis).

    return out[..., None]                                           # (B, C, N, 1)


# ---------------------------------------------------------------------------
# Plain-JAX f32 reference mirroring the PyTorch forward (correctness check).
# ---------------------------------------------------------------------------
def _reference_forward(n1, n2, n3, params, *, heads=4, dim_head=32):
    hi = jax.lax.Precision.HIGHEST

    def conv_bn_relu(x, p, eps=1e-5):                               # x: (B, C, N)
        w = p["w"][:, :, 0, 0]
        y = jnp.einsum("oc,bcn->bon", w, x, precision=hi) + p["cb"][None, :, None]
        s = p["g"] / jnp.sqrt(p["v"] + eps)
        y = (y - p["m"][None, :, None]) * s[None, :, None] + p["b"][None, :, None]
        return jax.nn.relu(y)

    xq, xk, xv = n1[..., 0], n2[..., 0], n3[..., 0]
    q = conv_bn_relu(xq, params["to_q"])
    k = conv_bn_relu(xk, params["to_k"])
    v = conv_bn_relu(xv, params["to_v"])

    outs = []
    for i in range(heads):
        sl = slice(i * dim_head, (i + 1) * dim_head)
        qh, kh, vh = q[:, sl], k[:, sl], v[:, sl]
        scores = jnp.einsum("bcq,bck->bqk", qh, kh, precision=hi)
        att = jax.nn.softmax(scores, axis=-1)
        v_used = vh if i == 0 else vh * jax.nn.sigmoid(outs[i - 1])
        outs.append(jnp.einsum("bck,bqk->bcq", v_used, att, precision=hi))
    res = jnp.concatenate(outs, axis=1)
    y = conv_bn_relu(res, params["conv"])
    return (xv + params["gamma"] * y)[..., None]


# ---------------------------------------------------------------------------
def _init_branch(key, C, w_scale=0.1):
    ks = jax.random.split(key, 6)
    return {
        "w": w_scale * jax.random.normal(ks[0], (C, C, 1, 1), jnp.float32),
        "cb": 0.05 * jax.random.normal(ks[1], (C,), jnp.float32),
        "g": 1.0 + 0.05 * jax.random.normal(ks[2], (C,), jnp.float32),
        "b": 0.05 * jax.random.normal(ks[3], (C,), jnp.float32),
        "m": 0.05 * jax.random.normal(ks[4], (C,), jnp.float32),
        "v": 1.0 + 0.1 * jax.random.uniform(ks[5], (C,), jnp.float32),
    }


def _init_params(key, C):
    kq, kk, kv, kc = jax.random.split(key, 4)
    return {
        "to_q": _init_branch(kq, C),
        "to_k": _init_branch(kk, C),
        "to_v": _init_branch(kv, C),
        "conv": _init_branch(kc, C),
        # PyTorch inits gamma to 0 (output == v); use 0.5 so the check is meaningful.
        "gamma": 0.5,
    }


if __name__ == "__main__":
    B, HEADS, DH, N = 2, 4, 32, 256
    C = HEADS * DH                      # 128, as required by the module structure
    key = jax.random.PRNGKey(0)
    k1, k2, k3, kp = jax.random.split(key, 4)
    n1 = jax.random.normal(k1, (B, C, N, 1), jnp.float32)
    n2 = jax.random.normal(k2, (B, C, N, 1), jnp.float32)
    n3 = jax.random.normal(k3, (B, C, N, 1), jnp.float32)
    params = _init_params(kp, C)

    ref = jax.block_until_ready(
        _reference_forward(n1, n2, n3, params, heads=HEADS, dim_head=DH))

    # Exact-math check: f32 kernel vs f32 reference.
    out_f32 = jax.block_until_ready(
        cci_transformer_layer_forward(n1, n2, n3, params, heads=HEADS,
                                      dim_head=DH, use_bf16=False))
    assert out_f32.shape == (B, C, N, 1)
    assert jnp.allclose(out_f32, ref, atol=5e-3, rtol=5e-3)

    # Fast path: bf16 matmul operands, f32 softmax / gating / residual.
    out_bf16 = jax.block_until_ready(
        cci_transformer_layer_forward(n1, n2, n3, params, heads=HEADS,
                                      dim_head=DH, use_bf16=True))
    assert out_bf16.shape == (B, C, N, 1)
    assert jnp.allclose(out_bf16, ref, atol=2e-1, rtol=2e-1)

    print("KERNEL_OK")
</pallas_src>

<mosaic_0001>
module attributes {stable_mosaic.version = 11 : i64} {
  func.func @_mh_attention_kernel(%arg0: i32, %arg1: memref<1x128x256xf32, #tpu.memory_space<vmem>>, %arg2: memref<1x128x256xf32, #tpu.memory_space<vmem>>, %arg3: memref<1x128x256xf32, #tpu.memory_space<vmem>>, %arg4: memref<4x128x128xf32, #tpu.memory_space<vmem>>, %arg5: memref<128x4xf32, #tpu.memory_space<vmem>>, %arg6: memref<1x1xf32, #tpu.memory_space<smem>>, %arg7: memref<1x128x256xf32, #tpu.memory_space<vmem>>, %arg8: memref<128x256xf32, #tpu.memory_space<vmem>>) attributes {dimension_semantics = [#tpu.dimension_semantics<parallel>], iteration_bounds = array<i64: 2>, scalar_prefetch = 0 : i64, scratch_operands = 1 : i64, tpu.core_type = #tpu.core_type<tc>, window_params = [{transform_indices = @transform_0, window_bounds = array<i64: 1, 128, 256>}, {transform_indices = @transform_1, window_bounds = array<i64: 1, 128, 256>}, {transform_indices = @transform_2, window_bounds = array<i64: 1, 128, 256>}, {pipeline_mode = #tpu.pipeline_mode<synchronous>, transform_indices = @transform_3, window_bounds = array<i64: 4, 128, 128>}, {pipeline_mode = #tpu.pipeline_mode<synchronous>, transform_indices = @transform_4, window_bounds = array<i64: 128, 4>}, {transform_indices = @transform_5, window_bounds = array<i64: 1, 1>}, {transform_indices = @transform_6, window_bounds = array<i64: 1, 128, 256>}]} {
    %c0 = arith.constant 0 : index
    %c0_0 = arith.constant 0 : index
    %c0_1 = arith.constant 0 : index
    %0 = vector.load %arg1[%c0, %c0_0, %c0_1] : memref<1x128x256xf32, #tpu.memory_space<vmem>>, vector<1x128x256xf32>
    %1 = vector.shape_cast %0 : vector<1x128x256xf32> to vector<128x256xf32>
    %c0_2 = arith.constant 0 : index
    %c0_3 = arith.constant 0 : index
    %c0_4 = arith.constant 0 : index
    %2 = vector.load %arg4[%c0_2, %c0_3, %c0_4] : memref<4x128x128xf32, #tpu.memory_space<vmem>>, vector<1x128x128xf32>
    %3 = vector.shape_cast %2 : vector<1x128x128xf32> to vector<128x128xf32>
    %cst = arith.constant dense<0.000000e+00> : vector<128x256xf32>
    %4 = tpu.matmul %3, %1, %cst {dimension_numbers = #tpu.dot_dimension_numbers<[1], [0], [0], [1], [0, 0, 1, 1], [], []>} : vector<128x128xf32>, vector<128x256xf32>, vector<128x256xf32> -> vector<128x256xf32>
    %c0_5 = arith.constant 0 : index
    %c0_6 = arith.constant 0 : index
    %5 = vector.load %arg5[%c0_5, %c0_6] : memref<128x4xf32, #tpu.memory_space<vmem>>, vector<128x1xf32>
    %6 = vector.broadcast %5 : vector<128x1xf32> to vector<128x256xf32>
    %7 = arith.addf %4, %6 : vector<128x256xf32>
    %cst_7 = arith.constant 0.000000e+00 : f32
    %8 = vector.broadcast %cst_7 : f32 to vector<128x256xf32>
    %9 = arith.maximumf %7, %8 : vector<128x256xf32>
    %c0_8 = arith.constant 0 : index
    %c0_9 = arith.constant 0 : index
    %c0_10 = arith.constant 0 : index
    %10 = vector.load %arg2[%c0_8, %c0_9, %c0_10] : memref<1x128x256xf32, #tpu.memory_space<vmem>>, vector<1x128x256xf32>
    %11 = vector.shape_cast %10 : vector<1x128x256xf32> to vector<128x256xf32>
    %c1 = arith.constant 1 : index
    %c0_11 = arith.constant 0 : index
    %c0_12 = arith.constant 0 : index
    %12 = vector.load %arg4[%c1, %c0_11, %c0_12] : memref<4x128x128xf32, #tpu.memory_space<vmem>>, vector<1x128x128xf32>
    %13 = vector.shape_cast %12 : vector<1x128x128xf32> to vector<128x128xf32>
    %cst_13 = arith.constant dense<0.000000e+00> : vector<128x256xf32>
    %14 = tpu.matmul %13, %11, %cst_13 {dimension_numbers = #tpu.dot_dimension_numbers<[1], [0], [0], [1], [0, 0, 1, 1], [], []>} : vector<128x128xf32>, vector<128x256xf32>, vector<128x256xf32> -> vector<128x256xf32>
    %c0_14 = arith.constant 0 : index
    %c1_15 = arith.constant 1 : index
    %15 = vector.load %arg5[%c0_14, %c1_15] : memref<128x4xf32, #tpu.memory_space<vmem>>, vector<128x1xf32>
    %16 = vector.broadcast %15 : vector<128x1xf32> to vector<128x256xf32>
    %17 = arith.addf %14, %16 : vector<128x256xf32>
    %cst_16 = arith.constant 0.000000e+00 : f32
    %18 = vector.broadcast %cst_16 : f32 to vector<128x256xf32>
    %19 = arith.maximumf %17, %18 : vector<128x256xf32>
    %c0_17 = arith.constant 0 : index
    %c0_18 = arith.constant 0 : index
    %c0_19 = arith.constant 0 : index
    %20 = vector.load %arg3[%c0_17, %c0_18, %c0_19] : memref<1x128x256xf32, #tpu.memory_space<vmem>>, vector<1x128x256xf32>
    %21 = vector.shape_cast %20 : vector<1x128x256xf32> to vector<128x256xf32>
    %c2 = arith.constant 2 : index
    %c0_20 = arith.constant 0 : index
    %c0_21 = arith.constant 0 : index
    %22 = vector.load %arg4[%c2, %c0_20, %c0_21] : memref<4x128x128xf32, #tpu.memory_space<vmem>>, vector<1x128x128xf32>
    %23 = vector.shape_cast %22 : vector<1x128x128xf32> to vector<128x128xf32>
    %cst_22 = arith.constant dense<0.000000e+00> : vector<128x256xf32>
    %24 = tpu.matmul %23, %21, %cst_22 {dimension_numbers = #tpu.dot_dimension_numbers<[1], [0], [0], [1], [0, 0, 1, 1], [], []>} : vector<128x128xf32>, vector<128x256xf32>, vector<128x256xf32> -> vector<128x256xf32>
    %c0_23 = arith.constant 0 : index
    %c2_24 = arith.constant 2 : index
    %25 = vector.load %arg5[%c0_23, %c2_24] : memref<128x4xf32, #tpu.memory_space<vmem>>, vector<128x1xf32>
    %26 = vector.broadcast %25 : vector<128x1xf32> to vector<128x256xf32>
    %27 = arith.addf %24, %26 : vector<128x256xf32>
    %cst_25 = arith.constant 0.000000e+00 : f32
    %28 = vector.broadcast %cst_25 : f32 to vector<128x256xf32>
    %29 = arith.maximumf %27, %28 : vector<128x256xf32>
    %30 = tpu.transpose %19, [1, 0] : vector<128x256xf32> -> vector<256x128xf32>
    %31 = vector.extract_strided_slice %30 {offsets = [0, 0], sizes = [256, 32], strides = [1, 1]} : vector<256x128xf32> to vector<256x32xf32>
    %32 = vector.extract_strided_slice %9 {offsets = [0, 0], sizes = [32, 256], strides = [1, 1]} : vector<128x256xf32> to vector<32x256xf32>
    %33 = vector.extract_strided_slice %29 {offsets = [0, 0], sizes = [32, 256], strides = [1, 1]} : vector<128x256xf32> to vector<32x256xf32>
    %cst_26 = arith.constant dense<0.000000e+00> : vector<256x256xf32>
    %34 = tpu.matmul %31, %32, %cst_26 {dimension_numbers = #tpu.dot_dimension_numbers<[1], [0], [0], [1], [0, 0, 1, 1], [], []>} : vector<256x32xf32>, vector<32x256xf32>, vector<256x256xf32> -> vector<256x256xf32>
    %cst_27 = arith.constant dense<0xFF800000> : vector<256xf32>
    %35 = vector.multi_reduction <maximumf>, %34, %cst_27 [0] : vector<256x256xf32> to vector<256xf32>
    %36 = vector.shape_cast %35 : vector<256xf32> to vector<1x256xf32>
    %37 = vector.broadcast %36 : vector<1x256xf32> to vector<256x256xf32>
    %38 = arith.subf %34, %37 : vector<256x256xf32>
    %39 = math.exp %38 : vector<256x256xf32>
    %cst_28 = arith.constant dense<0.000000e+00> : vector<256xf32>
    %40 = vector.multi_reduction <add>, %39, %cst_28 [0] : vector<256x256xf32> to vector<256xf32>
    %41 = vector.shape_cast %40 : vector<256xf32> to vector<1x256xf32>
    %cst_29 = arith.constant dense<0.000000e+00> : vector<32x256xf32>
    %42 = tpu.matmul %33, %39, %cst_29 {dimension_numbers = #tpu.dot_dimension_numbers<[1], [0], [0], [1], [0, 0, 1, 1], [], []>} : vector<32x256xf32>, vector<256x256xf32>, vector<32x256xf32> -> vector<32x256xf32>
    %43 = tpu.reciprocal %41 : vector<1x256xf32> -> vector<1x256xf32>
    %44 = vector.broadcast %43 : vector<1x256xf32> to vector<32x256xf32>
    %45 = arith.mulf %42, %44 : vector<32x256xf32>
    %c0_30 = arith.constant 0 : index
    %c0_31 = arith.constant 0 : index
    %46 = vector.load %arg8[%c0_30, %c0_31] : memref<128x256xf32, #tpu.memory_space<vmem>>, vector<32x256xf32>
    tpu.vector_store %arg8[%c0_30, %c0_31], %45 {strides = array<i32>} : memref<128x256xf32, #tpu.memory_space<vmem>>, vector<32x256xf32>,
    %47 = vector.extract_strided_slice %30 {offsets = [0, 32], sizes = [256, 32], strides = [1, 1]} : vector<256x128xf32> to vector<256x32xf32>
    %48 = vector.extract_strided_slice %9 {offsets = [32, 0], sizes = [32, 256], strides = [1, 1]} : vector<128x256xf32> to vector<32x256xf32>
    %49 = vector.extract_strided_slice %29 {offsets = [32, 0], sizes = [32, 256], strides = [1, 1]} : vector<128x256xf32> to vector<32x256xf32>
    %c0_32 = arith.constant 0 : index
    %c0_33 = arith.constant 0 : index
    %50 = vector.load %arg8[%c0_32, %c0_33] : memref<128x256xf32, #tpu.memory_space<vmem>>, vector<32x256xf32>
    %cst_34 = arith.constant 5.000000e-01 : f32
    %51 = vector.broadcast %cst_34 : f32 to vector<32x256xf32>
    %52 = arith.mulf %51, %50 : vector<32x256xf32>
    %53 = math.tanh %52 : vector<32x256xf32>
    %cst_35 = arith.constant 1.000000e+00 : f32
    %54 = vector.broadcast %cst_35 : f32 to vector<32x256xf32>
    %55 = arith.addf %53, %54 : vector<32x256xf32>
    %cst_36 = arith.constant 5.000000e-01 : f32
    %56 = vector.broadcast %cst_36 : f32 to vector<32x256xf32>
    %57 = arith.mulf %56, %55 : vector<32x256xf32>
    %58 = arith.mulf %49, %57 : vector<32x256xf32>
    %cst_37 = arith.constant dense<0.000000e+00> : vector<256x256xf32>
    %59 = tpu.matmul %47, %48, %cst_37 {dimension_numbers = #tpu.dot_dimension_numbers<[1], [0], [0], [1], [0, 0, 1, 1], [], []>} : vector<256x32xf32>, vector<32x256xf32>, vector<256x256xf32> -> vector<256x256xf32>
    %cst_38 = arith.constant dense<0xFF800000> : vector<256xf32>
    %60 = vector.multi_reduction <maximumf>, %59, %cst_38 [0] : vector<256x256xf32> to vector<256xf32>
    %61 = vector.shape_cast %60 : vector<256xf32> to vector<1x256xf32>
    %62 = vector.broadcast %61 : vector<1x256xf32> to vector<256x256xf32>
    %63 = arith.subf %59, %62 : vector<256x256xf32>
    %64 = math.exp %63 : vector<256x256xf32>
    %cst_39 = arith.constant dense<0.000000e+00> : vector<256xf32>
    %65 = vector.multi_reduction <add>, %64, %cst_39 [0] : vector<256x256xf32> to vector<256xf32>
    %66 = vector.shape_cast %65 : vector<256xf32> to vector<1x256xf32>
    %cst_40 = arith.constant dense<0.000000e+00> : vector<32x256xf32>
    %67 = tpu.matmul %58, %64, %cst_40 {dimension_numbers = #tpu.dot_dimension_numbers<[1], [0], [0], [1], [0, 0, 1, 1], [], []>} : vector<32x256xf32>, vector<256x256xf32>, vector<32x256xf32> -> vector<32x256xf32>
    %68 = tpu.reciprocal %66 : vector<1x256xf32> -> vector<1x256xf32>
    %69 = vector.broadcast %68 : vector<1x256xf32> to vector<32x256xf32>
    %70 = arith.mulf %67, %69 : vector<32x256xf32>
    %c32 = arith.constant 32 : index
    %c0_41 = arith.constant 0 : index
    %71 = vector.load %arg8[%c32, %c0_41] : memref<128x256xf32, #tpu.memory_space<vmem>>, vector<32x256xf32>
    tpu.vector_store %arg8[%c32, %c0_41], %70 {strides = array<i32>} : memref<128x256xf32, #tpu.memory_space<vmem>>, vector<32x256xf32>,
    %72 = vector.extract_strided_slice %30 {offsets = [0, 64], sizes = [256, 32], strides = [1, 1]} : vector<256x128xf32> to vector<256x32xf32>
    %73 = vector.extract_strided_slice %9 {offsets = [64, 0], sizes = [32, 256], strides = [1, 1]} : vector<128x256xf32> to vector<32x256xf32>
    %74 = vector.extract_strided_slice %29 {offsets = [64, 0], sizes = [32, 256], strides = [1, 1]} : vector<128x256xf32> to vector<32x256xf32>
    %c32_42 = arith.constant 32 : index
    %c0_43 = arith.constant 0 : index
    %75 = vector.load %arg8[%c32_42, %c0_43] : memref<128x256xf32, #tpu.memory_space<vmem>>, vector<32x256xf32>
    %cst_44 = arith.constant 5.000000e-01 : f32
    %76 = vector.broadcast %cst_44 : f32 to vector<32x256xf32>
    %77 = arith.mulf %76, %75 : vector<32x256xf32>
    %78 = math.tanh %77 : vector<32x256xf32>
    %cst_45 = arith.constant 1.000000e+00 : f32
    %79 = vector.broadcast %cst_45 : f32 to vector<32x256xf32>
    %80 = arith.addf %78, %79 : vector<32x256xf32>
    %cst_46 = arith.constant 5.000000e-01 : f32
    %81 = vector.broadcast %cst_46 : f32 to vector<32x256xf32>
    %82 = arith.mulf %81, %80 : vector<32x256xf32>
    %83 = arith.mulf %74, %82 : vector<32x256xf32>
    %cst_47 = arith.constant dense<0.000000e+00> : vector<256x256xf32>
    %84 = tpu.matmul %72, %73, %cst_47 {dimension_numbers = #tpu.dot_dimension_numbers<[1], [0], [0], [1], [0, 0, 1, 1], [], []>} : vector<256x32xf32>, vector<32x256xf32>, vector<256x256xf32> -> vector<256x256xf32>
    %cst_48 = arith.constant dense<0xFF800000> : vector<256xf32>
    %85 = vector.multi_reduction <maximumf>, %84, %cst_48 [0] : vector<256x256xf32> to vector<256xf32>
    %86 = vector.shape_cast %85 : vector<256xf32> to vector<1x256xf32>
    %87 = vector.broadcast %86 : vector<1x256xf32> to vector<256x256xf32>
    %88 = arith.subf %84, %87 : vector<256x256xf32>
    %89 = math.exp %88 : vector<256x256xf32>
    %cst_49 = arith.constant dense<0.000000e+00> : vector<256xf32>
    %90 = vector.multi_reduction <add>, %89, %cst_49 [0] : vector<256x256xf32> to vector<256xf32>
    %91 = vector.shape_cast %90 : vector<256xf32> to vector<1x256xf32>
    %cst_50 = arith.constant dense<0.000000e+00> : vector<32x256xf32>
    %92 = tpu.matmul %83, %89, %cst_50 {dimension_numbers = #tpu.dot_dimension_numbers<[1], [0], [0], [1], [0, 0, 1, 1], [], []>} : vector<32x256xf32>, vector<256x256xf32>, vector<32x256xf32> -> vector<32x256xf32>
    %93 = tpu.reciprocal %91 : vector<1x256xf32> -> vector<1x256xf32>
    %94 = vector.broadcast %93 : vector<1x256xf32> to vector<32x256xf32>
    %95 = arith.mulf %92, %94 : vector<32x256xf32>
    %c64 = arith.constant 64 : index
    %c0_51 = arith.constant 0 : index
    %96 = vector.load %arg8[%c64, %c0_51] : memref<128x256xf32, #tpu.memory_space<vmem>>, vector<32x256xf32>
    tpu.vector_store %arg8[%c64, %c0_51], %95 {strides = array<i32>} : memref<128x256xf32, #tpu.memory_space<vmem>>, vector<32x256xf32>,
    %97 = vector.extract_strided_slice %30 {offsets = [0, 96], sizes = [256, 32], strides = [1, 1]} : vector<256x128xf32> to vector<256x32xf32>
    %98 = vector.extract_strided_slice %9 {offsets = [96, 0], sizes = [32, 256], strides = [1, 1]} : vector<128x256xf32> to vector<32x256xf32>
    %99 = vector.extract_strided_slice %29 {offsets = [96, 0], sizes = [32, 256], strides = [1, 1]} : vector<128x256xf32> to vector<32x256xf32>
    %c64_52 = arith.constant 64 : index
    %c0_53 = arith.constant 0 : index
    %100 = vector.load %arg8[%c64_52, %c0_53] : memref<128x256xf32, #tpu.memory_space<vmem>>, vector<32x256xf32>
    %cst_54 = arith.constant 5.000000e-01 : f32
    %101 = vector.broadcast %cst_54 : f32 to vector<32x256xf32>
    %102 = arith.mulf %101, %100 : vector<32x256xf32>
    %103 = math.tanh %102 : vector<32x256xf32>
    %cst_55 = arith.constant 1.000000e+00 : f32
    %104 = vector.broadcast %cst_55 : f32 to vector<32x256xf32>
    %105 = arith.addf %103, %104 : vector<32x256xf32>
    %cst_56 = arith.constant 5.000000e-01 : f32
    %106 = vector.broadcast %cst_56 : f32 to vector<32x256xf32>
    %107 = arith.mulf %106, %105 : vector<32x256xf32>
    %108 = arith.mulf %99, %107 : vector<32x256xf32>
    %cst_57 = arith.constant dense<0.000000e+00> : vector<256x256xf32>
    %109 = tpu.matmul %97, %98, %cst_57 {dimension_numbers = #tpu.dot_dimension_numbers<[1], [0], [0], [1], [0, 0, 1, 1], [], []>} : vector<256x32xf32>, vector<32x256xf32>, vector<256x256xf32> -> vector<256x256xf32>
    %cst_58 = arith.constant dense<0xFF800000> : vector<256xf32>
    %110 = vector.multi_reduction <maximumf>, %109, %cst_58 [0] : vector<256x256xf32> to vector<256xf32>
    %111 = vector.shape_cast %110 : vector<256xf32> to vector<1x256xf32>
    %112 = vector.broadcast %111 : vector<1x256xf32> to vector<256x256xf32>
    %113 = arith.subf %109, %112 : vector<256x256xf32>
    %114 = math.exp %113 : vector<256x256xf32>
    %cst_59 = arith.constant dense<0.000000e+00> : vector<256xf32>
    %115 = vector.multi_reduction <add>, %114, %cst_59 [0] : vector<256x256xf32> to vector<256xf32>
    %116 = vector.shape_cast %115 : vector<256xf32> to vector<1x256xf32>
    %cst_60 = arith.constant dense<0.000000e+00> : vector<32x256xf32>
    %117 = tpu.matmul %108, %114, %cst_60 {dimension_numbers = #tpu.dot_dimension_numbers<[1], [0], [0], [1], [0, 0, 1, 1], [], []>} : vector<32x256xf32>, vector<256x256xf32>, vector<32x256xf32> -> vector<32x256xf32>
    %118 = tpu.reciprocal %116 : vector<1x256xf32> -> vector<1x256xf32>
    %119 = vector.broadcast %118 : vector<1x256xf32> to vector<32x256xf32>
    %120 = arith.mulf %117, %119 : vector<32x256xf32>
    %c96 = arith.constant 96 : index
    %c0_61 = arith.constant 0 : index
    %121 = vector.load %arg8[%c96, %c0_61] : memref<128x256xf32, #tpu.memory_space<vmem>>, vector<32x256xf32>
    tpu.vector_store %arg8[%c96, %c0_61], %120 {strides = array<i32>} : memref<128x256xf32, #tpu.memory_space<vmem>>, vector<32x256xf32>,
    %c3 = arith.constant 3 : index
    %c0_62 = arith.constant 0 : index
    %c0_63 = arith.constant 0 : index
    %122 = vector.load %arg4[%c3, %c0_62, %c0_63] : memref<4x128x128xf32, #tpu.memory_space<vmem>>, vector<1x128x128xf32>
    %123 = vector.shape_cast %122 : vector<1x128x128xf32> to vector<128x128xf32>
    %c0_64 = arith.constant 0 : index
    %c0_65 = arith.constant 0 : index
    %124 = vector.load %arg8[%c0_64, %c0_65] : memref<128x256xf32, #tpu.memory_space<vmem>>, vector<128x256xf32>
    %cst_66 = arith.constant dense<0.000000e+00> : vector<128x256xf32>
    %125 = tpu.matmul %123, %124, %cst_66 {dimension_numbers = #tpu.dot_dimension_numbers<[1], [0], [0], [1], [0, 0, 1, 1], [], []>} : vector<128x128xf32>, vector<128x256xf32>, vector<128x256xf32> -> vector<128x256xf32>
    %c0_67 = arith.constant 0 : index
    %c3_68 = arith.constant 3 : index
    %126 = vector.load %arg5[%c0_67, %c3_68] : memref<128x4xf32, #tpu.memory_space<vmem>>, vector<128x1xf32>
    %127 = vector.broadcast %126 : vector<128x1xf32> to vector<128x256xf32>
    %128 = arith.addf %125, %127 : vector<128x256xf32>
    %cst_69 = arith.constant 0.000000e+00 : f32
    %129 = vector.broadcast %cst_69 : f32 to vector<128x256xf32>
    %130 = arith.maximumf %128, %129 : vector<128x256xf32>
    %c0_70 = arith.constant 0 : index
    %c0_71 = arith.constant 0 : index
    %131 = memref.load %arg6[%c0_70, %c0_71] : memref<1x1xf32, #tpu.memory_space<smem>>
    %c0_72 = arith.constant 0 : index
    %c0_73 = arith.constant 0 : index
    %c0_74 = arith.constant 0 : index
    %132 = vector.load %arg3[%c0_72, %c0_73, %c0_74] : memref<1x128x256xf32, #tpu.memory_space<vmem>>, vector<1x128x256xf32>
    %133 = vector.shape_cast %132 : vector<1x128x256xf32> to vector<128x256xf32>
    %134 = vector.broadcast %131 : f32 to vector<128x256xf32>
    %135 = arith.mulf %134, %130 : vector<128x256xf32>
    %136 = arith.addf %133, %135 : vector<128x256xf32>
    %c0_75 = arith.constant 0 : index
    %c0_76 = arith.constant 0 : index
    %c0_77 = arith.constant 0 : index
    %137 = vector.load %arg7[%c0_75, %c0_76, %c0_77] : memref<1x128x256xf32, #tpu.memory_space<vmem>>, vector<1x128x256xf32>
    %138 = vector.shape_cast %137 : vector<1x128x256xf32> to vector<128x256xf32>
    %139 = vector.shape_cast %136 : vector<128x256xf32> to vector<1x128x256xf32>
    tpu.vector_store %arg7[%c0_75, %c0_76, %c0_77], %139 {strides = array<i32>} : memref<1x128x256xf32, #tpu.memory_space<vmem>>, vector<1x128x256xf32>,
    return
  }
  func.func @transform_0(%arg0: i32) -> (i32, i32, i32) {
    %c0_i32 = arith.constant 0 : i32
    %c0_i32_0 = arith.constant 0 : i32
    %c0_i32_1 = arith.constant 0 : i32
    return %arg0, %c0_i32, %c0_i32_0 : i32, i32, i32
  }
  func.func @transform_1(%arg0: i32) -> (i32, i32, i32) {
    %c0_i32 = arith.constant 0 : i32
    %c0_i32_0 = arith.constant 0 : i32
    %c0_i32_1 = arith.constant 0 : i32
    return %arg0, %c0_i32, %c0_i32_0 : i32, i32, i32
  }
  func.func @transform_2(%arg0: i32) -> (i32, i32, i32) {
    %c0_i32 = arith.constant 0 : i32
    %c0_i32_0 = arith.constant 0 : i32
    %c0_i32_1 = arith.constant 0 : i32
    return %arg0, %c0_i32, %c0_i32_0 : i32, i32, i32
  }
  func.func @transform_3(%arg0: i32) -> (i32, i32, i32) {
    %c0_i32 = arith.constant 0 : i32
    %c0_i32_0 = arith.constant 0 : i32
    %c0_i32_1 = arith.constant 0 : i32
    %c0_i32_2 = arith.constant 0 : i32
    return %c0_i32, %c0_i32_0, %c0_i32_1 : i32, i32, i32
  }
  func.func @transform_4(%arg0: i32) -> (i32, i32) {
    %c0_i32 = arith.constant 0 : i32
    %c0_i32_0 = arith.constant 0 : i32
    %c0_i32_1 = arith.constant 0 : i32
    return %c0_i32, %c0_i32_0 : i32, i32
  }
  func.func @transform_5(%arg0: i32) -> (i32, i32) {
    %c0_i32 = arith.constant 0 : i32
    %c0_i32_0 = arith.constant 0 : i32
    %c0_i32_1 = arith.constant 0 : i32
    return %c0_i32, %c0_i32_0 : i32, i32
  }
  func.func @transform_6(%arg0: i32) -> (i32, i32, i32) {
    %c0_i32 = arith.constant 0 : i32
    %c0_i32_0 = arith.constant 0 : i32
    %c0_i32_1 = arith.constant 0 : i32
    return %arg0, %c0_i32, %c0_i32_0 : i32, i32, i32
  }
}

</mosaic_0001>

<llo_original>
// kernel: tpu_custom_call.1
$region0: #{tpu_custom_call.1}
  #allocation0 [shape = 'u32[]', space=smem, size = 0x4, offset = 0x4, fixed_abs, tag = 'smem constant byte address 0x4 - core index']
  #allocation1 [shape = 'u32[144,128]{1,0:T(1,128)}', space=vmem, size = 0x12000, scoped, tag = 'internal scratch']
  #allocation2 [shape = 'f32[128,256]{1,0:T(8,128)}', space=vmem, size = 0x20000, scoped, tag = 'scratch operand']
  #allocation3 [shape = 'f32[1,1]{1,0:T(1,128)S(6)}', space=smem, size = 0x200, scoped, tag = 'scoped memory for tpu_custom_call.1']
  %s0 = inlined_call_operand.hbm [shape: f32[2,128,256], index: 0, kind: input, shape index: {}]
  %s1 = inlined_call_operand.hbm [shape: f32[2,128,256], index: 1, kind: input, shape index: {}]
  %s2 = inlined_call_operand.hbm [shape: f32[2,128,256], index: 2, kind: input, shape index: {}]
  %s3 = inlined_call_operand.hbm [shape: f32[4,128,128], index: 3, kind: input, shape index: {}]
  %s4 = inlined_call_operand.vmem [shape: f32[128,4], index: 4, kind: input, shape index: {}]
  %s5 = inlined_call_operand.<no memory space> [shape: f32[1,1], index: 5, kind: input, shape index: {}]
  %s6 = inlined_call_operand.hbm [shape: f32[2,128,256], index: 6, kind: output, shape index: {}]
  %s7 = sld [smem:[#allocation0]]
  $region73: #{tpu_custom_call.1} parent=0
    _
  %s9 = ssub.s32 1, %s7
  %s10 = scalar_select 0, %s9, %s7
  %11 = sst [smem:[#allocation3]] %s5
  $region1: #{tpu_custom_call.1} parent=0
    #allocation4 [shape = 'u8[262144]{0}', space=vmem, size = 0x40000, scoped, tag = 'input window, operand 0']
    #allocation5 [shape = 's32[2]{0}', space=sflag, size = 0x8, scoped, tag = 'scoped memory for tpu_custom_call.1']
    #allocation6 [shape = 's32[2]{0}', space=sflag, size = 0x8, scoped, tag = 'scoped memory for tpu_custom_call.1']
    #allocation7 [shape = 'u8[262144]{0}', space=vmem, size = 0x40000, scoped, tag = 'input window, operand 1']
    #allocation8 [shape = 's32[2]{0}', space=sflag, size = 0x8, scoped, tag = 'scoped memory for tpu_custom_call.1']
    #allocation9 [shape = 'u8[262144]{0}', space=vmem, size = 0x40000, scoped, tag = 'input window, operand 2']
    #allocation10 [shape = 'u8[262144]{0}', space=vmem, size = 0x40000, scoped, tag = 'input window, operand 3, single buffered']
    #allocation11 [shape = 's32[1]{0}', space=sflag, size = 0x4, scoped, tag = 'scoped memory for tpu_custom_call.1']
    #allocation12 [shape = 'u8[262144]{0}', space=vmem, size = 0x40000, scoped, tag = 'output window, operand 0']
    %12 = vsyncpa [#allocation5], 0
    %s13 = scalar_lea.sflag [#allocation5], 1
    %14 = vsyncpa %s13, 0
    %15 = vsyncpa [#allocation8], 0
    %s16 = scalar_lea.sflag [#allocation8], 1
    %17 = vsyncpa %s16, 0
    %18 = vsyncpa [#allocation11], 0
    %19 = vsyncpa [#allocation6], 0
    %s20 = scalar_lea.sflag [#allocation6], 1
    %21 = vsyncpa %s20, 0
    loop: start=0, step=1, limit=4
    $region2: #{tpu_custom_call.1} parent=1 // loop_pre_header
      _
    $region3: #{tpu_custom_call.1} parent=1 // loop_header
      %s23 = sphi 0, %s27
      %p24 = scmp.ge.s32.totalorder %s23, 4
      %s33 = sphi 0, %s35
      %s36 = sphi 0, %s33
      %s37 = sphi 0, %s36
      %s53 = sphi 0, %s37
      %s59 = sphi 0, %s61
      %s62 = sphi 0, %s59
      %s63 = sphi 0, %s62
      %s79 = sphi 0, %s63
      %s85 = sphi 0, %s87
      %s88 = sphi 0, %s85
      %s89 = sphi 0, %s88
      %s105 = sphi 0, %s89
      %s109 = sphi 0, %s109
      %s111 = sphi 0, %s109
      %s112 = sphi 0, %s111
      %s126 = sphi 0, %s112
      %s130 = sphi 0, %s130
      %s132 = sphi 0, %s130
      %s133 = sphi 0, %s132
      %s147 = sphi 0, %s133
      %s151 = sphi 0, %s151
      %s153 = sphi 0, %s151
      %s154 = sphi 0, %s153
      %s168 = sphi 0, %s154
      %s174 = sphi 0, %s176
      %s177 = sphi 0, %s174
      %s178 = sphi 0, %s177
      %s194 = sphi 0, %s178
    $region4: #{tpu_custom_call.1} parent=1 // loop_header_branch
      %26 = sbr.rel (%p24) target = $region8
    $region5: #{tpu_custom_call.1} parent=1 // loop_body
      %s28 = ssub.s32 %s23, 1
      %s29 = ssub.s32 %s23, 2
      %s30 = sadd.s32 %s23, 1
      %s31 = ssub.s32 %s23, %s30
      %p32 = scmp.eq.s32.totalorder %s31, 0
      %s34 = sadd.s32 %s33, 1
      %s35 = scalar_select %p32, %s33, %s34
      %p38 = pneg %p32
      %p39 = scmp.eq.s32.totalorder %s23, 1
      %p40 = por %p38, %p39
      %p41 = scmp.ne.s32.totalorder %s33, %s36
      %p42 = scmp.eq.s32.totalorder %s23, 0
      %p43 = por %p41, %p42
      %p44 = scmp.ne.s32.totalorder %s33, %s36
      %p45 = scmp.eq.s32.totalorder %s28, 1
      %p46 = por %p44, %p45
      %p47 = scmp.ne.s32.totalorder %s36, %s37
      %p48 = scmp.eq.s32.totalorder %s28, 0
      %p49 = por %p47, %p48
      %p50 = scmp.ne.s32.totalorder %s36, %s37
      %p51 = scmp.eq.s32.totalorder %s29, 1
      %p52 = por %p50, %p51
      %p54 = scmp.ne.s32.totalorder %s37, %s53
      %p55 = scmp.eq.s32.totalorder %s29, 0
      %p56 = por %p54, %p55
      %s57 = ssub.s32 %s23, %s30
      %p58 = scmp.eq.s32.totalorder %s57, 0
      %s60 = sadd.s32 %s59, 1
      %s61 = scalar_select %p58, %s59, %s60
      %p64 = pneg %p58
      %p65 = scmp.eq.s32.totalorder %s23, 1
      %p66 = por %p64, %p65
      %p67 = scmp.ne.s32.totalorder %s59, %s62
      %p68 = scmp.eq.s32.totalorder %s23, 0
      %p69 = por %p67, %p68
      %p70 = scmp.ne.s32.totalorder %s59, %s62
      %p71 = scmp.eq.s32.totalorder %s28, 1
      %p72 = por %p70, %p71
      %p73 = scmp.ne.s32.totalorder %s62, %s63
      %p74 = scmp.eq.s32.totalorder %s28, 0
      %p75 = por %p73, %p74
      %p76 = scmp.ne.s32.totalorder %s62, %s63
      %p77 = scmp.eq.s32.totalorder %s29, 1
      %p78 = por %p76, %p77
      %p80 = scmp.ne.s32.totalorder %s63, %s79
      %p81 = scmp.eq.s32.totalorder %s29, 0
      %p82 = por %p80, %p81
      %s83 = ssub.s32 %s23, %s30
      %p84 = scmp.eq.s32.totalorder %s83, 0
      %s86 = sadd.s32 %s85, 1
      %s87 = scalar_select %p84, %s85, %s86
      %p90 = pneg %p84
      %p91 = scmp.eq.s32.totalorder %s23, 1
      %p92 = por %p90, %p91
      %p93 = scmp.ne.s32.totalorder %s85, %s88
      %p94 = scmp.eq.s32.totalorder %s23, 0
      %p95 = por %p93, %p94
      %p96 = scmp.ne.s32.totalorder %s85, %s88
      %p97 = scmp.eq.s32.totalorder %s28, 1
      %p98 = por %p96, %p97
      %p99 = scmp.ne.s32.totalorder %s88, %s89
      %p100 = scmp.eq.s32.totalorder %s28, 0
      %p101 = por %p99, %p100
      %p102 = scmp.ne.s32.totalorder %s88, %s89
      %p103 = scmp.eq.s32.totalorder %s29, 1
      %p104 = por %p102, %p103
      %p106 = scmp.ne.s32.totalorder %s89, %s105
      %p107 = scmp.eq.s32.totalorder %s29, 0
      %p108 = por %p106, %p107
      %s110 = sadd.s32 %s109, 1
      %p113 = scmp.eq.s32.totalorder %s23, 1
      %p114 = scmp.ne.s32.totalorder %s109, %s111
      %p115 = scmp.eq.s32.totalorder %s23, 0
      %p116 = por %p114, %p115
      %p117 = scmp.ne.s32.totalorder %s109, %s111
      %p118 = scmp.eq.s32.totalorder %s28, 1
      %p119 = por %p117, %p118
      %p120 = scmp.ne.s32.totalorder %s111, %s112
      %p121 = scmp.eq.s32.totalorder %s28, 0
      %p122 = por %p120, %p121
      %p123 = scmp.ne.s32.totalorder %s111, %s112
      %p124 = scmp.eq.s32.totalorder %s29, 1
      %p125 = por %p123, %p124
      %p127 = scmp.ne.s32.totalorder %s112, %s126
      %p128 = scmp.eq.s32.totalorder %s29, 0
      %p129 = por %p127, %p128
      %s131 = sadd.s32 %s130, 1
      %p134 = scmp.eq.s32.totalorder %s23, 1
      %p135 = scmp.ne.s32.totalorder %s130, %s132
      %p136 = scmp.eq.s32.totalorder %s23, 0
      %p137 = por %p135, %p136
      %p138 = scmp.ne.s32.totalorder %s130, %s132
      %p139 = scmp.eq.s32.totalorder %s28, 1
      %p140 = por %p138, %p139
      %p141 = scmp.ne.s32.totalorder %s132, %s133
      %p142 = scmp.eq.s32.totalorder %s28, 0
      %p143 = por %p141, %p142
      %p144 = scmp.ne.s32.totalorder %s132, %s133
      %p145 = scmp.eq.s32.totalorder %s29, 1
      %p146 = por %p144, %p145
      %p148 = scmp.ne.s32.totalorder %s133, %s147
      %p149 = scmp.eq.s32.totalorder %s29, 0
      %p150 = por %p148, %p149
      %s152 = sadd.s32 %s151, 1
      %p155 = scmp.eq.s32.totalorder %s23, 1
      %p156 = scmp.ne.s32.totalorder %s151, %s153
      %p157 = scmp.eq.s32.totalorder %s23, 0
      %p158 = por %p156, %p157
      %p159 = scmp.ne.s32.totalorder %s151, %s153
      %p160 = scmp.eq.s32.totalorder %s28, 1
      %p161 = por %p159, %p160
      %p162 = scmp.ne.s32.totalorder %s153, %s154
      %p163 = scmp.eq.s32.totalorder %s28, 0
      %p164 = por %p162, %p163
      %p165 = scmp.ne.s32.totalorder %s153, %s154
      %p166 = scmp.eq.s32.totalorder %s29, 1
      %p167 = por %p165, %p166
      %p169 = scmp.ne.s32.totalorder %s154, %s168
      %p170 = scmp.eq.s32.totalorder %s29, 0
      %p171 = por %p169, %p170
      %s172 = ssub.s32 %s23, %s30
      %p173 = scmp.eq.s32.totalorder %s172, 0
      %s175 = sadd.s32 %s174, 1
      %s176 = scalar_select %p173, %s174, %s175
      %p179 = pneg %p173
      %p180 = scmp.eq.s32.totalorder %s23, 1
      %p181 = por %p179, %p180
      %p182 = scmp.ne.s32.totalorder %s174, %s177
      %p183 = scmp.eq.s32.totalorder %s23, 0
      %p184 = por %p182, %p183
      %p185 = scmp.ne.s32.totalorder %s174, %s177
      %p186 = scmp.eq.s32.totalorder %s28, 1
      %p187 = por %p185, %p186
      %p188 = scmp.ne.s32.totalorder %s177, %s178
      %p189 = scmp.eq.s32.totalorder %s28, 0
      %p190 = por %p188, %p189
      %p191 = scmp.ne.s32.totalorder %s177, %s178
      %p192 = scmp.eq.s32.totalorder %s29, 1
      %p193 = por %p191, %p192
      %p195 = scmp.ne.s32.totalorder %s178, %s194
      %p196 = scmp.eq.s32.totalorder %s29, 0
      %p197 = por %p195, %p196
      %p198 = scmp.le.s32.totalorder 1, %s23
      %p199 = scmp.lt.s32.totalorder %s23, 3
      %p200 = pnand %p198, %p199
      %p201 = pneg %p200
      // Predicated region
      $region9: #{tpu_custom_call.1} parent=5 // pred_check
        _
      $region10: #{tpu_custom_call.1} parent=5 // pred_check_branch
        %203 = sbr.rel (%p200) target = $region12
      $region11: #{tpu_custom_call.1} parent=5 // pred_region
        %s204 = ssub.s32 %s23, 1
        // Predicated region
        $region13: #{tpu_custom_call.1} parent=11 // pred_check
          %p205 = pneg %p122
        $region14: #{tpu_custom_call.1} parent=11 // pred_check_branch
          %207 = sbr.rel (%p205) target = $region16
        $region15: #{tpu_custom_call.1} parent=11 // pred_region
          %s209 = ssub.s32 8192, 8192
          %210 = vsyncadd [#allocation11], %s209
          %s211 = sshll.u32 [#allocation10], 4
          %s212 = int_to_ptr.vmem [resolvable:$true] %s211
          %217 = dma.hbm_to_vmem [thread:$0]  %s3, 8192, %s212, [#allocation11], 128, 128, 8
        $region16: #{tpu_custom_call.1} parent=11 // pred_fallthru
          _
        // Predicated region
        $region17: #{tpu_custom_call.1} parent=11 // pred_check
          %p218 = pneg %p143
        $region18: #{tpu_custom_call.1} parent=11 // pred_check_branch
          %220 = sbr.rel (%p218) target = $region20
        $region19: #{tpu_custom_call.1} parent=11 // pred_region
          _
        $region20: #{tpu_custom_call.1} parent=11 // pred_fallthru
          _
        // Predicated region
        $region21: #{tpu_custom_call.1} parent=11 // pred_check
          %p221 = pneg %p164
        $region22: #{tpu_custom_call.1} parent=11 // pred_check_branch
          %223 = sbr.rel (%p221) target = $region24
        $region23: #{tpu_custom_call.1} parent=11 // pred_region
          _
        $region24: #{tpu_custom_call.1} parent=11 // pred_fallthru
          _
      $region12: #{tpu_custom_call.1} parent=5 // pred_fallthru
        _
      %p224 = scmp.lt.s32.totalorder %s23, 2
      // Predicated region
      $region25: #{tpu_custom_call.1} parent=5 // pred_check
        %p225 = pneg %p224
      $region26: #{tpu_custom_call.1} parent=5 // pred_check_branch
        %227 = sbr.rel (%p225) target = $region28
      $region27: #{tpu_custom_call.1} parent=5 // pred_region
        // Predicated region
        $region29: #{tpu_custom_call.1} parent=27 // pred_check
          %p228 = pneg %p43
        $region30: #{tpu_custom_call.1} parent=27 // pred_check_branch
          %230 = sbr.rel (%p228) target = $region32
        $region31: #{tpu_custom_call.1} parent=27 // pred_region
          %s231 = sand.u32 %s33, 1
          %s232 = scalar_lea.sflag [#allocation5], %s231
          %s233 = sand.u32 %s33, 1
          %s234 = smul.addr %s233, 256
          %s235 = scalar_lea.vmem [#allocation4], %s234
          %s237 = ssub.s32 4096, 4096
          %238 = vsyncadd %s232, %s237
          %s239 = smul.addr %s23, 32
          %s240 = smul.addr %s239, 128
          %s241 = scalar_lea.hbm %s0, %s240
          %s242 = sshll.u32 %s235, 4
          %s243 = int_to_ptr.vmem [resolvable:$true] %s242
          %248 = dma.hbm_to_vmem [thread:$0]  %s241, 4096, %s243, %s232, 256, 256, 16
        $region32: #{tpu_custom_call.1} parent=27 // pred_fallthru
          _
        // Predicated region
        $region33: #{tpu_custom_call.1} parent=27 // pred_check
          %p249 = pneg %p69
        $region34: #{tpu_custom_call.1} parent=27 // pred_check_branch
          %251 = sbr.rel (%p249) target = $region36
        $region35: #{tpu_custom_call.1} parent=27 // pred_region
          %s252 = sand.u32 %s23, 1
          %s253 = scalar_lea.sflag [#allocation8], %s252
          %s254 = sand.u32 %s59, 1
          %s255 = smul.addr %s254, 256
          %s256 = scalar_lea.vmem [#allocation7], %s255
          %s258 = ssub.s32 4096, 4096
          %259 = vsyncadd %s253, %s258
          %s260 = smul.addr %s23, 32
          %s261 = smul.addr %s260, 128
          %s262 = scalar_lea.hbm %s1, %s261
          %s263 = sshll.u32 %s256, 4
          %s264 = int_to_ptr.vmem [resolvable:$true] %s263
          %269 = dma.hbm_to_vmem [thread:$0]  %s262, 4096, %s264, %s253, 256, 256, 16
        $region36: #{tpu_custom_call.1} parent=27 // pred_fallthru
          _
        // Predicated region
        $region37: #{tpu_custom_call.1} parent=27 // pred_check
          %p270 = pneg %p95
        $region38: #{tpu_custom_call.1} parent=27 // pred_check_branch
          %272 = sbr.rel (%p270) target = $region40
        $region39: #{tpu_custom_call.1} parent=27 // pred_region
          %s273 = sand.u32 %s23, 1
          %s274 = scalar_lea.sflag [#allocation8], %s273
          %s275 = sand.u32 %s85, 1
          %s276 = smul.addr %s275, 256
          %s277 = scalar_lea.vmem [#allocation9], %s276
          %s279 = ssub.s32 4096, 4096
          %280 = vsyncadd %s274, %s279
          %s281 = smul.addr %s23, 32
          %s282 = smul.addr %s281, 128
          %s283 = scalar_lea.hbm %s2, %s282
          %s284 = sshll.u32 %s277, 4
          %s285 = int_to_ptr.vmem [resolvable:$true] %s284
          %290 = dma.hbm_to_vmem [thread:$0]  %s283, 4096, %s285, %s274, 256, 256, 16
        $region40: #{tpu_custom_call.1} parent=27 // pred_fallthru
          _
      $region28: #{tpu_custom_call.1} parent=5 // pred_fallthru
        _
      %p291 = scmp.le.s32.totalorder 1, %s23
      %p292 = scmp.lt.s32.totalorder %s23, 3
      %p293 = pnand %p291, %p292
      %p294 = pneg %p293
      // Predicated region
      $region41: #{tpu_custom_call.1} parent=5 // pred_check
        _
      $region42: #{tpu_custom_call.1} parent=5 // pred_check_branch
        %296 = sbr.rel (%p293) target = $region44
      $region43: #{tpu_custom_call.1} parent=5 // pred_region
        %s297 = ssub.s32 %s23, 1
        %s298 = sand.u32 %s36, 1
        %s299 = scalar_lea.sflag [#allocation5], %s298
        %s300 = sand.u32 %s36, 1
        %s301 = smul.addr %s300, 256
        %s302 = scalar_lea.vmem [#allocation4], %s301
        // Predicated region
        $region45: #{tpu_custom_call.1} parent=43 // pred_check
          %p303 = pneg %p49
        $region46: #{tpu_custom_call.1} parent=43 // pred_check_branch
          %305 = sbr.rel (%p303) target = $region48
        $region47: #{tpu_custom_call.1} parent=43 // pred_region
          %306 = dma.done %s299, 4096
        $region48: #{tpu_custom_call.1} parent=43 // pred_fallthru
          _
        %s307 = sand.u32 %s28, 1
        %s308 = scalar_lea.sflag [#allocation8], %s307
        %s309 = sand.u32 %s62, 1
        %s310 = smul.addr %s309, 256
        %s311 = scalar_lea.vmem [#allocation7], %s310
        // Predicated region
        $region49: #{tpu_custom_call.1} parent=43 // pred_check
          %p312 = pneg %p75
        $region50: #{tpu_custom_call.1} parent=43 // pred_check_branch
          %314 = sbr.rel (%p312) target = $region52
        $region51: #{tpu_custom_call.1} parent=43 // pred_region
          %315 = dma.done %s308, 4096
        $region52: #{tpu_custom_call.1} parent=43 // pred_fallthru
          _
        %s316 = sand.u32 %s28, 1
        %s317 = scalar_lea.sflag [#allocation8], %s316
        %s318 = sand.u32 %s88, 1
        %s319 = smul.addr %s318, 256
        %s320 = scalar_lea.vmem [#allocation9], %s319
        // Predicated region
        $region53: #{tpu_custom_call.1} parent=43 // pred_check
          %p321 = pneg %p101
        $region54: #{tpu_custom_call.1} parent=43 // pred_check_branch
          %323 = sbr.rel (%p321) target = $region56
        $region55: #{tpu_custom_call.1} parent=43 // pred_region
          %324 = dma.done %s317, 4096
        $region56: #{tpu_custom_call.1} parent=43 // pred_fallthru
          _
        // Predicated region
        $region57: #{tpu_custom_call.1} parent=43 // pred_check
          %p325 = pneg %p122
        $region58: #{tpu_custom_call.1} parent=43 // pred_check_branch
          %327 = sbr.rel (%p325) target = $region60
        $region59: #{tpu_custom_call.1} parent=43 // pred_region
          %328 = dma.done [#allocation11], 8192
        $region60: #{tpu_custom_call.1} parent=43 // pred_fallthru
          _
        %s329 = sand.u32 %s36, 1
        %s330 = scalar_lea.sflag [#allocation5], %s329
        %s331 = sand.u32 %s36, 1
        %s332 = smul.addr %s331, 256
        %s333 = scalar_lea.vmem [#allocation4], %s332
        %p334 = pneg %p49
        %p335 = pneg %p46
        %s336 = sand.u32 %s28, 1
        %s337 = scalar_lea.sflag [#allocation8], %s336
        %s338 = sand.u32 %s62, 1
        %s339 = smul.addr %s338, 256
        %s340 = scalar_lea.vmem [#allocation7], %s339
        %p341 = pneg %p75
        %p342 = pneg %p72
        %s343 = sand.u32 %s28, 1
        %s344 = scalar_lea.sflag [#allocation8], %s343
        %s345 = sand.u32 %s88, 1
        %s346 = smul.addr %s345, 256
        %s347 = scalar_lea.vmem [#allocation9], %s346
        %p348 = pneg %p101
        %p349 = pneg %p98
        %p350 = pneg %p122
        %p351 = pneg %p119
        %p352 = pneg %p143
        %p353 = pneg %p140
        %p354 = pneg %p164
        %p355 = pneg %p161
        %p356 = pneg %p190
        %p357 = pneg %p187
        %s358 = sand.u32 %s177, 1
        %s359 = scalar_lea.sflag [#allocation6], %s358
        %s360 = sand.u32 %s177, 1
        %s361 = smul.addr %s360, 256
        %s362 = scalar_lea.vmem [#allocation12], %s361
        %v363 = vld [vmem:[%s302] sm:$0xff]
        %v364 = vld [vmem:[%s302 + $0x8] sm:$0xff]
        %v365 = vld [vmem:[%s302 + $0x10] sm:$0xff]
        %v366 = vld [vmem:[%s302 + $0x18] sm:$0xff]
        %v367 = vld [vmem:[%s302 + $0x20] sm:$0xff]
        %v368 = vld [vmem:[%s302 + $0x28] sm:$0xff]
        %v369 = vld [vmem:[%s302 + $0x30] sm:$0xff]
        %v370 = vld [vmem:[%s302 + $0x38] sm:$0xff]
        %v371 = vld [vmem:[%s302 + $0x40] sm:$0xff]
        %v372 = vld [vmem:[%s302 + $0x48] sm:$0xff]
        %v373 = vld [vmem:[%s302 + $0x50] sm:$0xff]
        %v374 = vld [vmem:[%s302 + $0x58] sm:$0xff]
        %v375 = vld [vmem:[%s302 + $0x60] sm:$0xff]
        %v376 = vld [vmem:[%s302 + $0x68] sm:$0xff]
        %v377 = vld [vmem:[%s302 + $0x70] sm:$0xff]
        %v378 = vld [vmem:[%s302 + $0x78] sm:$0xff]
        %v379 = vld [vmem:[%s302 + $0x80] sm:$0xff]
        %v380 = vld [vmem:[%s302 + $0x88] sm:$0xff]
        %v381 = vld [vmem:[%s302 + $0x90] sm:$0xff]
        %v382 = vld [vmem:[%s302 + $0x98] sm:$0xff]
        %v383 = vld [vmem:[%s302 + $0xa0] sm:$0xff]
        %v384 = vld [vmem:[%s302 + $0xa8] sm:$0xff]
        %v385 = vld [vmem:[%s302 + $0xb0] sm:$0xff]
        %v386 = vld [vmem:[%s302 + $0xb8] sm:$0xff]
        %v387 = vld [vmem:[%s302 + $0xc0] sm:$0xff]
        %v388 = vld [vmem:[%s302 + $0xc8] sm:$0xff]
        %v389 = vld [vmem:[%s302 + $0xd0] sm:$0xff]
        %v390 = vld [vmem:[%s302 + $0xd8] sm:$0xff]
        %v391 = vld [vmem:[%s302 + $0xe0] sm:$0xff]
        %v392 = vld [vmem:[%s302 + $0xe8] sm:$0xff]
        %v393 = vld [vmem:[%s302 + $0xf0] sm:$0xff]
        %v394 = vld [vmem:[%s302 + $0xf8] sm:$0xff]
        %v395 = vld [vmem:[#allocation10] sm:$0xff]
        %v396 = vld [vmem:[#allocation10 + $0x8] sm:$0xff]
        %v397 = vld [vmem:[#allocation10 + $0x10] sm:$0xff]
        %v398 = vld [vmem:[#allocation10 + $0x18] sm:$0xff]
        %v399 = vld [vmem:[#allocation10 + $0x20] sm:$0xff]
        %v400 = vld [vmem:[#allocation10 + $0x28] sm:$0xff]
        %v401 = vld [vmem:[#allocation10 + $0x30] sm:$0xff]
        %v402 = vld [vmem:[#allocation10 + $0x38] sm:$0xff]
        %v403 = vld [vmem:[#allocation10 + $0x40] sm:$0xff]
        %v404 = vld [vmem:[#allocation10 + $0x48] sm:$0xff]
        %v405 = vld [vmem:[#allocation10 + $0x50] sm:$0xff]
        %v406 = vld [vmem:[#allocation10 + $0x58] sm:$0xff]
        %v407 = vld [vmem:[#allocation10 + $0x60] sm:$0xff]
        %v408 = vld [vmem:[#allocation10 + $0x68] sm:$0xff]
        %v409 = vld [vmem:[#allocation10 + $0x70] sm:$0xff]
        %v410 = vld [vmem:[#allocation10 + $0x78] sm:$0xff]
        %v411 = vld [vmem:[%s4] sm:$0xff]
        %v412 = vld [vmem:[%s4 + $0x8] sm:$0xff]
        %v413 = vld [vmem:[%s4 + $0x10] sm:$0xff]
        %v414 = vld [vmem:[%s4 + $0x18] sm:$0xff]
        %v415 = vld [vmem:[%s4 + $0x20] sm:$0xff]
        %v416 = vld [vmem:[%s4 + $0x28] sm:$0xff]
        %v417 = vld [vmem:[%s4 + $0x30] sm:$0xff]
        %v418 = vld [vmem:[%s4 + $0x38] sm:$0xff]
        %v419 = vld [vmem:[%s4 + $0x40] sm:$0xff]
        %v420 = vld [vmem:[%s4 + $0x48] sm:$0xff]
        %v421 = vld [vmem:[%s4 + $0x50] sm:$0xff]
        %v422 = vld [vmem:[%s4 + $0x58] sm:$0xff]
        %v423 = vld [vmem:[%s4 + $0x60] sm:$0xff]
        %v424 = vld [vmem:[%s4 + $0x68] sm:$0xff]
        %v425 = vld [vmem:[%s4 + $0x70] sm:$0xff]
        %v426 = vld [vmem:[%s4 + $0x78] sm:$0xff]
        %428 = vset.pattern.permute.xlu0 0
        %429 = vperm.xlu0 %428, %v411
        %v430 = vpop.permute.xlu0 %429
        %433 = vset.pattern.permute.xlu0 0
        %434 = vperm.xlu0 %433, %v412
        %v435 = vpop.permute.xlu0 %434
        %438 = vset.pattern.permute.xlu0 0
        %439 = vperm.xlu0 %438, %v413
        %v440 = vpop.permute.xlu0 %439
        %443 = vset.pattern.permute.xlu0 0
        %444 = vperm.xlu0 %443, %v414
        %v445 = vpop.permute.xlu0 %444
        %448 = vset.pattern.permute.xlu0 0
        %449 = vperm.xlu0 %448, %v415
        %v450 = vpop.permute.xlu0 %449
        %453 = vset.pattern.permute.xlu0 0
        %454 = vperm.xlu0 %453, %v416
        %v455 = vpop.permute.xlu0 %454
        %458 = vset.pattern.permute.xlu0 0
        %459 = vperm.xlu0 %458, %v417
        %v460 = vpop.permute.xlu0 %459
        %463 = vset.pattern.permute.xlu0 0
        %464 = vperm.xlu0 %463, %v418
        %v465 = vpop.permute.xlu0 %464
        %468 = vset.pattern.permute.xlu0 0
        %469 = vperm.xlu0 %468, %v419
        %v470 = vpop.permute.xlu0 %469
        %473 = vset.pattern.permute.xlu0 0
        %474 = vperm.xlu0 %473, %v420
        %v475 = vpop.permute.xlu0 %474
        %478 = vset.pattern.permute.xlu0 0
        %479 = vperm.xlu0 %478, %v421
        %v480 = vpop.permute.xlu0 %479
        %483 = vset.pattern.permute.xlu0 0
        %484 = vperm.xlu0 %483, %v422
        %v485 = vpop.permute.xlu0 %484
        %488 = vset.pattern.permute.xlu0 0
        %489 = vperm.xlu0 %488, %v423
        %v490 = vpop.permute.xlu0 %489
        %493 = vset.pattern.permute.xlu0 0
        %494 = vperm.xlu0 %493, %v424
        %v495 = vpop.permute.xlu0 %494
        %498 = vset.pattern.permute.xlu0 0
        %499 = vperm.xlu0 %498, %v425
        %v500 = vpop.permute.xlu0 %499
        %503 = vset.pattern.permute.xlu0 0
        %504 = vperm.xlu0 %503, %v426
        %v505 = vpop.permute.xlu0 %504
        %507 = vmatprep.subr.mxu0 %v364
        %508 = vmatpush1.msra.mxu0 %v363
        %509 = vmatprep.subr.mxu0 %v366
        %510 = vmatpush1.msra.mxu0 %v365
        %511 = vmatprep.subr.mxu0 %v368
        %512 = vmatpush1.msra.mxu0 %v367
        %513 = vmatprep.subr.mxu0 %v370
        %514 = vmatpush1.msra.mxu0 %v369
        %515 = vmatprep.subr.mxu0 %v372
        %516 = vmatpush1.msra.mxu0 %v371
        %517 = vmatprep.subr.mxu0 %v374
        %518 = vmatpush1.msra.mxu0 %v373
        %519 = vmatprep.subr.mxu0 %v376
        %520 = vmatpush1.msra.mxu0 %v375
        %521 = vmatprep.subr.mxu0 %v378
        %522 = vmatpush1.msra.mxu0 %v377
        %523 = vmatprep.subr.mxu0 %v380
        %524 = vmatpush1.msra.mxu0 %v379
        %525 = vmatprep.subr.mxu0 %v382
        %526 = vmatpush1.msra.mxu0 %v381
        %527 = vmatprep.subr.mxu0 %v384
        %528 = vmatpush1.msra.mxu0 %v383
        %529 = vmatprep.subr.mxu0 %v386
        %530 = vmatpush1.msra.mxu0 %v385
        %531 = vmatprep.subr.mxu0 %v388
        %532 = vmatpush1.msra.mxu0 %v387
        %533 = vmatprep.subr.mxu0 %v390
        %534 = vmatpush1.msra.mxu0 %v389
        %535 = vmatprep.subr.mxu0 %v392
        %536 = vmatpush1.msra.mxu0 %v391
        %537 = vmatprep.subr.mxu0 %v394
        %538 = vmatpush1.msra.mxu0 %v393
        %539 = vmatprep.subr.mxu0 0.0
        %540 = vmatpush1.msra.mxu0 0.0
        %541 = vmatprep.subr.mxu0 0.0
        %542 = vmatpush1.msra.mxu0 0.0
        %543 = vmatprep.subr.mxu0 0.0
        %544 = vmatpush1.msra.mxu0 0.0
        %545 = vmatprep.subr.mxu0 0.0
        %546 = vmatpush1.msra.mxu0 0.0
        %547 = vmatprep.subr.mxu0 0.0
        %548 = vmatpush1.msra.mxu0 0.0
        %549 = vmatprep.subr.mxu0 0.0
        %550 = vmatpush1.msra.mxu0 0.0
        %551 = vmatprep.subr.mxu0 0.0
        %552 = vmatpush1.msra.mxu0 0.0
        %553 = vmatprep.subr.mxu0 0.0
        %554 = vmatpush1.msra.mxu0 0.0
        %555 = vmatprep.subr.mxu0 0.0
        %556 = vmatpush1.msra.mxu0 0.0
        %557 = vmatprep.subr.mxu0 0.0
        %558 = vmatpush1.msra.mxu0 0.0
        %559 = vmatprep.subr.mxu0 0.0
        %560 = vmatpush1.msra.mxu0 0.0
        %561 = vmatprep.subr.mxu0 0.0
        %562 = vmatpush1.msra.mxu0 0.0
        %563 = vmatprep.subr.mxu0 0.0
        %564 = vmatpush1.msra.mxu0 0.0
        %565 = vmatprep.subr.mxu0 0.0
        %566 = vmatpush1.msra.mxu0 0.0
        %567 = vmatprep.subr.mxu0 0.0
        %568 = vmatpush1.msra.mxu0 0.0
        %569 = vmatprep.subr.mxu0 0.0
        %570 = vmatpush1.msra.mxu0 0.0
        %571 = vmatprep.mubr.f32.mxu0 0.0
        %572 = vmatmul.mubr.f32.gmra.mrb[0].mxu0 %v395
        %v573 = vpop.f32.mrb[0].mxu0
        %v574 = vadd.f32 %v430, %v573
        %v575 = vpop.f32.mrb[0].mxu0
        %v576 = vadd.f32 %v430, %v575
        %577 = vmatprep.mubr.f32.mxu0 0.0
        %578 = vmatmul.mubr.f32.gmra.mrb[0].mxu0 %v396
        %v579 = vpop.f32.mrb[0].mxu0
        %v580 = vadd.f32 %v435, %v579
        %v581 = vpop.f32.mrb[0].mxu0
        %v582 = vadd.f32 %v435, %v581
        %583 = vmatprep.mubr.f32.mxu0 0.0
        %584 = vmatmul.mubr.f32.gmra.mrb[0].mxu0 %v397
        %v585 = vpop.f32.mrb[0].mxu0
        %v586 = vadd.f32 %v440, %v585
        %v587 = vpop.f32.mrb[0].mxu0
        %v588 = vadd.f32 %v440, %v587
        %589 = vmatprep.mubr.f32.mxu0 0.0
        %590 = vmatmul.mubr.f32.gmra.mrb[0].mxu0 %v398
        %v591 = vpop.f32.mrb[0].mxu0
        %v592 = vadd.f32 %v445, %v591
        %v593 = vpop.f32.mrb[0].mxu0
        %v594 = vadd.f32 %v445, %v593
        %595 = vmatprep.mubr.f32.mxu0 0.0
        %596 = vmatmul.mubr.f32.gmra.mrb[0].mxu0 %v399
        %v597 = vpop.f32.mrb[0].mxu0
        %v598 = vadd.f32 %v450, %v597
        %v599 = vpop.f32.mrb[0].mxu0
        %v600 = vadd.f32 %v450, %v599
        %601 = vmatprep.mubr.f32.mxu0 0.0
        %602 = vmatmul.mubr.f32.gmra.mrb[0].mxu0 %v400
        %v603 = vpop.f32.mrb[0].mxu0
        %v604 = vadd.f32 %v455, %v603
        %v605 = vpop.f32.mrb[0].mxu0
        %v606 = vadd.f32 %v455, %v605
        %607 = vmatprep.mubr.f32.mxu0 0.0
        %608 = vmatmul.mubr.f32.gmra.mrb[0].mxu0 %v401
        %v609 = vpop.f32.mrb[0].mxu0
        %v610 = vadd.f32 %v460, %v609
        %v611 = vpop.f32.mrb[0].mxu0
        %v612 = vadd.f32 %v460, %v611
        %613 = vmatprep.mubr.f32.mxu0 0.0
        %614 = vmatmul.mubr.f32.gmra.mrb[0].mxu0 %v402
        %v615 = vpop.f32.mrb[0].mxu0
        %v616 = vadd.f32 %v465, %v615
        %v617 = vpop.f32.mrb[0].mxu0
        %v618 = vadd.f32 %v465, %v617
        %619 = vmatprep.mubr.f32.mxu0 0.0
        %620 = vmatmul.mubr.f32.gmra.mrb[0].mxu0 %v403
        %v621 = vpop.f32.mrb[0].mxu0
        %v622 = vadd.f32 %v470, %v621
        %v623 = vpop.f32.mrb[0].mxu0
        %v624 = vadd.f32 %v470, %v623
        %625 = vmatprep.mubr.f32.mxu0 0.0
        %626 = vmatmul.mubr.f32.gmra.mrb[0].mxu0 %v404
        %v627 = vpop.f32.mrb[0].mxu0
        %v628 = vadd.f32 %v475, %v627
        %v629 = vpop.f32.mrb[0].mxu0
        %v630 = vadd.f32 %v475, %v629
        %631 = vmatprep.mubr.f32.mxu0 0.0
        %632 = vmatmul.mubr.f32.gmra.mrb[0].mxu0 %v405
        %v633 = vpop.f32.mrb[0].mxu0
        %v634 = vadd.f32 %v480, %v633
        %v635 = vpop.f32.mrb[0].mxu0
        %v636 = vadd.f32 %v480, %v635
        %637 = vmatprep.mubr.f32.mxu0 0.0
        %638 = vmatmul.mubr.f32.gmra.mrb[0].mxu0 %v406
        %v639 = vpop.f32.mrb[0].mxu0
        %v640 = vadd.f32 %v485, %v639
        %v641 = vpop.f32.mrb[0].mxu0
        %v642 = vadd.f32 %v485, %v641
        %643 = vmatprep.mubr.f32.mxu0 0.0
        %644 = vmatmul.mubr.f32.gmra.mrb[0].mxu0 %v407
        %v645 = vpop.f32.mrb[0].mxu0
        %v646 = vadd.f32 %v490, %v645
        %v647 = vpop.f32.mrb[0].mxu0
        %v648 = vadd.f32 %v490, %v647
        %649 = vmatprep.mubr.f32.mxu0 0.0
        %650 = vmatmul.mubr.f32.gmra.mrb[0].mxu0 %v408
        %v651 = vpop.f32.mrb[0].mxu0
        %v652 = vadd.f32 %v495, %v651
        %v653 = vpop.f32.mrb[0].mxu0
        %v654 = vadd.f32 %v495, %v653
        %655 = vmatprep.mubr.f32.mxu0 0.0
        %656 = vmatmul.mubr.f32.gmra.mrb[0].mxu0 %v409
        %v657 = vpop.f32.mrb[0].mxu0
        %v658 = vadd.f32 %v500, %v657
        %v659 = vpop.f32.mrb[0].mxu0
        %v660 = vadd.f32 %v500, %v659
        %661 = vmatprep.mubr.f32.mxu0 0.0
        %662 = vmatmul.mubr.f32.gmra.mrb[0].mxu0 %v410
        %v663 = vpop.f32.mrb[0].mxu0
        %v664 = vadd.f32 %v505, %v663
        %v665 = vpop.f32.mrb[0].mxu0
        %v666 = vadd.f32 %v505, %v665
        %667 = vdwg.mxu0
        %v668 = vmax.f32 %v574, 0.0
        %v669 = vmax.f32 %v576, 0.0
        %v670 = vmax.f32 %v580, 0.0
        %v671 = vmax.f32 %v582, 0.0
        %v672 = vmax.f32 %v586, 0.0
        %v673 = vmax.f32 %v588, 0.0
        %v674 = vmax.f32 %v592, 0.0
        %v675 = vmax.f32 %v594, 0.0
        %v676 = vmax.f32 %v598, 0.0
        %v677 = vmax.f32 %v600, 0.0
        %v678 = vmax.f32 %v604, 0.0
        %v679 = vmax.f32 %v606, 0.0
        %v680 = vmax.f32 %v610, 0.0
        %v681 = vmax.f32 %v612, 0.0
        %v682 = vmax.f32 %v616, 0.0
        %v683 = vmax.f32 %v618, 0.0
        %v684 = vmax.f32 %v622, 0.0
        %v685 = vmax.f32 %v624, 0.0
        %v686 = vmax.f32 %v628, 0.0
        %v687 = vmax.f32 %v630, 0.0
        %v688 = vmax.f32 %v634, 0.0
        %v689 = vmax.f32 %v636, 0.0
        %v690 = vmax.f32 %v640, 0.0
        %v691 = vmax.f32 %v642, 0.0
        %v692 = vmax.f32 %v646, 0.0
        %v693 = vmax.f32 %v648, 0.0
        %v694 = vmax.f32 %v652, 0.0
        %v695 = vmax.f32 %v654, 0.0
        %v696 = vmax.f32 %v658, 0.0
        %v697 = vmax.f32 %v660, 0.0
        %v698 = vmax.f32 %v664, 0.0
        %v699 = vmax.f32 %v666, 0.0
        %v700 = vld [vmem:[%s311] sm:$0xff]
        %v701 = vld [vmem:[%s311 + $0x8] sm:$0xff]
        %v702 = vld [vmem:[%s311 + $0x10] sm:$0xff]
        %v703 = vld [vmem:[%s311 + $0x18] sm:$0xff]
        %v704 = vld [vmem:[%s311 + $0x20] sm:$0xff]
        %v705 = vld [vmem:[%s311 + $0x28] sm:$0xff]
        %v706 = vld [vmem:[%s311 + $0x30] sm:$0xff]
        %v707 = vld [vmem:[%s311 + $0x38] sm:$0xff]
        %v708 = vld [vmem:[%s311 + $0x40] sm:$0xff]
        %v709 = vld [vmem:[%s311 + $0x48] sm:$0xff]
        %v710 = vld [vmem:[%s311 + $0x50] sm:$0xff]
        %v711 = vld [vmem:[%s311 + $0x58] sm:$0xff]
        %v712 = vld [vmem:[%s311 + $0x60] sm:$0xff]
        %v713 = vld [vmem:[%s311 + $0x68] sm:$0xff]
        %v714 = vld [vmem:[%s311 + $0x70] sm:$0xff]
        %v715 = vld [vmem:[%s311 + $0x78] sm:$0xff]
        %v716 = vld [vmem:[%s311 + $0x80] sm:$0xff]
        %v717 = vld [vmem:[%s311 + $0x88] sm:$0xff]
        %v718 = vld [vmem:[%s311 + $0x90] sm:$0xff]
        %v719 = vld [vmem:[%s311 + $0x98] sm:$0xff]
        %v720 = vld [vmem:[%s311 + $0xa0] sm:$0xff]
        %v721 = vld [vmem:[%s311 + $0xa8] sm:$0xff]
        %v722 = vld [vmem:[%s311 + $0xb0] sm:$0xff]
        %v723 = vld [vmem:[%s311 + $0xb8] sm:$0xff]
        %v724 = vld [vmem:[%s311 + $0xc0] sm:$0xff]
        %v725 = vld [vmem:[%s311 + $0xc8] sm:$0xff]
        %v726 = vld [vmem:[%s311 + $0xd0] sm:$0xff]
        %v727 = vld [vmem:[%s311 + $0xd8] sm:$0xff]
        %v728 = vld [vmem:[%s311 + $0xe0] sm:$0xff]
        %v729 = vld [vmem:[%s311 + $0xe8] sm:$0xff]
        %v730 = vld [vmem:[%s311 + $0xf0] sm:$0xff]
        %v731 = vld [vmem:[%s311 + $0xf8] sm:$0xff]
        %s732 = scalar_lea.vmem [#allocation10], 128
        %v733 = vld [vmem:[%s732] sm:$0xff]
        %v734 = vld [vmem:[%s732 + $0x8] sm:$0xff]
        %v735 = vld [vmem:[%s732 + $0x10] sm:$0xff]
        %v736 = vld [vmem:[%s732 + $0x18] sm:$0xff]
        %v737 = vld [vmem:[%s732 + $0x20] sm:$0xff]
        %v738 = vld [vmem:[%s732 + $0x28] sm:$0xff]
        %v739 = vld [vmem:[%s732 + $0x30] sm:$0xff]
        %v740 = vld [vmem:[%s732 + $0x38] sm:$0xff]
        %v741 = vld [vmem:[%s732 + $0x40] sm:$0xff]
        %v742 = vld [vmem:[%s732 + $0x48] sm:$0xff]
        %v743 = vld [vmem:[%s732 + $0x50] sm:$0xff]
        %v744 = vld [vmem:[%s732 + $0x58] sm:$0xff]
        %v745 = vld [vmem:[%s732 + $0x60] sm:$0xff]
        %v746 = vld [vmem:[%s732 + $0x68] sm:$0xff]
        %v747 = vld [vmem:[%s732 + $0x70] sm:$0xff]
        %v748 = vld [vmem:[%s732 + $0x78] sm:$0xff]
        %749 = vset.pattern.permute.xlu0 1
        %750 = vperm.xlu0 %749, %v411
        %v751 = vpop.permute.xlu0 %750
        %753 = vset.pattern.permute.xlu0 1
        %754 = vperm.xlu0 %753, %v412
        %v755 = vpop.permute.xlu0 %754
        %757 = vset.pattern.permute.xlu0 1
        %758 = vperm.xlu0 %757, %v413
        %v759 = vpop.permute.xlu0 %758
        %761 = vset.pattern.permute.xlu0 1
        %762 = vperm.xlu0 %761, %v414
        %v763 = vpop.permute.xlu0 %762
        %765 = vset.pattern.permute.xlu0 1
        %766 = vperm.xlu0 %765, %v415
        %v767 = vpop.permute.xlu0 %766
        %769 = vset.pattern.permute.xlu0 1
        %770 = vperm.xlu0 %769, %v416
        %v771 = vpop.permute.xlu0 %770
        %773 = vset.pattern.permute.xlu0 1
        %774 = vperm.xlu0 %773, %v417
        %v775 = vpop.permute.xlu0 %774
        %777 = vset.pattern.permute.xlu0 1
        %778 = vperm.xlu0 %777, %v418
        %v779 = vpop.permute.xlu0 %778
        %781 = vset.pattern.permute.xlu0 1
        %782 = vperm.xlu0 %781, %v419
        %v783 = vpop.permute.xlu0 %782
        %785 = vset.pattern.permute.xlu0 1
        %786 = vperm.xlu0 %785, %v420
        %v787 = vpop.permute.xlu0 %786
        %789 = vset.pattern.permute.xlu0 1
        %790 = vperm.xlu0 %789, %v421
        %v791 = vpop.permute.xlu0 %790
        %793 = vset.pattern.permute.xlu0 1
        %794 = vperm.xlu0 %793, %v422
        %v795 = vpop.permute.xlu0 %794
        %797 = vset.pattern.permute.xlu0 1
        %798 = vperm.xlu0 %797, %v423
        %v799 = vpop.permute.xlu0 %798
        %801 = vset.pattern.permute.xlu0 1
        %802 = vperm.xlu0 %801, %v424
        %v803 = vpop.permute.xlu0 %802
        %805 = vset.pattern.permute.xlu0 1
        %806 = vperm.xlu0 %805, %v425
        %v807 = vpop.permute.xlu0 %806
        %809 = vset.pattern.permute.xlu0 1
        %810 = vperm.xlu0 %809, %v426
        %v811 = vpop.permute.xlu0 %810
        %813 = vmatprep.subr.mxu0 %v701
        %814 = vmatpush1.msra.mxu0 %v700
        %815 = vmatprep.subr.mxu0 %v703
        %816 = vmatpush1.msra.mxu0 %v702
        %817 = vmatprep.subr.mxu0 %v705
        %818 = vmatpush1.msra.mxu0 %v704
        %819 = vmatprep.subr.mxu0 %v707
        %820 = vmatpush1.msra.mxu0 %v706
        %821 = vmatprep.subr.mxu0 %v709
        %822 = vmatpush1.msra.mxu0 %v708
        %823 = vmatprep.subr.mxu0 %v711
        %824 = vmatpush1.msra.mxu0 %v710
        %825 = vmatprep.subr.mxu0 %v713
        %826 = vmatpush1.msra.mxu0 %v712
        %827 = vmatprep.subr.mxu0 %v715
        %828 = vmatpush1.msra.mxu0 %v714
        %829 = vmatprep.subr.mxu0 %v717
        %830 = vmatpush1.msra.mxu0 %v716
        %831 = vmatprep.subr.mxu0 %v719
        %832 = vmatpush1.msra.mxu0 %v718
        %833 = vmatprep.subr.mxu0 %v721
        %834 = vmatpush1.msra.mxu0 %v720
        %835 = vmatprep.subr.mxu0 %v723
        %836 = vmatpush1.msra.mxu0 %v722
        %837 = vmatprep.subr.mxu0 %v725
        %838 = vmatpush1.msra.mxu0 %v724
        %839 = vmatprep.subr.mxu0 %v727
        %840 = vmatpush1.msra.mxu0 %v726
        %841 = vmatprep.subr.mxu0 %v729
        %842 = vmatpush1.msra.mxu0 %v728
        %843 = vmatprep.subr.mxu0 %v731
        %844 = vmatpush1.msra.mxu0 %v730
        %845 = vmatprep.subr.mxu0 0.0
        %846 = vmatpush1.msra.mxu0 0.0
        %847 = vmatprep.subr.mxu0 0.0
        %848 = vmatpush1.msra.mxu0 0.0
        %849 = vmatprep.subr.mxu0 0.0
        %850 = vmatpush1.msra.mxu0 0.0
        %851 = vmatprep.subr.mxu0 0.0
        %852 = vmatpush1.msra.mxu0 0.0
        %853 = vmatprep.subr.mxu0 0.0
        %854 = vmatpush1.msra.mxu0 0.0
        %855 = vmatprep.subr.mxu0 0.0
        %856 = vmatpush1.msra.mxu0 0.0
        %857 = vmatprep.subr.mxu0 0.0
        %858 = vmatpush1.msra.mxu0 0.0
        %859 = vmatprep.subr.mxu0 0.0
        %860 = vmatpush1.msra.mxu0 0.0
        %861 = vmatprep.subr.mxu0 0.0
        %862 = vmatpush1.msra.mxu0 0.0
        %863 = vmatprep.subr.mxu0 0.0
        %864 = vmatpush1.msra.mxu0 0.0
        %865 = vmatprep.subr.mxu0 0.0
        %866 = vmatpush1.msra.mxu0 0.0
        %867 = vmatprep.subr.mxu0 0.0
        %868 = vmatpush1.msra.mxu0 0.0
        %869 = vmatprep.subr.mxu0 0.0
        %870 = vmatpush1.msra.mxu0 0.0
        %871 = vmatprep.subr.mxu0 0.0
        %872 = vmatpush1.msra.mxu0 0.0
        %873 = vmatprep.subr.mxu0 0.0
        %874 = vmatpush1.msra.mxu0 0.0
        %875 = vmatprep.subr.mxu0 0.0
        %876 = vmatpush1.msra.mxu0 0.0
        %877 = vmatprep.mubr.f32.mxu0 0.0
        %878 = vmatmul.mubr.f32.gmra.mrb[0].mxu0 %v733
        %v879 = vpop.f32.mrb[0].mxu0
        %v880 = vadd.f32 %v751, %v879
        %v881 = vpop.f32.mrb[0].mxu0
        %v882 = vadd.f32 %v751, %v881
        %883 = vmatprep.mubr.f32.mxu0 0.0
        %884 = vmatmul.mubr.f32.gmra.mrb[0].mxu0 %v734
        %v885 = vpop.f32.mrb[0].mxu0
        %v886 = vadd.f32 %v755, %v885
        %v887 = vpop.f32.mrb[0].mxu0
        %v888 = vadd.f32 %v755, %v887
        %889 = vmatprep.mubr.f32.mxu0 0.0
        %890 = vmatmul.mubr.f32.gmra.mrb[0].mxu0 %v735
        %v891 = vpop.f32.mrb[0].mxu0
        %v892 = vadd.f32 %v759, %v891
        %v893 = vpop.f32.mrb[0].mxu0
        %v894 = vadd.f32 %v759, %v893
        %895 = vmatprep.mubr.f32.mxu0 0.0
        %896 = vmatmul.mubr.f32.gmra.mrb[0].mxu0 %v736
        %v897 = vpop.f32.mrb[0].mxu0
        %v898 = vadd.f32 %v763, %v897
        %v899 = vpop.f32.mrb[0].mxu0
        %v900 = vadd.f32 %v763, %v899
        %901 = vmatprep.mubr.f32.mxu0 0.0
        %902 = vmatmul.mubr.f32.gmra.mrb[0].mxu0 %v737
        %v903 = vpop.f32.mrb[0].mxu0
        %v904 = vadd.f32 %v767, %v903
        %v905 = vpop.f32.mrb[0].mxu0
        %v906 = vadd.f32 %v767, %v905
        %907 = vmatprep.mubr.f32.mxu0 0.0
        %908 = vmatmul.mubr.f32.gmra.mrb[0].mxu0 %v738
        %v909 = vpop.f32.mrb[0].mxu0
        %v910 = vadd.f32 %v771, %v909
        %v911 = vpop.f32.mrb[0].mxu0
        %v912 = vadd.f32 %v771, %v911
        %913 = vmatprep.mubr.f32.mxu0 0.0
        %914 = vmatmul.mubr.f32.gmra.mrb[0].mxu0 %v739
        %v915 = vpop.f32.mrb[0].mxu0
        %v916 = vadd.f32 %v775, %v915
        %v917 = vpop.f32.mrb[0].mxu0
        %v918 = vadd.f32 %v775, %v917
        %919 = vmatprep.mubr.f32.mxu0 0.0
        %920 = vmatmul.mubr.f32.gmra.mrb[0].mxu0 %v740
        %v921 = vpop.f32.mrb[0].mxu0
        %v922 = vadd.f32 %v779, %v921
        %v923 = vpop.f32.mrb[0].mxu0
        %v924 = vadd.f32 %v779, %v923
        %925 = vmatprep.mubr.f32.mxu0 0.0
        %926 = vmatmul.mubr.f32.gmra.mrb[0].mxu0 %v741
        %v927 = vpop.f32.mrb[0].mxu0
        %v928 = vadd.f32 %v783, %v927
        %v929 = vpop.f32.mrb[0].mxu0
        %v930 = vadd.f32 %v783, %v929
        %931 = vmatprep.mubr.f32.mxu0 0.0
        %932 = vmatmul.mubr.f32.gmra.mrb[0].mxu0 %v742
        %v933 = vpop.f32.mrb[0].mxu0
        %v934 = vadd.f32 %v787, %v933
        %v935 = vpop.f32.mrb[0].mxu0
        %v936 = vadd.f32 %v787, %v935
        %937 = vmatprep.mubr.f32.mxu0 0.0
        %938 = vmatmul.mubr.f32.gmra.mrb[0].mxu0 %v743
        %v939 = vpop.f32.mrb[0].mxu0
        %v940 = vadd.f32 %v791, %v939
        %v941 = vpop.f32.mrb[0].mxu0
        %v942 = vadd.f32 %v791, %v941
        %943 = vmatprep.mubr.f32.mxu0 0.0
        %944 = vmatmul.mubr.f32.gmra.mrb[0].mxu0 %v744
        %v945 = vpop.f32.mrb[0].mxu0
        %v946 = vadd.f32 %v795, %v945
        %v947 = vpop.f32.mrb[0].mxu0
        %v948 = vadd.f32 %v795, %v947
        %949 = vmatprep.mubr.f32.mxu0 0.0
        %950 = vmatmul.mubr.f32.gmra.mrb[0].mxu0 %v745
        %v951 = vpop.f32.mrb[0].mxu0
        %v952 = vadd.f32 %v799, %v951
        %v953 = vpop.f32.mrb[0].mxu0
        %v954 = vadd.f32 %v799, %v953
        %955 = vmatprep.mubr.f32.mxu0 0.0
        %956 = vmatmul.mubr.f32.gmra.mrb[0].mxu0 %v746
        %v957 = vpop.f32.mrb[0].mxu0
        %v958 = vadd.f32 %v803, %v957
        %v959 = vpop.f32.mrb[0].mxu0
        %v960 = vadd.f32 %v803, %v959
        %961 = vmatprep.mubr.f32.mxu0 0.0
        %962 = vmatmul.mubr.f32.gmra.mrb[0].mxu0 %v747
        %v963 = vpop.f32.mrb[0].mxu0
        %v964 = vadd.f32 %v807, %v963
        %v965 = vpop.f32.mrb[0].mxu0
        %v966 = vadd.f32 %v807, %v965
        %967 = vmatprep.mubr.f32.mxu0 0.0
        %968 = vmatmul.mubr.f32.gmra.mrb[0].mxu0 %v748
        %v969 = vpop.f32.mrb[0].mxu0
        %v970 = vadd.f32 %v811, %v969
        %v971 = vpop.f32.mrb[0].mxu0
        %v972 = vadd.f32 %v811, %v971
        %973 = vdwg.mxu0
        %v974 = vmax.f32 %v880, 0.0
        %v975 = vmax.f32 %v882, 0.0
        %v976 = vmax.f32 %v886, 0.0
        %v977 = vmax.f32 %v888, 0.0
        %v978 = vmax.f32 %v892, 0.0
        %v979 = vmax.f32 %v894, 0.0
        %v980 = vmax.f32 %v898, 0.0
        %v981 = vmax.f32 %v900, 0.0
        %v982 = vmax.f32 %v904, 0.0
        %v983 = vmax.f32 %v906, 0.0
        %v984 = vmax.f32 %v910, 0.0
        %v985 = vmax.f32 %v912, 0.0
        %v986 = vmax.f32 %v916, 0.0
        %v987 = vmax.f32 %v918, 0.0
        %v988 = vmax.f32 %v922, 0.0
        %v989 = vmax.f32 %v924, 0.0
        %v990 = vmax.f32 %v928, 0.0
        %v991 = vmax.f32 %v930, 0.0
        %v992 = vmax.f32 %v934, 0.0
        %v993 = vmax.f32 %v936, 0.0
        %v994 = vmax.f32 %v940, 0.0
        %v995 = vmax.f32 %v942, 0.0
        %v996 = vmax.f32 %v946, 0.0
        %v997 = vmax.f32 %v948, 0.0
        %v998 = vmax.f32 %v952, 0.0
        %v999 = vmax.f32 %v954, 0.0
        %v1000 = vmax.f32 %v958, 0.0
        %v1001 = vmax.f32 %v960, 0.0
        %v1002 = vmax.f32 %v964, 0.0
        %v1003 = vmax.f32 %v966, 0.0
        %v1004 = vmax.f32 %v970, 0.0
        %v1005 = vmax.f32 %v972, 0.0
        %v1006 = vld [vmem:[%s320] sm:$0xff]
        %v1007 = vld [vmem:[%s320 + $0x8] sm:$0xff]
        %v1008 = vld [vmem:[%s320 + $0x10] sm:$0xff]
        %v1009 = vld [vmem:[%s320 + $0x18] sm:$0xff]
        %v1010 = vld [vmem:[%s320 + $0x20] sm:$0xff]
        %v1011 = vld [vmem:[%s320 + $0x28] sm:$0xff]
        %v1012 = vld [vmem:[%s320 + $0x30] sm:$0xff]
        %v1013 = vld [vmem:[%s320 + $0x38] sm:$0xff]
        %v1014 = vld [vmem:[%s320 + $0x40] sm:$0xff]
        %v1015 = vld [vmem:[%s320 + $0x48] sm:$0xff]
        %v1016 = vld [vmem:[%s320 + $0x50] sm:$0xff]
        %v1017 = vld [vmem:[%s320 + $0x58] sm:$0xff]
        %v1018 = vld [vmem:[%s320 + $0x60] sm:$0xff]
        %v1019 = vld [vmem:[%s320 + $0x68] sm:$0xff]
        %v1020 = vld [vmem:[%s320 + $0x70] sm:$0xff]
        %v1021 = vld [vmem:[%s320 + $0x78] sm:$0xff]
        %v1022 = vld [vmem:[%s320 + $0x80] sm:$0xff]
        %v1023 = vld [vmem:[%s320 + $0x88] sm:$0xff]
        %v1024 = vld [vmem:[%s320 + $0x90] sm:$0xff]
        %v1025 = vld [vmem:[%s320 + $0x98] sm:$0xff]
        %v1026 = vld [vmem:[%s320 + $0xa0] sm:$0xff]
        %v1027 = vld [vmem:[%s320 + $0xa8] sm:$0xff]
        %v1028 = vld [vmem:[%s320 + $0xb0] sm:$0xff]
        %v1029 = vld [vmem:[%s320 + $0xb8] sm:$0xff]
        %v1030 = vld [vmem:[%s320 + $0xc0] sm:$0xff]
        %v1031 = vld [vmem:[%s320 + $0xc8] sm:$0xff]
        %v1032 = vld [vmem:[%s320 + $0xd0] sm:$0xff]
        %v1033 = vld [vmem:[%s320 + $0xd8] sm:$0xff]
        %v1034 = vld [vmem:[%s320 + $0xe0] sm:$0xff]
        %v1035 = vld [vmem:[%s320 + $0xe8] sm:$0xff]
        %v1036 = vld [vmem:[%s320 + $0xf0] sm:$0xff]
        %v1037 = vld [vmem:[%s320 + $0xf8] sm:$0xff]
        %s1038 = scalar_lea.vmem [#allocation10], 256
        %v1039 = vld [vmem:[%s1038] sm:$0xff]
        %v1040 = vld [vmem:[%s1038 + $0x8] sm:$0xff]
        %v1041 = vld [vmem:[%s1038 + $0x10] sm:$0xff]
        %v1042 = vld [vmem:[%s1038 + $0x18] sm:$0xff]
        %v1043 = vld [vmem:[%s1038 + $0x20] sm:$0xff]
        %v1044 = vld [vmem:[%s1038 + $0x28] sm:$0xff]
        %v1045 = vld [vmem:[%s1038 + $0x30] sm:$0xff]
        %v1046 = vld [vmem:[%s1038 + $0x38] sm:$0xff]
        %v1047 = vld [vmem:[%s1038 + $0x40] sm:$0xff]
        %v1048 = vld [vmem:[%s1038 + $0x48] sm:$0xff]
        %v1049 = vld [vmem:[%s1038 + $0x50] sm:$0xff]
        %v1050 = vld [vmem:[%s1038 + $0x58] sm:$0xff]
        %v1051 = vld [vmem:[%s1038 + $0x60] sm:$0xff]
        %v1052 = vld [vmem:[%s1038 + $0x68] sm:$0xff]
        %v1053 = vld [vmem:[%s1038 + $0x70] sm:$0xff]
        %v1054 = vld [vmem:[%s1038 + $0x78] sm:$0xff]
        %1055 = vset.pattern.permute.xlu0 2
        %1056 = vperm.xlu0 %1055, %v411
        %v1057 = vpop.permute.xlu0 %1056
        %1059 = vset.pattern.permute.xlu0 2
        %1060 = vperm.xlu0 %1059, %v412
        %v1061 = vpop.permute.xlu0 %1060
        %1063 = vset.pattern.permute.xlu0 2
        %1064 = vperm.xlu0 %1063, %v413
        %v1065 = vpop.permute.xlu0 %1064
        %1067 = vset.pattern.permute.xlu0 2
        %1068 = vperm.xlu0 %1067, %v414
        %v1069 = vpop.permute.xlu0 %1068
        %1071 = vset.pattern.permute.xlu0 2
        %1072 = vperm.xlu0 %1071, %v415
        %v1073 = vpop.permute.xlu0 %1072
        %1075 = vset.pattern.permute.xlu0 2
        %1076 = vperm.xlu0 %1075, %v416
        %v1077 = vpop.permute.xlu0 %1076
        %1079 = vset.pattern.permute.xlu0 2
        %1080 = vperm.xlu0 %1079, %v417
        %v1081 = vpop.permute.xlu0 %1080
        %1083 = vset.pattern.permute.xlu0 2
        %1084 = vperm.xlu0 %1083, %v418
        %v1085 = vpop.permute.xlu0 %1084
        %1087 = vset.pattern.permute.xlu0 2
        %1088 = vperm.xlu0 %1087, %v419
        %v1089 = vpop.permute.xlu0 %1088
        %1091 = vset.pattern.permute.xlu0 2
        %1092 = vperm.xlu0 %1091, %v420
        %v1093 = vpop.permute.xlu0 %1092
        %1095 = vset.pattern.permute.xlu0 2
        %1096 = vperm.xlu0 %1095, %v421
        %v1097 = vpop.permute.xlu0 %1096
        %1099 = vset.pattern.permute.xlu0 2
        %1100 = vperm.xlu0 %1099, %v422
        %v1101 = vpop.permute.xlu0 %1100
        %1103 = vset.pattern.permute.xlu0 2
        %1104 = vperm.xlu0 %1103, %v423
        %v1105 = vpop.permute.xlu0 %1104
        %1107 = vset.pattern.permute.xlu0 2
        %1108 = vperm.xlu0 %1107, %v424
        %v1109 = vpop.permute.xlu0 %1108
        %1111 = vset.pattern.permute.xlu0 2
        %1112 = vperm.xlu0 %1111, %v425
        %v1113 = vpop.permute.xlu0 %1112
        %1115 = vset.pattern.permute.xlu0 2
        %1116 = vperm.xlu0 %1115, %v426
        %v1117 = vpop.permute.xlu0 %1116
        %1119 = vmatprep.subr.mxu0 %v1007
        %1120 = vmatpush1.msra.mxu0 %v1006
        %1121 = vmatprep.subr.mxu0 %v1009
        %1122 = vmatpush1.msra.mxu0 %v1008
        %1123 = vmatprep.subr.mxu0 %v1011
        %1124 = vmatpush1.msra.mxu0 %v1010
        %1125 = vmatprep.subr.mxu0 %v1013
        %1126 = vmatpush1.msra.mxu0 %v1012
        %1127 = vmatprep.subr.mxu0 %v1015
        %1128 = vmatpush1.msra.mxu0 %v1014
        %1129 = vmatprep.subr.mxu0 %v1017
        %1130 = vmatpush1.msra.mxu0 %v1016
        %1131 = vmatprep.subr.mxu0 %v1019
        %1132 = vmatpush1.msra.mxu0 %v1018
        %1133 = vmatprep.subr.mxu0 %v1021
        %1134 = vmatpush1.msra.mxu0 %v1020
        %1135 = vmatprep.subr.mxu0 %v1023
        %1136 = vmatpush1.msra.mxu0 %v1022
        %1137 = vmatprep.subr.mxu0 %v1025
        %1138 = vmatpush1.msra.mxu0 %v1024
        %1139 = vmatprep.subr.mxu0 %v1027
        %1140 = vmatpush1.msra.mxu0 %v1026
        %1141 = vmatprep.subr.mxu0 %v1029
        %1142 = vmatpush1.msra.mxu0 %v1028
        %1143 = vmatprep.subr.mxu0 %v1031
        %1144 = vmatpush1.msra.mxu0 %v1030
        %1145 = vmatprep.subr.mxu0 %v1033
        %1146 = vmatpush1.msra.mxu0 %v1032
        %1147 = vmatprep.subr.mxu0 %v1035
        %1148 = vmatpush1.msra.mxu0 %v1034
        %1149 = vmatprep.subr.mxu0 %v1037
        %1150 = vmatpush1.msra.mxu0 %v1036
        %1151 = vmatprep.subr.mxu0 0.0
        %1152 = vmatpush1.msra.mxu0 0.0
        %1153 = vmatprep.subr.mxu0 0.0
        %1154 = vmatpush1.msra.mxu0 0.0
        %1155 = vmatprep.subr.mxu0 0.0
        %1156 = vmatpush1.msra.mxu0 0.0
        %1157 = vmatprep.subr.mxu0 0.0
        %1158 = vmatpush1.msra.mxu0 0.0
        %1159 = vmatprep.subr.mxu0 0.0
        %1160 = vmatpush1.msra.mxu0 0.0
        %1161 = vmatprep.subr.mxu0 0.0
        %1162 = vmatpush1.msra.mxu0 0.0
        %1163 = vmatprep.subr.mxu0 0.0
        %1164 = vmatpush1.msra.mxu0 0.0
        %1165 = vmatprep.subr.mxu0 0.0
        %1166 = vmatpush1.msra.mxu0 0.0
        %1167 = vmatprep.subr.mxu0 0.0
        %1168 = vmatpush1.msra.mxu0 0.0
        %1169 = vmatprep.subr.mxu0 0.0
        %1170 = vmatpush1.msra.mxu0 0.0
        %1171 = vmatprep.subr.mxu0 0.0
        %1172 = vmatpush1.msra.mxu0 0.0
        %1173 = vmatprep.subr.mxu0 0.0
        %1174 = vmatpush1.msra.mxu0 0.0
        %1175 = vmatprep.subr.mxu0 0.0
        %1176 = vmatpush1.msra.mxu0 0.0
        %1177 = vmatprep.subr.mxu0 0.0
        %1178 = vmatpush1.msra.mxu0 0.0
        %1179 = vmatprep.subr.mxu0 0.0
        %1180 = vmatpush1.msra.mxu0 0.0
        %1181 = vmatprep.subr.mxu0 0.0
        %1182 = vmatpush1.msra.mxu0 0.0
        %1183 = vmatprep.mubr.f32.mxu0 0.0
        %1184 = vmatmul.mubr.f32.gmra.mrb[0].mxu0 %v1039
        %v1185 = vpop.f32.mrb[0].mxu0
        %v1186 = vadd.f32 %v1057, %v1185
        %v1187 = vpop.f32.mrb[0].mxu0
        %v1188 = vadd.f32 %v1057, %v1187
        %1189 = vmatprep.mubr.f32.mxu0 0.0
        %1190 = vmatmul.mubr.f32.gmra.mrb[0].mxu0 %v1040
        %v1191 = vpop.f32.mrb[0].mxu0
        %v1192 = vadd.f32 %v1061, %v1191
        %v1193 = vpop.f32.mrb[0].mxu0
        %v1194 = vadd.f32 %v1061, %v1193
        %1195 = vmatprep.mubr.f32.mxu0 0.0
        %1196 = vmatmul.mubr.f32.gmra.mrb[0].mxu0 %v1041
        %v1197 = vpop.f32.mrb[0].mxu0
        %v1198 = vadd.f32 %v1065, %v1197
        %v1199 = vpop.f32.mrb[0].mxu0
        %v1200 = vadd.f32 %v1065, %v1199
        %1201 = vmatprep.mubr.f32.mxu0 0.0
        %1202 = vmatmul.mubr.f32.gmra.mrb[0].mxu0 %v1042
        %v1203 = vpop.f32.mrb[0].mxu0
        %v1204 = vadd.f32 %v1069, %v1203
        %v1205 = vpop.f32.mrb[0].mxu0
        %v1206 = vadd.f32 %v1069, %v1205
        %1207 = vmatprep.mubr.f32.mxu0 0.0
        %1208 = vmatmul.mubr.f32.gmra.mrb[0].mxu0 %v1043
        %v1209 = vpop.f32.mrb[0].mxu0
        %v1210 = vadd.f32 %v1073, %v1209
        %v1211 = vpop.f32.mrb[0].mxu0
        %v1212 = vadd.f32 %v1073, %v1211
        %1213 = vmatprep.mubr.f32.mxu0 0.0
        %1214 = vmatmul.mubr.f32.gmra.mrb[0].mxu0 %v1044
        %v1215 = vpop.f32.mrb[0].mxu0
        %v1216 = vadd.f32 %v1077, %v1215
        %v1217 = vpop.f32.mrb[0].mxu0
        %v1218 = vadd.f32 %v1077, %v1217
        %1219 = vmatprep.mubr.f32.mxu0 0.0
        %1220 = vmatmul.mubr.f32.gmra.mrb[0].mxu0 %v1045
        %v1221 = vpop.f32.mrb[0].mxu0
        %v1222 = vadd.f32 %v1081, %v1221
        %v1223 = vpop.f32.mrb[0].mxu0
        %v1224 = vadd.f32 %v1081, %v1223
        %1225 = vmatprep.mubr.f32.mxu0 0.0
        %1226 = vmatmul.mubr.f32.gmra.mrb[0].mxu0 %v1046
        %v1227 = vpop.f32.mrb[0].mxu0
        %v1228 = vadd.f32 %v1085, %v1227
        %v1229 = vpop.f32.mrb[0].mxu0
        %v1230 = vadd.f32 %v1085, %v1229
        %1231 = vmatprep.mubr.f32.mxu0 0.0
        %1232 = vmatmul.mubr.f32.gmra.mrb[0].mxu0 %v1047
        %v1233 = vpop.f32.mrb[0].mxu0
        %v1234 = vadd.f32 %v1089, %v1233
        %v1235 = vpop.f32.mrb[0].mxu0
        %v1236 = vadd.f32 %v1089, %v1235
        %1237 = vmatprep.mubr.f32.mxu0 0.0
        %1238 = vmatmul.mubr.f32.gmra.mrb[0].mxu0 %v1048
        %v1239 = vpop.f32.mrb[0].mxu0
        %v1240 = vadd.f32 %v1093, %v1239
        %v1241 = vpop.f32.mrb[0].mxu0
        %v1242 = vadd.f32 %v1093, %v1241
        %1243 = vmatprep.mubr.f32.mxu0 0.0
        %1244 = vmatmul.mubr.f32.gmra.mrb[0].mxu0 %v1049
        %v1245 = vpop.f32.mrb[0].mxu0
        %v1246 = vadd.f32 %v1097, %v1245
        %v1247 = vpop.f32.mrb[0].mxu0
        %v1248 = vadd.f32 %v1097, %v1247
        %1249 = vmatprep.mubr.f32.mxu0 0.0
        %1250 = vmatmul.mubr.f32.gmra.mrb[0].mxu0 %v1050
        %v1251 = vpop.f32.mrb[0].mxu0
        %v1252 = vadd.f32 %v1101, %v1251
        %v1253 = vpop.f32.mrb[0].mxu0
        %v1254 = vadd.f32 %v1101, %v1253
        %1255 = vmatprep.mubr.f32.mxu0 0.0
        %1256 = vmatmul.mubr.f32.gmra.mrb[0].mxu0 %v1051
        %v1257 = vpop.f32.mrb[0].mxu0
        %v1258 = vadd.f32 %v1105, %v1257
        %v1259 = vpop.f32.mrb[0].mxu0
        %v1260 = vadd.f32 %v1105, %v1259
        %1261 = vmatprep.mubr.f32.mxu0 0.0
        %1262 = vmatmul.mubr.f32.gmra.mrb[0].mxu0 %v1052
        %v1263 = vpop.f32.mrb[0].mxu0
        %v1264 = vadd.f32 %v1109, %v1263
        %v1265 = vpop.f32.mrb[0].mxu0
        %v1266 = vadd.f32 %v1109, %v1265
        %1267 = vmatprep.mubr.f32.mxu0 0.0
        %1268 = vmatmul.mubr.f32.gmra.mrb[0].mxu0 %v1053
        %v1269 = vpop.f32.mrb[0].mxu0
        %v1270 = vadd.f32 %v1113, %v1269
        %v1271 = vpop.f32.mrb[0].mxu0
        %v1272 = vadd.f32 %v1113, %v1271
        %1273 = vmatprep.mubr.f32.mxu0 0.0
        %1274 = vmatmul.mubr.f32.gmra.mrb[0].mxu0 %v1054
        %v1275 = vpop.f32.mrb[0].mxu0
        %v1276 = vadd.f32 %v1117, %v1275
        %v1277 = vpop.f32.mrb[0].mxu0
        %v1278 = vadd.f32 %v1117, %v1277
        %1279 = vdwg.mxu0
        %v1280 = vmax.f32 %v1186, 0.0
        %v1281 = vmax.f32 %v1188, 0.0
        %v1282 = vmax.f32 %v1192, 0.0
        %v1283 = vmax.f32 %v1194, 0.0
        %v1284 = vmax.f32 %v1198, 0.0
        %v1285 = vmax.f32 %v1200, 0.0
        %v1286 = vmax.f32 %v1204, 0.0
        %v1287 = vmax.f32 %v1206, 0.0
        %v1288 = vmax.f32 %v1210, 0.0
        %v1289 = vmax.f32 %v1212, 0.0
        %v1290 = vmax.f32 %v1216, 0.0
        %v1291 = vmax.f32 %v1218, 0.0
        %v1292 = vmax.f32 %v1222, 0.0
        %v1293 = vmax.f32 %v1224, 0.0
        %v1294 = vmax.f32 %v1228, 0.0
        %v1295 = vmax.f32 %v1230, 0.0
        %v1296 = vmax.f32 %v1234, 0.0
        %v1297 = vmax.f32 %v1236, 0.0
        %v1298 = vmax.f32 %v1240, 0.0
        %v1299 = vmax.f32 %v1242, 0.0
        %v1300 = vmax.f32 %v1246, 0.0
        %v1301 = vmax.f32 %v1248, 0.0
        %v1302 = vmax.f32 %v1252, 0.0
        %v1303 = vmax.f32 %v1254, 0.0
        %v1304 = vmax.f32 %v1258, 0.0
        %v1305 = vmax.f32 %v1260, 0.0
        %v1306 = vmax.f32 %v1264, 0.0
        %v1307 = vmax.f32 %v1266, 0.0
        %v1308 = vmax.f32 %v1270, 0.0
        %v1309 = vmax.f32 %v1272, 0.0
        %v1310 = vmax.f32 %v1276, 0.0
        %v1311 = vmax.f32 %v1278, 0.0
        %1312 = vxpose.xlu0.b32.start [1/16] %v974, 128
        %1313 = vxpose.xlu0.b32.cont [2/16] %v976, 128
        %1314 = vxpose.xlu0.b32.cont [3/16] %v978, 128
        %1315 = vxpose.xlu0.b32.cont [4/16] %v980, 128
        %1316 = vxpose.xlu0.b32.cont [5/16] %v982, 128
        %1317 = vxpose.xlu0.b32.cont [6/16] %v984, 128
        %1318 = vxpose.xlu0.b32.cont [7/16] %v986, 128
        %1319 = vxpose.xlu0.b32.cont [8/16] %v988, 128
        %1320 = vxpose.xlu0.b32.cont [9/16] %v990, 128
        %1321 = vxpose.xlu0.b32.cont [10/16] %v992, 128
        %1322 = vxpose.xlu0.b32.cont [11/16] %v994, 128
        %1323 = vxpose.xlu0.b32.cont [12/16] %v996, 128
        %1324 = vxpose.xlu0.b32.cont [13/16] %v998, 128
        %1325 = vxpose.xlu0.b32.cont [14/16] %v1000, 128
        %1326 = vxpose.xlu0.b32.cont [15/16] %v1002, 128
        %1327 = vxpose.xlu0.b32.end [16/16] %v1004, 128
        %v1328 = vpop.trf.xlu0
        %v1329 = vpop.trf.xlu0
        %v1330 = vpop.trf.xlu0
        %v1331 = vpop.trf.xlu0
        %v1332 = vpop.trf.xlu0
        %v1333 = vpop.trf.xlu0
        %v1334 = vpop.trf.xlu0
        %v1335 = vpop.trf.xlu0
        %v1336 = vpop.trf.xlu0
        %v1337 = vpop.trf.xlu0
        %v1338 = vpop.trf.xlu0
        %v1339 = vpop.trf.xlu0
        %v1340 = vpop.trf.xlu0
        %v1341 = vpop.trf.xlu0
        %v1342 = vpop.trf.xlu0
        %v1343 = vpop.trf.xlu0
        %1344 = vxpose.xlu0.b32.start [1/16] %v975, 128
        %1345 = vxpose.xlu0.b32.cont [2/16] %v977, 128
        %1346 = vxpose.xlu0.b32.cont [3/16] %v979, 128
        %1347 = vxpose.xlu0.b32.cont [4/16] %v981, 128
        %1348 = vxpose.xlu0.b32.cont [5/16] %v983, 128
        %1349 = vxpose.xlu0.b32.cont [6/16] %v985, 128
        %1350 = vxpose.xlu0.b32.cont [7/16] %v987, 128
        %1351 = vxpose.xlu0.b32.cont [8/16] %v989, 128
        %1352 = vxpose.xlu0.b32.cont [9/16] %v991, 128
        %1353 = vxpose.xlu0.b32.cont [10/16] %v993, 128
        %1354 = vxpose.xlu0.b32.cont [11/16] %v995, 128
        %1355 = vxpose.xlu0.b32.cont [12/16] %v997, 128
        %1356 = vxpose.xlu0.b32.cont [13/16] %v999, 128
        %1357 = vxpose.xlu0.b32.cont [14/16] %v1001, 128
        %1358 = vxpose.xlu0.b32.cont [15/16] %v1003, 128
        %1359 = vxpose.xlu0.b32.end [16/16] %v1005, 128
        %v1360 = vpop.trf.xlu0
        %v1361 = vpop.trf.xlu0
        %v1362 = vpop.trf.xlu0
        %v1363 = vpop.trf.xlu0
        %v1364 = vpop.trf.xlu0
        %v1365 = vpop.trf.xlu0
        %v1366 = vpop.trf.xlu0
        %v1367 = vpop.trf.xlu0
        %v1368 = vpop.trf.xlu0
        %v1369 = vpop.trf.xlu0
        %v1370 = vpop.trf.xlu0
        %v1371 = vpop.trf.xlu0
        %v1372 = vpop.trf.xlu0
        %v1373 = vpop.trf.xlu0
        %v1374 = vpop.trf.xlu0
        %v1375 = vpop.trf.xlu0
        %vm1376 = vcmask 261120
        %v1378 = vsel %vm1376, %v1328, 0
        %v1381 = vsel %vm1376, %v1329, 0
        %v1384 = vsel %vm1376, %v1330, 0
        %v1387 = vsel %vm1376, %v1331, 0
        %v1390 = vsel %vm1376, %v1332, 0
        %v1393 = vsel %vm1376, %v1333, 0
        %v1396 = vsel %vm1376, %v1334, 0
        %v1399 = vsel %vm1376, %v1335, 0
        %v1402 = vsel %vm1376, %v1336, 0
        %v1405 = vsel %vm1376, %v1337, 0
        %v1408 = vsel %vm1376, %v1338, 0
        %v1411 = vsel %vm1376, %v1339, 0
        %v1414 = vsel %vm1376, %v1340, 0
        %v1417 = vsel %vm1376, %v1341, 0
        %v1420 = vsel %vm1376, %v1342, 0
        %v1423 = vsel %vm1376, %v1343, 0
        %v1426 = vsel %vm1376, %v1360, 0
        %v1429 = vsel %vm1376, %v1361, 0
        %v1432 = vsel %vm1376, %v1362, 0
        %v1435 = vsel %vm1376, %v1363, 0
        %v1438 = vsel %vm1376, %v1364, 0
        %v1441 = vsel %vm1376, %v1365, 0
        %v1444 = vsel %vm1376, %v1366, 0
        %v1447 = vsel %vm1376, %v1367, 0
        %v1450 = vsel %vm1376, %v1368, 0
        %v1453 = vsel %vm1376, %v1369, 0
        %v1456 = vsel %vm1376, %v1370, 0
        %v1459 = vsel %vm1376, %v1371, 0
        %v1462 = vsel %vm1376, %v1372, 0
        %v1465 = vsel %vm1376, %v1373, 0
        %v1468 = vsel %vm1376, %v1374, 0
        %v1471 = vsel %vm1376, %v1375, 0
        %1473 = vmatprep.subr.mxu0 %v669
        %1474 = vmatpush1.msra.mxu0 %v668
        %1475 = vmatprep.subr.mxu0 %v671
        %1476 = vmatpush1.msra.mxu0 %v670
        %1477 = vmatprep.subr.mxu0 %v673
        %1478 = vmatpush1.msra.mxu0 %v672
        %1479 = vmatprep.subr.mxu0 %v675
        %1480 = vmatpush1.msra.mxu0 %v674
        %1481 = vmatprep.subr.mxu0 0.0
        %1482 = vmatpush1.msra.mxu0 0.0
        %1483 = vmatprep.subr.mxu0 0.0
        %1484 = vmatpush1.msra.mxu0 0.0
        %1485 = vmatprep.subr.mxu0 0.0
        %1486 = vmatpush1.msra.mxu0 0.0
        %1487 = vmatprep.subr.mxu0 0.0
        %1488 = vmatpush1.msra.mxu0 0.0
        %1489 = vmatprep.subr.mxu0 0.0
        %1490 = vmatpush1.msra.mxu0 0.0
        %1491 = vmatprep.subr.mxu0 0.0
        %1492 = vmatpush1.msra.mxu0 0.0
        %1493 = vmatprep.subr.mxu0 0.0
        %1494 = vmatpush1.msra.mxu0 0.0
        %1495 = vmatprep.subr.mxu0 0.0
        %1496 = vmatpush1.msra.mxu0 0.0
        %1497 = vmatprep.subr.mxu0 0.0
        %1498 = vmatpush1.msra.mxu0 0.0
        %1499 = vmatprep.subr.mxu0 0.0
        %1500 = vmatpush1.msra.mxu0 0.0
        %1501 = vmatprep.subr.mxu0 0.0
        %1502 = vmatpush1.msra.mxu0 0.0
        %1503 = vmatprep.subr.mxu0 0.0
        %1504 = vmatpush1.msra.mxu0 0.0
        %1505 = vmatprep.subr.mxu0 0.0
        %1506 = vmatpush1.msra.mxu0 0.0
        %1507 = vmatprep.subr.mxu0 0.0
        %1508 = vmatpush1.msra.mxu0 0.0
        %1509 = vmatprep.subr.mxu0 0.0
        %1510 = vmatpush1.msra.mxu0 0.0
        %1511 = vmatprep.subr.mxu0 0.0
        %1512 = vmatpush1.msra.mxu0 0.0
        %1513 = vmatprep.subr.mxu0 0.0
        %1514 = vmatpush1.msra.mxu0 0.0
        %1515 = vmatprep.subr.mxu0 0.0
        %1516 = vmatpush1.msra.mxu0 0.0
        %1517 = vmatprep.subr.mxu0 0.0
        %1518 = vmatpush1.msra.mxu0 0.0
        %1519 = vmatprep.subr.mxu0 0.0
        %1520 = vmatpush1.msra.mxu0 0.0
        %1521 = vmatprep.subr.mxu0 0.0
        %1522 = vmatpush1.msra.mxu0 0.0
        %1523 = vmatprep.subr.mxu0 0.0
        %1524 = vmatpush1.msra.mxu0 0.0
        %1525 = vmatprep.subr.mxu0 0.0
        %1526 = vmatpush1.msra.mxu0 0.0
        %1527 = vmatprep.subr.mxu0 0.0
        %1528 = vmatpush1.msra.mxu0 0.0
        %1529 = vmatprep.subr.mxu0 0.0
        %1530 = vmatpush1.msra.mxu0 0.0
        %1531 = vmatprep.subr.mxu0 0.0
        %1532 = vmatpush1.msra.mxu0 0.0
        %1533 = vmatprep.subr.mxu0 0.0
        %1534 = vmatpush1.msra.mxu0 0.0
        %1535 = vmatprep.subr.mxu0 0.0
        %1536 = vmatpush1.msra.mxu0 0.0
        %1537 = vmatprep.mubr.f32.mxu0 0.0
        %1538 = vmatmul.mubr.f32.gmra.mrb[0].mxu0 %v1378
        %v1539 = vpop.f32.mrb[0].mxu0
        %v1540 = vadd.f32 0.0, %v1539
        %v1541 = vpop.f32.mrb[0].mxu0
        %v1542 = vadd.f32 0.0, %v1541
        %1543 = vmatprep.mubr.f32.mxu0 0.0
        %1544 = vmatmul.mubr.f32.gmra.mrb[0].mxu0 %v1381
        %v1545 = vpop.f32.mrb[0].mxu0
        %v1546 = vadd.f32 0.0, %v1545
        %v1547 = vpop.f32.mrb[0].mxu0
        %v1548 = vadd.f32 0.0, %v1547
        %1549 = vmatprep.mubr.f32.mxu0 0.0
        %1550 = vmatmul.mubr.f32.gmra.mrb[0].mxu0 %v1384
        %v1551 = vpop.f32.mrb[0].mxu0
        %v1552 = vadd.f32 0.0, %v1551
        %v1553 = vpop.f32.mrb[0].mxu0
        %v1554 = vadd.f32 0.0, %v1553
        %1555 = vmatprep.mubr.f32.mxu0 0.0
        %1556 = vmatmul.mubr.f32.gmra.mrb[0].mxu0 %v1387
        %v1557 = vpop.f32.mrb[0].mxu0
        %v1558 = vadd.f32 0.0, %v1557
        %v1559 = vpop.f32.mrb[0].mxu0
        %v1560 = vadd.f32 0.0, %v1559
        %1561 = vmatprep.mubr.f32.mxu0 0.0
        %1562 = vmatmul.mubr.f32.gmra.mrb[0].mxu0 %v1390
        %v1563 = vpop.f32.mrb[0].mxu0
        %v1564 = vadd.f32 0.0, %v1563
        %v1565 = vpop.f32.mrb[0].mxu0
        %v1566 = vadd.f32 0.0, %v1565
        %1567 = vmatprep.mubr.f32.mxu0 0.0
        %1568 = vmatmul.mubr.f32.gmra.mrb[0].mxu0 %v1393
        %v1569 = vpop.f32.mrb[0].mxu0
        %v1570 = vadd.f32 0.0, %v1569
        %v1571 = vpop.f32.mrb[0].mxu0
        %v1572 = vadd.f32 0.0, %v1571
        %1573 = vmatprep.mubr.f32.mxu0 0.0
        %1574 = vmatmul.mubr.f32.gmra.mrb[0].mxu0 %v1396
        %v1575 = vpop.f32.mrb[0].mxu0
        %v1576 = vadd.f32 0.0, %v1575
        %v1577 = vpop.f32.mrb[0].mxu0
        %v1578 = vadd.f32 0.0, %v1577
        %1579 = vmatprep.mubr.f32.mxu0 0.0
        %1580 = vmatmul.mubr.f32.gmra.mrb[0].mxu0 %v1399
        %v1581 = vpop.f32.mrb[0].mxu0
        %v1582 = vadd.f32 0.0, %v1581
        %v1583 = vpop.f32.mrb[0].mxu0
        %v1584 = vadd.f32 0.0, %v1583
        %1585 = vmatprep.mubr.f32.mxu0 0.0
        %1586 = vmatmul.mubr.f32.gmra.mrb[0].mxu0 %v1402
        %v1587 = vpop.f32.mrb[0].mxu0
        %v1588 = vadd.f32 0.0, %v1587
        %v1589 = vpop.f32.mrb[0].mxu0
        %v1590 = vadd.f32 0.0, %v1589
        %1591 = vmatprep.mubr.f32.mxu0 0.0
        %1592 = vmatmul.mubr.f32.gmra.mrb[0].mxu0 %v1405
        %v1593 = vpop.f32.mrb[0].mxu0
        %v1594 = vadd.f32 0.0, %v1593
        %v1595 = vpop.f32.mrb[0].mxu0
        %v1596 = vadd.f32 0.0, %v1595
        %1597 = vmatprep.mubr.f32.mxu0 0.0
        %1598 = vmatmul.mubr.f32.gmra.mrb[0].mxu0 %v1408
        %v1599 = vpop.f32.mrb[0].mxu0
        %v1600 = vadd.f32 0.0, %v1599
        %v1601 = vpop.f32.mrb[0].mxu0
        %v1602 = vadd.f32 0.0, %v1601
        %1603 = vmatprep.mubr.f32.mxu0 0.0
        %1604 = vmatmul.mubr.f32.gmra.mrb[0].mxu0 %v1411
        %v1605 = vpop.f32.mrb[0].mxu0
        %v1606 = vadd.f32 0.0, %v1605
        %v1607 = vpop.f32.mrb[0].mxu0
        %v1608 = vadd.f32 0.0, %v1607
        %1609 = vmatprep.mubr.f32.mxu0 0.0
        %1610 = vmatmul.mubr.f32.gmra.mrb[0].mxu0 %v1414
        %v1611 = vpop.f32.mrb[0].mxu0
        %v1612 = vadd.f32 0.0, %v1611
        %v1613 = vpop.f32.mrb[0].mxu0
        %v1614 = vadd.f32 0.0, %v1613
        %1615 = vmatprep.mubr.f32.mxu0 0.0
        %1616 = vmatmul.mubr.f32.gmra.mrb[0].mxu0 %v1417
        %v1617 = vpop.f32.mrb[0].mxu0
        %v1618 = vadd.f32 0.0, %v1617
        %v1619 = vpop.f32.mrb[0].mxu0
        %v1620 = vadd.f32 0.0, %v1619
        %1621 = vmatprep.mubr.f32.mxu0 0.0
        %1622 = vmatmul.mubr.f32.gmra.mrb[0].mxu0 %v1420
        %v1623 = vpop.f32.mrb[0].mxu0
        %v1624 = vadd.f32 0.0, %v1623
        %v1625 = vpop.f32.mrb[0].mxu0
        %v1626 = vadd.f32 0.0, %v1625
        %1627 = vmatprep.mubr.f32.mxu0 0.0
        %1628 = vmatmul.mubr.f32.gmra.mrb[0].mxu0 %v1423
        %v1629 = vpop.f32.mrb[0].mxu0
        %v1630 = vadd.f32 0.0, %v1629
        %v1631 = vpop.f32.mrb[0].mxu0
        %v1632 = vadd.f32 0.0, %v1631
        %1633 = vmatprep.mubr.f32.mxu0 0.0
        %1634 = vmatmul.mubr.f32.gmra.mrb[0].mxu0 %v1426
        %v1635 = vpop.f32.mrb[0].mxu0
        %v1636 = vadd.f32 0.0, %v1635
        %v1637 = vpop.f32.mrb[0].mxu0
        %v1638 = vadd.f32 0.0, %v1637
        %1639 = vmatprep.mubr.f32.mxu0 0.0
        %1640 = vmatmul.mubr.f32.gmra.mrb[0].mxu0 %v1429
        %v1641 = vpop.f32.mrb[0].mxu0
        %v1642 = vadd.f32 0.0, %v1641
        %v1643 = vpop.f32.mrb[0].mxu0
        %v1644 = vadd.f32 0.0, %v1643
        %1645 = vmatprep.mubr.f32.mxu0 0.0
        %1646 = vmatmul.mubr.f32.gmra.mrb[0].mxu0 %v1432
        %v1647 = vpop.f32.mrb[0].mxu0
        %v1648 = vadd.f32 0.0, %v1647
        %v1649 = vpop.f32.mrb[0].mxu0
        %v1650 = vadd.f32 0.0, %v1649
        %1651 = vmatprep.mubr.f32.mxu0 0.0
        %1652 = vmatmul.mubr.f32.gmra.mrb[0].mxu0 %v1435
        %v1653 = vpop.f32.mrb[0].mxu0
        %v1654 = vadd.f32 0.0, %v1653
        %v1655 = vpop.f32.mrb[0].mxu0
        %v1656 = vadd.f32 0.0, %v1655
        %1657 = vmatprep.mubr.f32.mxu0 0.0
        %1658 = vmatmul.mubr.f32.gmra.mrb[0].mxu0 %v1438
        %v1659 = vpop.f32.mrb[0].mxu0
        %v1660 = vadd.f32 0.0, %v1659
        %v1661 = vpop.f32.mrb[0].mxu0
        %v1662 = vadd.f32 0.0, %v1661
        %1663 = vmatprep.mubr.f32.mxu0 0.0
        %1664 = vmatmul.mubr.f32.gmra.mrb[0].mxu0 %v1441
        %v1665 = vpop.f32.mrb[0].mxu0
        %v1666 = vadd.f32 0.0, %v1665
        %v1667 = vpop.f32.mrb[0].mxu0
        %v1668 = vadd.f32 0.0, %v1667
        %1669 = vmatprep.mubr.f32.mxu0 0.0
        %1670 = vmatmul.mubr.f32.gmra.mrb[0].mxu0 %v1444
        %v1671 = vpop.f32.mrb[0].mxu0
        %v1672 = vadd.f32 0.0, %v1671
        %v1673 = vpop.f32.mrb[0].mxu0
        %v1674 = vadd.f32 0.0, %v1673
        %1675 = vmatprep.mubr.f32.mxu0 0.0
        %1676 = vmatmul.mubr.f32.gmra.mrb[0].mxu0 %v1447
        %v1677 = vpop.f32.mrb[0].mxu0
        %v1678 = vadd.f32 0.0, %v1677
        %v1679 = vpop.f32.mrb[0].mxu0
        %v1680 = vadd.f32 0.0, %v1679
        %1681 = vmatprep.mubr.f32.mxu0 0.0
        %1682 = vmatmul.mubr.f32.gmra.mrb[0].mxu0 %v1450
        %v1683 = vpop.f32.mrb[0].mxu0
        %v1684 = vadd.f32 0.0, %v1683
        %v1685 = vpop.f32.mrb[0].mxu0
        %v1686 = vadd.f32 0.0, %v1685
        %1687 = vmatprep.mubr.f32.mxu0 0.0
        %1688 = vmatmul.mubr.f32.gmra.mrb[0].mxu0 %v1453
        %v1689 = vpop.f32.mrb[0].mxu0
        %v1690 = vadd.f32 0.0, %v1689
        %v1691 = vpop.f32.mrb[0].mxu0
        %v1692 = vadd.f32 0.0, %v1691
        %1693 = vmatprep.mubr.f32.mxu0 0.0
        %1694 = vmatmul.mubr.f32.gmra.mrb[0].mxu0 %v1456
        %v1695 = vpop.f32.mrb[0].mxu0
        %v1696 = vadd.f32 0.0, %v1695
        %v1697 = vpop.f32.mrb[0].mxu0
        %v1698 = vadd.f32 0.0, %v1697
        %1699 = vmatprep.mubr.f32.mxu0 0.0
        %1700 = vmatmul.mubr.f32.gmra.mrb[0].mxu0 %v1459
        %v1701 = vpop.f32.mrb[0].mxu0
        %v1702 = vadd.f32 0.0, %v1701
        %v1703 = vpop.f32.mrb[0].mxu0
        %v1704 = vadd.f32 0.0, %v1703
        %1705 = vmatprep.mubr.f32.mxu0 0.0
        %1706 = vmatmul.mubr.f32.gmra.mrb[0].mxu0 %v1462
        %v1707 = vpop.f32.mrb[0].mxu0
        %v1708 = vadd.f32 0.0, %v1707
        %v1709 = vpop.f32.mrb[0].mxu0
        %v1710 = vadd.f32 0.0, %v1709
        %1711 = vmatprep.mubr.f32.mxu0 0.0
        %1712 = vmatmul.mubr.f32.gmra.mrb[0].mxu0 %v1465
        %v1713 = vpop.f32.mrb[0].mxu0
        %v1714 = vadd.f32 0.0, %v1713
        %v1715 = vpop.f32.mrb[0].mxu0
        %v1716 = vadd.f32 0.0, %v1715
        %1717 = vmatprep.mubr.f32.mxu0 0.0
        %1718 = vmatmul.mubr.f32.gmra.mrb[0].mxu0 %v1468
        %v1719 = vpop.f32.mrb[0].mxu0
        %v1720 = vadd.f32 0.0, %v1719
        %v1721 = vpop.f32.mrb[0].mxu0
        %v1722 = vadd.f32 0.0, %v1721
        %1723 = vmatprep.mubr.f32.mxu0 0.0
        %1724 = vmatmul.mubr.f32.gmra.mrb[0].mxu0 %v1471
        %v1725 = vpop.f32.mrb[0].mxu0
        %v1726 = vadd.f32 0.0, %v1725
        %v1727 = vpop.f32.mrb[0].mxu0
        %v1728 = vadd.f32 0.0, %v1727
        %1729 = vdwg.mxu0
        %v1730 = vmax.f32 %v1540, %v1552
        %v1731 = vmax.f32 %v1546, %v1558
        %v1732 = vmax.f32 %v1730, %v1564
        %v1733 = vmax.f32 %v1731, %v1570
        %v1734 = vmax.f32 %v1732, %v1576
        %v1735 = vmax.f32 %v1733, %v1582
        %v1736 = vmax.f32 %v1734, %v1588
        %v1737 = vmax.f32 %v1735, %v1594
        %v1738 = vmax.f32 %v1736, %v1600
        %v1739 = vmax.f32 %v1737, %v1606
        %v1740 = vmax.f32 %v1738, %v1612
        %v1741 = vmax.f32 %v1739, %v1618
        %v1742 = vmax.f32 %v1740, %v1624
        %v1743 = vmax.f32 %v1741, %v1630
        %v1744 = vmax.f32 %v1742, %v1636
        %v1745 = vmax.f32 %v1743, %v1642
        %v1746 = vmax.f32 %v1744, %v1648
        %v1747 = vmax.f32 %v1745, %v1654
        %v1748 = vmax.f32 %v1746, %v1660
        %v1749 = vmax.f32 %v1747, %v1666
        %v1750 = vmax.f32 %v1748, %v1672
        %v1751 = vmax.f32 %v1749, %v1678
        %v1752 = vmax.f32 %v1750, %v1684
        %v1753 = vmax.f32 %v1751, %v1690
        %v1754 = vmax.f32 %v1752, %v1696
        %v1755 = vmax.f32 %v1753, %v1702
        %v1756 = vmax.f32 %v1754, %v1708
        %v1757 = vmax.f32 %v1755, %v1714
        %v1758 = vmax.f32 %v1756, %v1720
        %v1759 = vmax.f32 %v1757, %v1726
        %v1760 = vmax.f32 %v1758, %v1759
        %v1761 = vrot.slane %v1760, 4
        %v1762 = vmax.f32 %v1760, %v1761
        %v1763 = vrot.slane %v1762, 2
        %v1764 = vmax.f32 %v1762, %v1763
        %v1765 = vrot.slane %v1764, 1
        %v1766 = vmax.f32 %v1764, %v1765
        %v1767 = vmax.f32 %v1542, %v1554
        %v1768 = vmax.f32 %v1548, %v1560
        %v1769 = vmax.f32 %v1767, %v1566
        %v1770 = vmax.f32 %v1768, %v1572
        %v1771 = vmax.f32 %v1769, %v1578
        %v1772 = vmax.f32 %v1770, %v1584
        %v1773 = vmax.f32 %v1771, %v1590
        %v1774 = vmax.f32 %v1772, %v1596
        %v1775 = vmax.f32 %v1773, %v1602
        %v1776 = vmax.f32 %v1774, %v1608
        %v1777 = vmax.f32 %v1775, %v1614
        %v1778 = vmax.f32 %v1776, %v1620
        %v1779 = vmax.f32 %v1777, %v1626
        %v1780 = vmax.f32 %v1778, %v1632
        %v1781 = vmax.f32 %v1779, %v1638
        %v1782 = vmax.f32 %v1780, %v1644
        %v1783 = vmax.f32 %v1781, %v1650
        %v1784 = vmax.f32 %v1782, %v1656
        %v1785 = vmax.f32 %v1783, %v1662
        %v1786 = vmax.f32 %v1784, %v1668
        %v1787 = vmax.f32 %v1785, %v1674
        %v1788 = vmax.f32 %v1786, %v1680
        %v1789 = vmax.f32 %v1787, %v1686
        %v1790 = vmax.f32 %v1788, %v1692
        %v1791 = vmax.f32 %v1789, %v1698
        %v1792 = vmax.f32 %v1790, %v1704
        %v1793 = vmax.f32 %v1791, %v1710
        %v1794 = vmax.f32 %v1792, %v1716
        %v1795 = vmax.f32 %v1793, %v1722
        %v1796 = vmax.f32 %v1794, %v1728
        %v1797 = vmax.f32 %v1795, %v1796
        %v1798 = vrot.slane %v1797, 4
        %v1799 = vmax.f32 %v1797, %v1798
        %v1800 = vrot.slane %v1799, 2
        %v1801 = vmax.f32 %v1799, %v1800
        %v1802 = vrot.slane %v1801, 1
        %v1803 = vmax.f32 %v1801, %v1802
        %v1804 = vsub.f32 %v1540, %v1766
        %v1805 = vsub.f32 %v1542, %v1803
        %v1806 = vsub.f32 %v1546, %v1766
        %v1807 = vsub.f32 %v1548, %v1803
        %v1808 = vsub.f32 %v1552, %v1766
        %v1809 = vsub.f32 %v1554, %v1803
        %v1810 = vsub.f32 %v1558, %v1766
        %v1811 = vsub.f32 %v1560, %v1803
        %v1812 = vsub.f32 %v1564, %v1766
        %v1813 = vsub.f32 %v1566, %v1803
        %v1814 = vsub.f32 %v1570, %v1766
        %v1815 = vsub.f32 %v1572, %v1803
        %v1816 = vsub.f32 %v1576, %v1766
        %v1817 = vsub.f32 %v1578, %v1803
        %v1818 = vsub.f32 %v1582, %v1766
        %v1819 = vsub.f32 %v1584, %v1803
        %v1820 = vsub.f32 %v1588, %v1766
        %v1821 = vsub.f32 %v1590, %v1803
        %v1822 = vsub.f32 %v1594, %v1766
        %v1823 = vsub.f32 %v1596, %v1803
        %v1824 = vsub.f32 %v1600, %v1766
        %v1825 = vsub.f32 %v1602, %v1803
        %v1826 = vsub.f32 %v1606, %v1766
        %v1827 = vsub.f32 %v1608, %v1803
        %v1828 = vsub.f32 %v1612, %v1766
        %v1829 = vsub.f32 %v1614, %v1803
        %v1830 = vsub.f32 %v1618, %v1766
        %v1831 = vsub.f32 %v1620, %v1803
        %v1832 = vsub.f32 %v1624, %v1766
        %v1833 = vsub.f32 %v1626, %v1803
        %v1834 = vsub.f32 %v1630, %v1766
        %v1835 = vsub.f32 %v1632, %v1803
        %v1836 = vsub.f32 %v1636, %v1766
        %v1837 = vsub.f32 %v1638, %v1803
        %v1838 = vsub.f32 %v1642, %v1766
        %v1839 = vsub.f32 %v1644, %v1803
        %v1840 = vsub.f32 %v1648, %v1766
        %v1841 = vsub.f32 %v1650, %v1803
        %v1842 = vsub.f32 %v1654, %v1766
        %v1843 = vsub.f32 %v1656, %v1803
        %v1844 = vsub.f32 %v1660, %v1766
        %v1845 = vsub.f32 %v1662, %v1803
        %v1846 = vsub.f32 %v1666, %v1766
        %v1847 = vsub.f32 %v1668, %v1803
        %v1848 = vsub.f32 %v1672, %v1766
        %v1849 = vsub.f32 %v1674, %v1803
        %v1850 = vsub.f32 %v1678, %v1766
        %v1851 = vsub.f32 %v1680, %v1803
        %v1852 = vsub.f32 %v1684, %v1766
        %v1853 = vsub.f32 %v1686, %v1803
        %v1854 = vsub.f32 %v1690, %v1766
        %v1855 = vsub.f32 %v1692, %v1803
        %v1856 = vsub.f32 %v1696, %v1766
        %v1857 = vsub.f32 %v1698, %v1803
        %v1858 = vsub.f32 %v1702, %v1766
        %v1859 = vsub.f32 %v1704, %v1803
        %v1860 = vsub.f32 %v1708, %v1766
        %v1861 = vsub.f32 %v1710, %v1803
        %v1862 = vsub.f32 %v1714, %v1766
        %v1863 = vsub.f32 %v1716, %v1803
        %v1864 = vsub.f32 %v1720, %v1766
        %v1865 = vsub.f32 %v1722, %v1803
        %v1866 = vsub.f32 %v1726, %v1766
        %v1867 = vsub.f32 %v1728, %v1803
        %v1868 = vmul.f32 %v1804, 1.442695
        %v1869 = vpow.pop %v1868
        %v1870 = vmul.f32 %v1805, 1.442695
        %v1871 = vpow.pop %v1870
        %v1872 = vmul.f32 %v1806, 1.442695
        %v1873 = vpow.pop %v1872
        %v1874 = vmul.f32 %v1807, 1.442695
        %v1875 = vpow.pop %v1874
        %v1876 = vmul.f32 %v1808, 1.442695
        %v1877 = vpow.pop %v1876
        %v1878 = vmul.f32 %v1809, 1.442695
        %v1879 = vpow.pop %v1878
        %v1880 = vmul.f32 %v1810, 1.442695
        %v1881 = vpow.pop %v1880
        %v1882 = vmul.f32 %v1811, 1.442695
        %v1883 = vpow.pop %v1882
        %v1884 = vmul.f32 %v1812, 1.442695
        %v1885 = vpow.pop %v1884
        %v1886 = vmul.f32 %v1813, 1.442695
        %v1887 = vpow.pop %v1886
        %v1888 = vmul.f32 %v1814, 1.442695
        %v1889 = vpow.pop %v1888
        %v1890 = vmul.f32 %v1815, 1.442695
        %v1891 = vpow.pop %v1890
        %v1892 = vmul.f32 %v1816, 1.442695
        %v1893 = vpow.pop %v1892
        %v1894 = vmul.f32 %v1817, 1.442695
        %v1895 = vpow.pop %v1894
        %v1896 = vmul.f32 %v1818, 1.442695
        %v1897 = vpow.pop %v1896
        %v1898 = vmul.f32 %v1819, 1.442695
        %v1899 = vpow.pop %v1898
        %v1900 = vmul.f32 %v1820, 1.442695
        %v1901 = vpow.pop %v1900
        %v1902 = vmul.f32 %v1821, 1.442695
        %v1903 = vpow.pop %v1902
        %v1904 = vmul.f32 %v1822, 1.442695
        %v1905 = vpow.pop %v1904
        %v1906 = vmul.f32 %v1823, 1.442695
        %v1907 = vpow.pop %v1906
        %v1908 = vmul.f32 %v1824, 1.442695
        %v1909 = vpow.pop %v1908
        %v1910 = vmul.f32 %v1825, 1.442695
        %v1911 = vpow.pop %v1910
        %v1912 = vmul.f32 %v1826, 1.442695
        %v1913 = vpow.pop %v1912
        %v1914 = vmul.f32 %v1827, 1.442695
        %v1915 = vpow.pop %v1914
        %v1916 = vmul.f32 %v1828, 1.442695
        %v1917 = vpow.pop %v1916
        %v1918 = vmul.f32 %v1829, 1.442695
        %v1919 = vpow.pop %v1918
        %v1920 = vmul.f32 %v1830, 1.442695
        %v1921 = vpow.pop %v1920
        %v1922 = vmul.f32 %v1831, 1.442695
        %v1923 = vpow.pop %v1922
        %v1924 = vmul.f32 %v1832, 1.442695
        %v1925 = vpow.pop %v1924
        %v1926 = vmul.f32 %v1833, 1.442695
        %v1927 = vpow.pop %v1926
        %v1928 = vmul.f32 %v1834, 1.442695
        %v1929 = vpow.pop %v1928
        %v1930 = vmul.f32 %v1835, 1.442695
        %v1931 = vpow.pop %v1930
        %v1932 = vmul.f32 %v1836, 1.442695
        %v1933 = vpow.pop %v1932
        %v1934 = vmul.f32 %v1837, 1.442695
        %v1935 = vpow.pop %v1934
        %v1936 = vmul.f32 %v1838, 1.442695
        %v1937 = vpow.pop %v1936
        %v1938 = vmul.f32 %v1839, 1.442695
        %v1939 = vpow.pop %v1938
        %v1940 = vmul.f32 %v1840, 1.442695
        %v1941 = vpow.pop %v1940
        %v1942 = vmul.f32 %v1841, 1.442695
        %v1943 = vpow.pop %v1942
        %v1944 = vmul.f32 %v1842, 1.442695
        %v1945 = vpow.pop %v1944
        %v1946 = vmul.f32 %v1843, 1.442695
        %v1947 = vpow.pop %v1946
        %v1948 = vmul.f32 %v1844, 1.442695
        %v1949 = vpow.pop %v1948
        %v1950 = vmul.f32 %v1845, 1.442695
        %v1951 = vpow.pop %v1950
        %v1952 = vmul.f32 %v1846, 1.442695
        %v1953 = vpow.pop %v1952
        %v1954 = vmul.f32 %v1847, 1.442695
        %v1955 = vpow.pop %v1954
        %v1956 = vmul.f32 %v1848, 1.442695
        %v1957 = vpow.pop %v1956
        %v1958 = vmul.f32 %v1849, 1.442695
        %v1959 = vpow.pop %v1958
        %v1960 = vmul.f32 %v1850, 1.442695
        %v1961 = vpow.pop %v1960
        %v1962 = vmul.f32 %v1851, 1.442695
        %v1963 = vpow.pop %v1962
        %v1964 = vmul.f32 %v1852, 1.442695
        %v1965 = vpow.pop %v1964
        %v1966 = vmul.f32 %v1853, 1.442695
        %v1967 = vpow.pop %v1966
        %v1968 = vmul.f32 %v1854, 1.442695
        %v1969 = vpow.pop %v1968
        %v1970 = vmul.f32 %v1855, 1.442695
        %v1971 = vpow.pop %v1970
        %v1972 = vmul.f32 %v1856, 1.442695
        %v1973 = vpow.pop %v1972
        %v1974 = vmul.f32 %v1857, 1.442695
        %v1975 = vpow.pop %v1974
        %v1976 = vmul.f32 %v1858, 1.442695
        %v1977 = vpow.pop %v1976
        %v1978 = vmul.f32 %v1859, 1.442695
        %v1979 = vpow.pop %v1978
        %v1980 = vmul.f32 %v1860, 1.442695
        %v1981 = vpow.pop %v1980
        %v1982 = vmul.f32 %v1861, 1.442695
        %v1983 = vpow.pop %v1982
        %v1984 = vmul.f32 %v1862, 1.442695
        %v1985 = vpow.pop %v1984
        %v1986 = vmul.f32 %v1863, 1.442695
        %v1987 = vpow.pop %v1986
        %v1988 = vmul.f32 %v1864, 1.442695
        %v1989 = vpow.pop %v1988
        %v1990 = vmul.f32 %v1865, 1.442695
        %v1991 = vpow.pop %v1990
        %v1992 = vmul.f32 %v1866, 1.442695
        %v1993 = vpow.pop %v1992
        %v1994 = vmul.f32 %v1867, 1.442695
        %v1995 = vpow.pop %v1994
        %v1996 = vadd.f32 %v1869, %v1873
        %v1997 = vadd.f32 %v1996, %v1877
        %v1998 = vadd.f32 %v1997, %v1881
        %v1999 = vadd.f32 %v1998, %v1885
        %v2000 = vadd.f32 %v1999, %v1889
        %v2001 = vadd.f32 %v2000, %v1893
        %v2002 = vadd.f32 %v2001, %v1897
        %v2003 = vadd.f32 %v2002, %v1901
        %v2004 = vadd.f32 %v2003, %v1905
        %v2005 = vadd.f32 %v2004, %v1909
        %v2006 = vadd.f32 %v2005, %v1913
        %v2007 = vadd.f32 %v2006, %v1917
        %v2008 = vadd.f32 %v2007, %v1921
        %v2009 = vadd.f32 %v2008, %v1925
        %v2010 = vadd.f32 %v2009, %v1929
        %v2011 = vadd.f32 %v2010, %v1933
        %v2012 = vadd.f32 %v2011, %v1937
        %v2013 = vadd.f32 %v2012, %v1941
        %v2014 = vadd.f32 %v2013, %v1945
        %v2015 = vadd.f32 %v2014, %v1949
        %v2016 = vadd.f32 %v2015, %v1953
        %v2017 = vadd.f32 %v2016, %v1957
        %v2018 = vadd.f32 %v2017, %v1961
        %v2019 = vadd.f32 %v2018, %v1965
        %v2020 = vadd.f32 %v2019, %v1969
        %v2021 = vadd.f32 %v2020, %v1973
        %v2022 = vadd.f32 %v2021, %v1977
        %v2023 = vadd.f32 %v2022, %v1981
        %v2024 = vadd.f32 %v2023, %v1985
        %v2025 = vadd.f32 %v2024, %v1989
        %v2026 = vadd.f32 %v2025, %v1993
        %v2027 = vrot.slane %v2026, 4
        %v2028 = vadd.f32 %v2026, %v2027
        %v2029 = vrot.slane %v2028, 2
        %v2030 = vadd.f32 %v2028, %v2029
        %v2031 = vrot.slane %v2030, 1
        %v2032 = vadd.f32 %v2030, %v2031
        %v2033 = vadd.f32 %v1871, %v1875
        %v2034 = vadd.f32 %v2033, %v1879
        %v2035 = vadd.f32 %v2034, %v1883
        %v2036 = vadd.f32 %v2035, %v1887
        %v2037 = vadd.f32 %v2036, %v1891
        %v2038 = vadd.f32 %v2037, %v1895
        %v2039 = vadd.f32 %v2038, %v1899
        %v2040 = vadd.f32 %v2039, %v1903
        %v2041 = vadd.f32 %v2040, %v1907
        %v2042 = vadd.f32 %v2041, %v1911
        %v2043 = vadd.f32 %v2042, %v1915
        %v2044 = vadd.f32 %v2043, %v1919
        %v2045 = vadd.f32 %v2044, %v1923
        %v2046 = vadd.f32 %v2045, %v1927
        %v2047 = vadd.f32 %v2046, %v1931
        %v2048 = vadd.f32 %v2047, %v1935
        %v2049 = vadd.f32 %v2048, %v1939
        %v2050 = vadd.f32 %v2049, %v1943
        %v2051 = vadd.f32 %v2050, %v1947
        %v2052 = vadd.f32 %v2051, %v1951
        %v2053 = vadd.f32 %v2052, %v1955
        %v2054 = vadd.f32 %v2053, %v1959
        %v2055 = vadd.f32 %v2054, %v1963
        %v2056 = vadd.f32 %v2055, %v1967
        %v2057 = vadd.f32 %v2056, %v1971
        %v2058 = vadd.f32 %v2057, %v1975
        %v2059 = vadd.f32 %v2058, %v1979
        %v2060 = vadd.f32 %v2059, %v1983
        %v2061 = vadd.f32 %v2060, %v1987
        %v2062 = vadd.f32 %v2061, %v1991
        %v2063 = vadd.f32 %v2062, %v1995
        %v2064 = vrot.slane %v2063, 4
        %v2065 = vadd.f32 %v2063, %v2064
        %v2066 = vrot.slane %v2065, 2
        %v2067 = vadd.f32 %v2065, %v2066
        %v2068 = vrot.slane %v2067, 1
        %v2069 = vadd.f32 %v2067, %v2068
        %2070 = vmatprep.subr.mxu0 %v1871
        %2071 = vmatpush1.msra.mxu0 %v1869
        %2072 = vmatprep.subr.mxu0 %v1875
        %2073 = vmatpush1.msra.mxu0 %v1873
        %2074 = vmatprep.subr.mxu0 %v1879
        %2075 = vmatpush1.msra.mxu0 %v1877
        %2076 = vmatprep.subr.mxu0 %v1883
        %2077 = vmatpush1.msra.mxu0 %v1881
        %2078 = vmatprep.subr.mxu0 %v1887
        %2079 = vmatpush1.msra.mxu0 %v1885
        %2080 = vmatprep.subr.mxu0 %v1891
        %2081 = vmatpush1.msra.mxu0 %v1889
        %2082 = vmatprep.subr.mxu0 %v1895
        %2083 = vmatpush1.msra.mxu0 %v1893
        %2084 = vmatprep.subr.mxu0 %v1899
        %2085 = vmatpush1.msra.mxu0 %v1897
        %2086 = vmatprep.subr.mxu0 %v1903
        %2087 = vmatpush1.msra.mxu0 %v1901
        %2088 = vmatprep.subr.mxu0 %v1907
        %2089 = vmatpush1.msra.mxu0 %v1905
        %2090 = vmatprep.subr.mxu0 %v1911
        %2091 = vmatpush1.msra.mxu0 %v1909
        %2092 = vmatprep.subr.mxu0 %v1915
        %2093 = vmatpush1.msra.mxu0 %v1913
        %2094 = vmatprep.subr.mxu0 %v1919
        %2095 = vmatpush1.msra.mxu0 %v1917
        %2096 = vmatprep.subr.mxu0 %v1923
        %2097 = vmatpush1.msra.mxu0 %v1921
        %2098 = vmatprep.subr.mxu0 %v1927
        %2099 = vmatpush1.msra.mxu0 %v1925
        %2100 = vmatprep.subr.mxu0 %v1931
        %2101 = vmatpush1.msra.mxu0 %v1929
        %2102 = vmatprep.subr.mxu0 %v1935
        %2103 = vmatpush1.msra.mxu0 %v1933
        %2104 = vmatprep.subr.mxu0 %v1939
        %2105 = vmatpush1.msra.mxu0 %v1937
        %2106 = vmatprep.subr.mxu0 %v1943
        %2107 = vmatpush1.msra.mxu0 %v1941
        %2108 = vmatprep.subr.mxu0 %v1947
        %2109 = vmatpush1.msra.mxu0 %v1945
        %2110 = vmatprep.subr.mxu0 %v1951
        %2111 = vmatpush1.msra.mxu0 %v1949
        %2112 = vmatprep.subr.mxu0 %v1955
        %2113 = vmatpush1.msra.mxu0 %v1953
        %2114 = vmatprep.subr.mxu0 %v1959
        %2115 = vmatpush1.msra.mxu0 %v1957
        %2116 = vmatprep.subr.mxu0 %v1963
        %2117 = vmatpush1.msra.mxu0 %v1961
        %2118 = vmatprep.subr.mxu0 %v1967
        %2119 = vmatpush1.msra.mxu0 %v1965
        %2120 = vmatprep.subr.mxu0 %v1971
        %2121 = vmatpush1.msra.mxu0 %v1969
        %2122 = vmatprep.subr.mxu0 %v1975
        %2123 = vmatpush1.msra.mxu0 %v1973
        %2124 = vmatprep.subr.mxu0 %v1979
        %2125 = vmatpush1.msra.mxu0 %v1977
        %2126 = vmatprep.subr.mxu0 %v1983
        %2127 = vmatpush1.msra.mxu0 %v1981
        %2128 = vmatprep.subr.mxu0 %v1987
        %2129 = vmatpush1.msra.mxu0 %v1985
        %2130 = vmatprep.subr.mxu0 %v1991
        %2131 = vmatpush1.msra.mxu0 %v1989
        %2132 = vmatprep.subr.mxu0 %v1995
        %2133 = vmatpush1.msra.mxu0 %v1993
        %2134 = vmatprep.mubr.f32.mxu0 %v1281
        %2135 = vmatmul.mubr.f32.gmra.mrb[0].mxu0 %v1280
        %v2136 = vpop.f32.mrb[0].mxu0
        %v2137 = vadd.f32 0.0, %v2136
        %v2138 = vpop.f32.mrb[0].mxu0
        %v2139 = vadd.f32 0.0, %v2138
        %2140 = vmatprep.mubr.f32.mxu0 %v1283
        %2141 = vmatmul.mubr.f32.gmra.mrb[0].mxu0 %v1282
        %v2142 = vpop.f32.mrb[0].mxu0
        %v2143 = vadd.f32 0.0, %v2142
        %v2144 = vpop.f32.mrb[0].mxu0
        %v2145 = vadd.f32 0.0, %v2144
        %2146 = vmatprep.mubr.f32.mxu0 %v1285
        %2147 = vmatmul.mubr.f32.gmra.mrb[0].mxu0 %v1284
        %v2148 = vpop.f32.mrb[0].mxu0
        %v2149 = vadd.f32 0.0, %v2148
        %v2150 = vpop.f32.mrb[0].mxu0
        %v2151 = vadd.f32 0.0, %v2150
        %2152 = vmatprep.mubr.f32.mxu0 %v1287
        %2153 = vmatmul.mubr.f32.gmra.mrb[0].mxu0 %v1286
        %v2154 = vpop.f32.mrb[0].mxu0
        %v2155 = vadd.f32 0.0, %v2154
        %v2156 = vpop.f32.mrb[0].mxu0
        %v2157 = vadd.f32 0.0, %v2156
        %2158 = vdwg.mxu0
        %v2159 = vrcp.pop %v2032
        %v2160 = vrcp.pop %v2069
        %v2161 = vmul.f32 %v2137, %v2159
        %v2162 = vmul.f32 %v2139, %v2160
        %v2163 = vmul.f32 %v2143, %v2159
        %v2164 = vmul.f32 %v2145, %v2160
        %v2165 = vmul.f32 %v2149, %v2159
        %v2166 = vmul.f32 %v2151, %v2160
        %v2167 = vmul.f32 %v2155, %v2159
        %v2168 = vmul.f32 %v2157, %v2160
        %2169 = vst [vmem:[#allocation2] sm:$0xff] %v2161
        %2170 = vst [vmem:[#allocation2 + $0x8] sm:$0xff] %v2162
        %2171 = vst [vmem:[#allocation2 + $0x10] sm:$0xff] %v2163
        %2172 = vst [vmem:[#allocation2 + $0x18] sm:$0xff] %v2164
        %2173 = vst [vmem:[#allocation2 + $0x20] sm:$0xff] %v2165
        %2174 = vst [vmem:[#allocation2 + $0x28] sm:$0xff] %v2166
        %2175 = vst [vmem:[#allocation2 + $0x30] sm:$0xff] %v2167
        %2176 = vst [vmem:[#allocation2 + $0x38] sm:$0xff] %v2168
        %v2177 = vld [vmem:[#allocation2] sm:$0xff]
        %v2178 = vld [vmem:[#allocation2 + $0x8] sm:$0xff]
        %v2179 = vld [vmem:[#allocation2 + $0x10] sm:$0xff]
        %v2180 = vld [vmem:[#allocation2 + $0x18] sm:$0xff]
        %v2181 = vld [vmem:[#allocation2 + $0x20] sm:$0xff]
        %v2182 = vld [vmem:[#allocation2 + $0x28] sm:$0xff]
        %v2183 = vld [vmem:[#allocation2 + $0x30] sm:$0xff]
        %v2184 = vld [vmem:[#allocation2 + $0x38] sm:$0xff]
        %v2185 = vmul.f32 %v2177, 0.5
        %v2186 = vmul.f32 %v2178, 0.5
        %v2187 = vmul.f32 %v2179, 0.5
        %v2188 = vmul.f32 %v2180, 0.5
        %v2189 = vmul.f32 %v2181, 0.5
        %v2190 = vmul.f32 %v2182, 0.5
        %v2191 = vmul.f32 %v2183, 0.5
        %v2192 = vmul.f32 %v2184, 0.5
        %v2193 = vtanh.pop %v2185
        %v2194 = vtanh.pop %v2186
        %v2195 = vtanh.pop %v2187
        %v2196 = vtanh.pop %v2188
        %v2197 = vtanh.pop %v2189
        %v2198 = vtanh.pop %v2190
        %v2199 = vtanh.pop %v2191
        %v2200 = vtanh.pop %v2192
        %v2201 = vadd.f32 %v2193, 1.0
        %v2202 = vadd.f32 %v2194, 1.0
        %v2203 = vadd.f32 %v2195, 1.0
        %v2204 = vadd.f32 %v2196, 1.0
        %v2205 = vadd.f32 %v2197, 1.0
        %v2206 = vadd.f32 %v2198, 1.0
        %v2207 = vadd.f32 %v2199, 1.0
        %v2208 = vadd.f32 %v2200, 1.0
        %v2209 = vmul.f32 %v2201, 0.5
        %v2210 = vmul.f32 %v2202, 0.5
        %v2211 = vmul.f32 %v2203, 0.5
        %v2212 = vmul.f32 %v2204, 0.5
        %v2213 = vmul.f32 %v2205, 0.5
        %v2214 = vmul.f32 %v2206, 0.5
        %v2215 = vmul.f32 %v2207, 0.5
        %v2216 = vmul.f32 %v2208, 0.5
        %v2217 = vmul.f32 %v1288, %v2209
        %v2218 = vmul.f32 %v1289, %v2210
        %v2219 = vmul.f32 %v1290, %v2211
        %v2220 = vmul.f32 %v1291, %v2212
        %v2221 = vmul.f32 %v1292, %v2213
        %v2222 = vmul.f32 %v1293, %v2214
        %v2223 = vmul.f32 %v1294, %v2215
        %v2224 = vmul.f32 %v1295, %v2216
        %2225 = vrot.lane.b32.xlu0 %v1328, 96
        %v2226 = vpop.permute.xlu0 %2225
        %2227 = vrot.lane.b32.xlu0 %v1329, 96
        %v2228 = vpop.permute.xlu0 %2227
        %2229 = vrot.lane.b32.xlu0 %v1330, 96
        %v2230 = vpop.permute.xlu0 %2229
        %2231 = vrot.lane.b32.xlu0 %v1331, 96
        %v2232 = vpop.permute.xlu0 %2231
        %2233 = vrot.lane.b32.xlu0 %v1332, 96
        %v2234 = vpop.permute.xlu0 %2233
        %2235 = vrot.lane.b32.xlu0 %v1333, 96
        %v2236 = vpop.permute.xlu0 %2235
        %2237 = vrot.lane.b32.xlu0 %v1334, 96
        %v2238 = vpop.permute.xlu0 %2237
        %2239 = vrot.lane.b32.xlu0 %v1335, 96
        %v2240 = vpop.permute.xlu0 %2239
        %2241 = vrot.lane.b32.xlu0 %v1336, 96
        %v2242 = vpop.permute.xlu0 %2241
        %2243 = vrot.lane.b32.xlu0 %v1337, 96
        %v2244 = vpop.permute.xlu0 %2243
        %2245 = vrot.lane.b32.xlu0 %v1338, 96
        %v2246 = vpop.permute.xlu0 %2245
        %2247 = vrot.lane.b32.xlu0 %v1339, 96
        %v2248 = vpop.permute.xlu0 %2247
        %2249 = vrot.lane.b32.xlu0 %v1340, 96
        %v2250 = vpop.permute.xlu0 %2249
        %2251 = vrot.lane.b32.xlu0 %v1341, 96
        %v2252 = vpop.permute.xlu0 %2251
        %2253 = vrot.lane.b32.xlu0 %v1342, 96
        %v2254 = vpop.permute.xlu0 %2253
        %2255 = vrot.lane.b32.xlu0 %v1343, 96
        %v2256 = vpop.permute.xlu0 %2255
        %2257 = vrot.lane.b32.xlu0 %v1360, 96
        %v2258 = vpop.permute.xlu0 %2257
        %2259 = vrot.lane.b32.xlu0 %v1361, 96
        %v2260 = vpop.permute.xlu0 %2259
        %2261 = vrot.lane.b32.xlu0 %v1362, 96
        %v2262 = vpop.permute.xlu0 %2261
        %2263 = vrot.lane.b32.xlu0 %v1363, 96
        %v2264 = vpop.permute.xlu0 %2263
        %2265 = vrot.lane.b32.xlu0 %v1364, 96
        %v2266 = vpop.permute.xlu0 %2265
        %2267 = vrot.lane.b32.xlu0 %v1365, 96
        %v2268 = vpop.permute.xlu0 %2267
        %2269 = vrot.lane.b32.xlu0 %v1366, 96
        %v2270 = vpop.permute.xlu0 %2269
        %2271 = vrot.lane.b32.xlu0 %v1367, 96
        %v2272 = vpop.permute.xlu0 %2271
        %2273 = vrot.lane.b32.xlu0 %v1368, 96
        %v2274 = vpop.permute.xlu0 %2273
        %2275 = vrot.lane.b32.xlu0 %v1369, 96
        %v2276 = vpop.permute.xlu0 %2275
        %2277 = vrot.lane.b32.xlu0 %v1370, 96
        %v2278 = vpop.permute.xlu0 %2277
        %2279 = vrot.lane.b32.xlu0 %v1371, 96
        %v2280 = vpop.permute.xlu0 %2279
        %2281 = vrot.lane.b32.xlu0 %v1372, 96
        %v2282 = vpop.permute.xlu0 %2281
        %2283 = vrot.lane.b32.xlu0 %v1373, 96
        %v2284 = vpop.permute.xlu0 %2283
        %2285 = vrot.lane.b32.xlu0 %v1374, 96
        %v2286 = vpop.permute.xlu0 %2285
        %2287 = vrot.lane.b32.xlu0 %v1375, 96
        %v2288 = vpop.permute.xlu0 %2287
        %v2289 = vsel %vm1376, %v2226, 0
        %v2291 = vsel %vm1376, %v2228, 0
        %v2293 = vsel %vm1376, %v2230, 0
        %v2295 = vsel %vm1376, %v2232, 0
        %v2297 = vsel %vm1376, %v2234, 0
        %v2299 = vsel %vm1376, %v2236, 0
        %v2301 = vsel %vm1376, %v2238, 0
        %v2303 = vsel %vm1376, %v2240, 0
        %v2305 = vsel %vm1376, %v2242, 0
        %v2307 = vsel %vm1376, %v2244, 0
        %v2309 = vsel %vm1376, %v2246, 0
        %v2311 = vsel %vm1376, %v2248, 0
        %v2313 = vsel %vm1376, %v2250, 0
        %v2315 = vsel %vm1376, %v2252, 0
        %v2317 = vsel %vm1376, %v2254, 0
        %v2319 = vsel %vm1376, %v2256, 0
        %v2321 = vsel %vm1376, %v2258, 0
        %v2323 = vsel %vm1376, %v2260, 0
        %v2325 = vsel %vm1376, %v2262, 0
        %v2327 = vsel %vm1376, %v2264, 0
        %v2329 = vsel %vm1376, %v2266, 0
        %v2331 = vsel %vm1376, %v2268, 0
        %v2333 = vsel %vm1376, %v2270, 0
        %v2335 = vsel %vm1376, %v2272, 0
        %v2337 = vsel %vm1376, %v2274, 0
        %v2339 = vsel %vm1376, %v2276, 0
        %v2341 = vsel %vm1376, %v2278, 0
        %v2343 = vsel %vm1376, %v2280, 0
        %v2345 = vsel %vm1376, %v2282, 0
        %v2347 = vsel %vm1376, %v2284, 0
        %v2349 = vsel %vm1376, %v2286, 0
        %v2351 = vsel %vm1376, %v2288, 0
        %2353 = vmatprep.subr.mxu0 %v677
        %2354 = vmatpush1.msra.mxu0 %v676
        %2355 = vmatprep.subr.mxu0 %v679
        %2356 = vmatpush1.msra.mxu0 %v678
        %2357 = vmatprep.subr.mxu0 %v681
        %2358 = vmatpush1.msra.mxu0 %v680
        %2359 = vmatprep.subr.mxu0 %v683
        %2360 = vmatpush1.msra.mxu0 %v682
        %2361 = vmatprep.subr.mxu0 0.0
        %2362 = vmatpush1.msra.mxu0 0.0
        %2363 = vmatprep.subr.mxu0 0.0
        %2364 = vmatpush1.msra.mxu0 0.0
        %2365 = vmatprep.subr.mxu0 0.0
        %2366 = vmatpush1.msra.mxu0 0.0
        %2367 = vmatprep.subr.mxu0 0.0
        %2368 = vmatpush1.msra.mxu0 0.0
        %2369 = vmatprep.subr.mxu0 0.0
        %2370 = vmatpush1.msra.mxu0 0.0
        %2371 = vmatprep.subr.mxu0 0.0
        %2372 = vmatpush1.msra.mxu0 0.0
        %2373 = vmatprep.subr.mxu0 0.0
        %2374 = vmatpush1.msra.mxu0 0.0
        %2375 = vmatprep.subr.mxu0 0.0
        %2376 = vmatpush1.msra.mxu0 0.0
        %2377 = vmatprep.subr.mxu0 0.0
        %2378 = vmatpush1.msra.mxu0 0.0
        %2379 = vmatprep.subr.mxu0 0.0
        %2380 = vmatpush1.msra.mxu0 0.0
        %2381 = vmatprep.subr.mxu0 0.0
        %2382 = vmatpush1.msra.mxu0 0.0
        %2383 = vmatprep.subr.mxu0 0.0
        %2384 = vmatpush1.msra.mxu0 0.0
        %2385 = vmatprep.subr.mxu0 0.0
        %2386 = vmatpush1.msra.mxu0 0.0
        %2387 = vmatprep.subr.mxu0 0.0
        %2388 = vmatpush1.msra.mxu0 0.0
        %2389 = vmatprep.subr.mxu0 0.0
        %2390 = vmatpush1.msra.mxu0 0.0
        %2391 = vmatprep.subr.mxu0 0.0
        %2392 = vmatpush1.msra.mxu0 0.0
        %2393 = vmatprep.subr.mxu0 0.0
        %2394 = vmatpush1.msra.mxu0 0.0
        %2395 = vmatprep.subr.mxu0 0.0
        %2396 = vmatpush1.msra.mxu0 0.0
        %2397 = vmatprep.subr.mxu0 0.0
        %2398 = vmatpush1.msra.mxu0 0.0
        %2399 = vmatprep.subr.mxu0 0.0
        %2400 = vmatpush1.msra.mxu0 0.0
        %2401 = vmatprep.subr.mxu0 0.0
        %2402 = vmatpush1.msra.mxu0 0.0
        %2403 = vmatprep.subr.mxu0 0.0
        %2404 = vmatpush1.msra.mxu0 0.0
        %2405 = vmatprep.subr.mxu0 0.0
        %2406 = vmatpush1.msra.mxu0 0.0
        %2407 = vmatprep.subr.mxu0 0.0
        %2408 = vmatpush1.msra.mxu0 0.0
        %2409 = vmatprep.subr.mxu0 0.0
        %2410 = vmatpush1.msra.mxu0 0.0
        %2411 = vmatprep.subr.mxu0 0.0
        %2412 = vmatpush1.msra.mxu0 0.0
        %2413 = vmatprep.subr.mxu0 0.0
        %2414 = vmatpush1.msra.mxu0 0.0
        %2415 = vmatprep.subr.mxu0 0.0
        %2416 = vmatpush1.msra.mxu0 0.0
        %2417 = vmatprep.mubr.f32.mxu0 0.0
        %2418 = vmatmul.mubr.f32.gmra.mrb[0].mxu0 %v2289
        %v2419 = vpop.f32.mrb[0].mxu0
        %v2420 = vadd.f32 0.0, %v2419
        %v2421 = vpop.f32.mrb[0].mxu0
        %v2422 = vadd.f32 0.0, %v2421
        %2423 = vmatprep.mubr.f32.mxu0 0.0
        %2424 = vmatmul.mubr.f32.gmra.mrb[0].mxu0 %v2291
        %v2425 = vpop.f32.mrb[0].mxu0
        %v2426 = vadd.f32 0.0, %v2425
        %v2427 = vpop.f32.mrb[0].mxu0
        %v2428 = vadd.f32 0.0, %v2427
        %2429 = vmatprep.mubr.f32.mxu0 0.0
        %2430 = vmatmul.mubr.f32.gmra.mrb[0].mxu0 %v2293
        %v2431 = vpop.f32.mrb[0].mxu0
        %v2432 = vadd.f32 0.0, %v2431
        %v2433 = vpop.f32.mrb[0].mxu0
        %v2434 = vadd.f32 0.0, %v2433
        %2435 = vmatprep.mubr.f32.mxu0 0.0
        %2436 = vmatmul.mubr.f32.gmra.mrb[0].mxu0 %v2295
        %v2437 = vpop.f32.mrb[0].mxu0
        %v2438 = vadd.f32 0.0, %v2437
        %v2439 = vpop.f32.mrb[0].mxu0
        %v2440 = vadd.f32 0.0, %v2439
        %2441 = vmatprep.mubr.f32.mxu0 0.0
        %2442 = vmatmul.mubr.f32.gmra.mrb[0].mxu0 %v2297
        %v2443 = vpop.f32.mrb[0].mxu0
        %v2444 = vadd.f32 0.0, %v2443
        %v2445 = vpop.f32.mrb[0].mxu0
        %v2446 = vadd.f32 0.0, %v2445
        %2447 = vmatprep.mubr.f32.mxu0 0.0
        %2448 = vmatmul.mubr.f32.gmra.mrb[0].mxu0 %v2299
        %v2449 = vpop.f32.mrb[0].mxu0
        %v2450 = vadd.f32 0.0, %v2449
        %v2451 = vpop.f32.mrb[0].mxu0
        %v2452 = vadd.f32 0.0, %v2451
        %2453 = vmatprep.mubr.f32.mxu0 0.0
        %2454 = vmatmul.mubr.f32.gmra.mrb[0].mxu0 %v2301
        %v2455 = vpop.f32.mrb[0].mxu0
        %v2456 = vadd.f32 0.0, %v2455
        %v2457 = vpop.f32.mrb[0].mxu0
        %v2458 = vadd.f32 0.0, %v2457
        %2459 = vmatprep.mubr.f32.mxu0 0.0
        %2460 = vmatmul.mubr.f32.gmra.mrb[0].mxu0 %v2303
        %v2461 = vpop.f32.mrb[0].mxu0
        %v2462 = vadd.f32 0.0, %v2461
        %v2463 = vpop.f32.mrb[0].mxu0
        %v2464 = vadd.f32 0.0, %v2463
        %2465 = vmatprep.mubr.f32.mxu0 0.0
        %2466 = vmatmul.mubr.f32.gmra.mrb[0].mxu0 %v2305
        %v2467 = vpop.f32.mrb[0].mxu0
        %v2468 = vadd.f32 0.0, %v2467
        %v2469 = vpop.f32.mrb[0].mxu0
        %v2470 = vadd.f32 0.0, %v2469
        %2471 = vmatprep.mubr.f32.mxu0 0.0
        %2472 = vmatmul.mubr.f32.gmra.mrb[0].mxu0 %v2307
        %v2473 = vpop.f32.mrb[0].mxu0
        %v2474 = vadd.f32 0.0, %v2473
        %v2475 = vpop.f32.mrb[0].mxu0
        %v2476 = vadd.f32 0.0, %v2475
        %2477 = vmatprep.mubr.f32.mxu0 0.0
        %2478 = vmatmul.mubr.f32.gmra.mrb[0].mxu0 %v2309
        %v2479 = vpop.f32.mrb[0].mxu0
        %v2480 = vadd.f32 0.0, %v2479
        %v2481 = vpop.f32.mrb[0].mxu0
        %v2482 = vadd.f32 0.0, %v2481
        %2483 = vmatprep.mubr.f32.mxu0 0.0
        %2484 = vmatmul.mubr.f32.gmra.mrb[0].mxu0 %v2311
        %v2485 = vpop.f32.mrb[0].mxu0
        %v2486 = vadd.f32 0.0, %v2485
        %v2487 = vpop.f32.mrb[0].mxu0
        %v2488 = vadd.f32 0.0, %v2487
        %2489 = vmatprep.mubr.f32.mxu0 0.0
        %2490 = vmatmul.mubr.f32.gmra.mrb[0].mxu0 %v2313
        %v2491 = vpop.f32.mrb[0].mxu0
        %v2492 = vadd.f32 0.0, %v2491
        %v2493 = vpop.f32.mrb[0].mxu0
        %v2494 = vadd.f32 0.0, %v2493
        %2495 = vmatprep.mubr.f32.mxu0 0.0
        %2496 = vmatmul.mubr.f32.gmra.mrb[0].mxu0 %v2315
        %v2497 = vpop.f32.mrb[0].mxu0
        %v2498 = vadd.f32 0.0, %v2497
        %v2499 = vpop.f32.mrb[0].mxu0
        %v2500 = vadd.f32 0.0, %v2499
        %2501 = vmatprep.mubr.f32.mxu0 0.0
        %2502 = vmatmul.mubr.f32.gmra.mrb[0].mxu0 %v2317
        %v2503 = vpop.f32.mrb[0].mxu0
        %v2504 = vadd.f32 0.0, %v2503
        %v2505 = vpop.f32.mrb[0].mxu0
        %v2506 = vadd.f32 0.0, %v2505
        %2507 = vmatprep.mubr.f32.mxu0 0.0
        %2508 = vmatmul.mubr.f32.gmra.mrb[0].mxu0 %v2319
        %v2509 = vpop.f32.mrb[0].mxu0
        %v2510 = vadd.f32 0.0, %v2509
        %v2511 = vpop.f32.mrb[0].mxu0
        %v2512 = vadd.f32 0.0, %v2511
        %2513 = vmatprep.mubr.f32.mxu0 0.0
        %2514 = vmatmul.mubr.f32.gmra.mrb[0].mxu0 %v2321
        %v2515 = vpop.f32.mrb[0].mxu0
        %v2516 = vadd.f32 0.0, %v2515
        %v2517 = vpop.f32.mrb[0].mxu0
        %v2518 = vadd.f32 0.0, %v2517
        %2519 = vmatprep.mubr.f32.mxu0 0.0
        %2520 = vmatmul.mubr.f32.gmra.mrb[0].mxu0 %v2323
        %v2521 = vpop.f32.mrb[0].mxu0
        %v2522 = vadd.f32 0.0, %v2521
        %v2523 = vpop.f32.mrb[0].mxu0
        %v2524 = vadd.f32 0.0, %v2523
        %2525 = vmatprep.mubr.f32.mxu0 0.0
        %2526 = vmatmul.mubr.f32.gmra.mrb[0].mxu0 %v2325
        %v2527 = vpop.f32.mrb[0].mxu0
        %v2528 = vadd.f32 0.0, %v2527
        %v2529 = vpop.f32.mrb[0].mxu0
        %v2530 = vadd.f32 0.0, %v2529
        %2531 = vmatprep.mubr.f32.mxu0 0.0
        %2532 = vmatmul.mubr.f32.gmra.mrb[0].mxu0 %v2327
        %v2533 = vpop.f32.mrb[0].mxu0
        %v2534 = vadd.f32 0.0, %v2533
        %v2535 = vpop.f32.mrb[0].mxu0
        %v2536 = vadd.f32 0.0, %v2535
        %2537 = vmatprep.mubr.f32.mxu0 0.0
        %2538 = vmatmul.mubr.f32.gmra.mrb[0].mxu0 %v2329
        %v2539 = vpop.f32.mrb[0].mxu0
        %v2540 = vadd.f32 0.0, %v2539
        %v2541 = vpop.f32.mrb[0].mxu0
        %v2542 = vadd.f32 0.0, %v2541
        %2543 = vmatprep.mubr.f32.mxu0 0.0
        %2544 = vmatmul.mubr.f32.gmra.mrb[0].mxu0 %v2331
        %v2545 = vpop.f32.mrb[0].mxu0
        %v2546 = vadd.f32 0.0, %v2545
        %v2547 = vpop.f32.mrb[0].mxu0
        %v2548 = vadd.f32 0.0, %v2547
        %2549 = vmatprep.mubr.f32.mxu0 0.0
        %2550 = vmatmul.mubr.f32.gmra.mrb[0].mxu0 %v2333
        %v2551 = vpop.f32.mrb[0].mxu0
        %v2552 = vadd.f32 0.0, %v2551
        %v2553 = vpop.f32.mrb[0].mxu0
        %v2554 = vadd.f32 0.0, %v2553
        %2555 = vmatprep.mubr.f32.mxu0 0.0
        %2556 = vmatmul.mubr.f32.gmra.mrb[0].mxu0 %v2335
        %v2557 = vpop.f32.mrb[0].mxu0
        %v2558 = vadd.f32 0.0, %v2557
        %v2559 = vpop.f32.mrb[0].mxu0
        %v2560 = vadd.f32 0.0, %v2559
        %2561 = vmatprep.mubr.f32.mxu0 0.0
        %2562 = vmatmul.mubr.f32.gmra.mrb[0].mxu0 %v2337
        %v2563 = vpop.f32.mrb[0].mxu0
        %v2564 = vadd.f32 0.0, %v2563
        %v2565 = vpop.f32.mrb[0].mxu0
        %v2566 = vadd.f32 0.0, %v2565
        %2567 = vmatprep.mubr.f32.mxu0 0.0
        %2568 = vmatmul.mubr.f32.gmra.mrb[0].mxu0 %v2339
        %v2569 = vpop.f32.mrb[0].mxu0
        %v2570 = vadd.f32 0.0, %v2569
        %v2571 = vpop.f32.mrb[0].mxu0
        %v2572 = vadd.f32 0.0, %v2571
        %2573 = vmatprep.mubr.f32.mxu0 0.0
        %2574 = vmatmul.mubr.f32.gmra.mrb[0].mxu0 %v2341
        %v2575 = vpop.f32.mrb[0].mxu0
        %v2576 = vadd.f32 0.0, %v2575
        %v2577 = vpop.f32.mrb[0].mxu0
        %v2578 = vadd.f32 0.0, %v2577
        %2579 = vmatprep.mubr.f32.mxu0 0.0
        %2580 = vmatmul.mubr.f32.gmra.mrb[0].mxu0 %v2343
        %v2581 = vpop.f32.mrb[0].mxu0
        %v2582 = vadd.f32 0.0, %v2581
        %v2583 = vpop.f32.mrb[0].mxu0
        %v2584 = vadd.f32 0.0, %v2583
        %2585 = vmatprep.mubr.f32.mxu0 0.0
        %2586 = vmatmul.mubr.f32.gmra.mrb[0].mxu0 %v2345
        %v2587 = vpop.f32.mrb[0].mxu0
        %v2588 = vadd.f32 0.0, %v2587
        %v2589 = vpop.f32.mrb[0].mxu0
        %v2590 = vadd.f32 0.0, %v2589
        %2591 = vmatprep.mubr.f32.mxu0 0.0
        %2592 = vmatmul.mubr.f32.gmra.mrb[0].mxu0 %v2347
        %v2593 = vpop.f32.mrb[0].mxu0
        %v2594 = vadd.f32 0.0, %v2593
        %v2595 = vpop.f32.mrb[0].mxu0
        %v2596 = vadd.f32 0.0, %v2595
        %2597 = vmatprep.mubr.f32.mxu0 0.0
        %2598 = vmatmul.mubr.f32.gmra.mrb[0].mxu0 %v2349
        %v2599 = vpop.f32.mrb[0].mxu0
        %v2600 = vadd.f32 0.0, %v2599
        %v2601 = vpop.f32.mrb[0].mxu0
        %v2602 = vadd.f32 0.0, %v2601
        %2603 = vmatprep.mubr.f32.mxu0 0.0
        %2604 = vmatmul.mubr.f32.gmra.mrb[0].mxu0 %v2351
        %v2605 = vpop.f32.mrb[0].mxu0
        %v2606 = vadd.f32 0.0, %v2605
        %v2607 = vpop.f32.mrb[0].mxu0
        %v2608 = vadd.f32 0.0, %v2607
        %2609 = vdwg.mxu0
        %v2610 = vmax.f32 %v2420, %v2432
        %v2611 = vmax.f32 %v2426, %v2438
        %v2612 = vmax.f32 %v2610, %v2444
        %v2613 = vmax.f32 %v2611, %v2450
        %v2614 = vmax.f32 %v2612, %v2456
        %v2615 = vmax.f32 %v2613, %v2462
        %v2616 = vmax.f32 %v2614, %v2468
        %v2617 = vmax.f32 %v2615, %v2474
        %v2618 = vmax.f32 %v2616, %v2480
        %v2619 = vmax.f32 %v2617, %v2486
        %v2620 = vmax.f32 %v2618, %v2492
        %v2621 = vmax.f32 %v2619, %v2498
        %v2622 = vmax.f32 %v2620, %v2504
        %v2623 = vmax.f32 %v2621, %v2510
        %v2624 = vmax.f32 %v2622, %v2516
        %v2625 = vmax.f32 %v2623, %v2522
        %v2626 = vmax.f32 %v2624, %v2528
        %v2627 = vmax.f32 %v2625, %v2534
        %v2628 = vmax.f32 %v2626, %v2540
        %v2629 = vmax.f32 %v2627, %v2546
        %v2630 = vmax.f32 %v2628, %v2552
        %v2631 = vmax.f32 %v2629, %v2558
        %v2632 = vmax.f32 %v2630, %v2564
        %v2633 = vmax.f32 %v2631, %v2570
        %v2634 = vmax.f32 %v2632, %v2576
        %v2635 = vmax.f32 %v2633, %v2582
        %v2636 = vmax.f32 %v2634, %v2588
        %v2637 = vmax.f32 %v2635, %v2594
        %v2638 = vmax.f32 %v2636, %v2600
        %v2639 = vmax.f32 %v2637, %v2606
        %v2640 = vmax.f32 %v2638, %v2639
        %v2641 = vrot.slane %v2640, 4
        %v2642 = vmax.f32 %v2640, %v2641
        %v2643 = vrot.slane %v2642, 2
        %v2644 = vmax.f32 %v2642, %v2643
        %v2645 = vrot.slane %v2644, 1
        %v2646 = vmax.f32 %v2644, %v2645
        %v2647 = vmax.f32 %v2422, %v2434
        %v2648 = vmax.f32 %v2428, %v2440
        %v2649 = vmax.f32 %v2647, %v2446
        %v2650 = vmax.f32 %v2648, %v2452
        %v2651 = vmax.f32 %v2649, %v2458
        %v2652 = vmax.f32 %v2650, %v2464
        %v2653 = vmax.f32 %v2651, %v2470
        %v2654 = vmax.f32 %v2652, %v2476
        %v2655 = vmax.f32 %v2653, %v2482
        %v2656 = vmax.f32 %v2654, %v2488
        %v2657 = vmax.f32 %v2655, %v2494
        %v2658 = vmax.f32 %v2656, %v2500
        %v2659 = vmax.f32 %v2657, %v2506
        %v2660 = vmax.f32 %v2658, %v2512
        %v2661 = vmax.f32 %v2659, %v2518
        %v2662 = vmax.f32 %v2660, %v2524
        %v2663 = vmax.f32 %v2661, %v2530
        %v2664 = vmax.f32 %v2662, %v2536
        %v2665 = vmax.f32 %v2663, %v2542
        %v2666 = vmax.f32 %v2664, %v2548
        %v2667 = vmax.f32 %v2665, %v2554
        %v2668 = vmax.f32 %v2666, %v2560
        %v2669 = vmax.f32 %v2667, %v2566
        %v2670 = vmax.f32 %v2668, %v2572
        %v2671 = vmax.f32 %v2669, %v2578
        %v2672 = vmax.f32 %v2670, %v2584
        %v2673 = vmax.f32 %v2671, %v2590
        %v2674 = vmax.f32 %v2672, %v2596
        %v2675 = vmax.f32 %v2673, %v2602
        %v2676 = vmax.f32 %v2674, %v2608
        %v2677 = vmax.f32 %v2675, %v2676
        %v2678 = vrot.slane %v2677, 4
        %v2679 = vmax.f32 %v2677, %v2678
        %v2680 = vrot.slane %v2679, 2
        %v2681 = vmax.f32 %v2679, %v2680
        %v2682 = vrot.slane %v2681, 1
        %v2683 = vmax.f32 %v2681, %v2682
        %v2684 = vsub.f32 %v2420, %v2646
        %v2685 = vsub.f32 %v2422, %v2683
        %v2686 = vsub.f32 %v2426, %v2646
        %v2687 = vsub.f32 %v2428, %v2683
        %v2688 = vsub.f32 %v2432, %v2646
        %v2689 = vsub.f32 %v2434, %v2683
        %v2690 = vsub.f32 %v2438, %v2646
        %v2691 = vsub.f32 %v2440, %v2683
        %v2692 = vsub.f32 %v2444, %v2646
        %v2693 = vsub.f32 %v2446, %v2683
        %v2694 = vsub.f32 %v2450, %v2646
        %v2695 = vsub.f32 %v2452, %v2683
        %v2696 = vsub.f32 %v2456, %v2646
        %v2697 = vsub.f32 %v2458, %v2683
        %v2698 = vsub.f32 %v2462, %v2646
        %v2699 = vsub.f32 %v2464, %v2683
        %v2700 = vsub.f32 %v2468, %v2646
        %v2701 = vsub.f32 %v2470, %v2683
        %v2702 = vsub.f32 %v2474, %v2646
        %v2703 = vsub.f32 %v2476, %v2683
        %v2704 = vsub.f32 %v2480, %v2646
        %v2705 = vsub.f32 %v2482, %v2683
        %v2706 = vsub.f32 %v2486, %v2646
        %v2707 = vsub.f32 %v2488, %v2683
        %v2708 = vsub.f32 %v2492, %v2646
        %v2709 = vsub.f32 %v2494, %v2683
        %v2710 = vsub.f32 %v2498, %v2646
        %v2711 = vsub.f32 %v2500, %v2683
        %v2712 = vsub.f32 %v2504, %v2646
        %v2713 = vsub.f32 %v2506, %v2683
        %v2714 = vsub.f32 %v2510, %v2646
        %v2715 = vsub.f32 %v2512, %v2683
        %v2716 = vsub.f32 %v2516, %v2646
        %v2717 = vsub.f32 %v2518, %v2683
        %v2718 = vsub.f32 %v2522, %v2646
        %v2719 = vsub.f32 %v2524, %v2683
        %v2720 = vsub.f32 %v2528, %v2646
        %v2721 = vsub.f32 %v2530, %v2683
        %v2722 = vsub.f32 %v2534, %v2646
        %v2723 = vsub.f32 %v2536, %v2683
        %v2724 = vsub.f32 %v2540, %v2646
        %v2725 = vsub.f32 %v2542, %v2683
        %v2726 = vsub.f32 %v2546, %v2646
        %v2727 = vsub.f32 %v2548, %v2683
        %v2728 = vsub.f32 %v2552, %v2646
        %v2729 = vsub.f32 %v2554, %v2683
        %v2730 = vsub.f32 %v2558, %v2646
        %v2731 = vsub.f32 %v2560, %v2683
        %v2732 = vsub.f32 %v2564, %v2646
        %v2733 = vsub.f32 %v2566, %v2683
        %v2734 = vsub.f32 %v2570, %v2646
        %v2735 = vsub.f32 %v2572, %v2683
        %v2736 = vsub.f32 %v2576, %v2646
        %v2737 = vsub.f32 %v2578, %v2683
        %v2738 = vsub.f32 %v2582, %v2646
        %v2739 = vsub.f32 %v2584, %v2683
        %v2740 = vsub.f32 %v2588, %v2646
        %v2741 = vsub.f32 %v2590, %v2683
        %v2742 = vsub.f32 %v2594, %v2646
        %v2743 = vsub.f32 %v2596, %v2683
        %v2744 = vsub.f32 %v2600, %v2646
        %v2745 = vsub.f32 %v2602, %v2683
        %v2746 = vsub.f32 %v2606, %v2646
        %v2747 = vsub.f32 %v2608, %v2683
        %v2748 = vmul.f32 %v2684, 1.442695
        %v2749 = vpow.pop %v2748
        %v2750 = vmul.f32 %v2685, 1.442695
        %v2751 = vpow.pop %v2750
        %v2752 = vmul.f32 %v2686, 1.442695
        %v2753 = vpow.pop %v2752
        %v2754 = vmul.f32 %v2687, 1.442695
        %v2755 = vpow.pop %v2754
        %v2756 = vmul.f32 %v2688, 1.442695
        %v2757 = vpow.pop %v2756
        %v2758 = vmul.f32 %v2689, 1.442695
        %v2759 = vpow.pop %v2758
        %v2760 = vmul.f32 %v2690, 1.442695
        %v2761 = vpow.pop %v2760
        %v2762 = vmul.f32 %v2691, 1.442695
        %v2763 = vpow.pop %v2762
        %v2764 = vmul.f32 %v2692, 1.442695
        %v2765 = vpow.pop %v2764
        %v2766 = vmul.f32 %v2693, 1.442695
        %v2767 = vpow.pop %v2766
        %v2768 = vmul.f32 %v2694, 1.442695
        %v2769 = vpow.pop %v2768
        %v2770 = vmul.f32 %v2695, 1.442695
        %v2771 = vpow.pop %v2770
        %v2772 = vmul.f32 %v2696, 1.442695
        %v2773 = vpow.pop %v2772
        %v2774 = vmul.f32 %v2697, 1.442695
        %v2775 = vpow.pop %v2774
        %v2776 = vmul.f32 %v2698, 1.442695
        %v2777 = vpow.pop %v2776
        %v2778 = vmul.f32 %v2699, 1.442695
        %v2779 = vpow.pop %v2778
        %v2780 = vmul.f32 %v2700, 1.442695
        %v2781 = vpow.pop %v2780
        %v2782 = vmul.f32 %v2701, 1.442695
        %v2783 = vpow.pop %v2782
        %v2784 = vmul.f32 %v2702, 1.442695
        %v2785 = vpow.pop %v2784
        %v2786 = vmul.f32 %v2703, 1.442695
        %v2787 = vpow.pop %v2786
        %v2788 = vmul.f32 %v2704, 1.442695
        %v2789 = vpow.pop %v2788
        %v2790 = vmul.f32 %v2705, 1.442695
        %v2791 = vpow.pop %v2790
        %v2792 = vmul.f32 %v2706, 1.442695
        %v2793 = vpow.pop %v2792
        %v2794 = vmul.f32 %v2707, 1.442695
        %v2795 = vpow.pop %v2794
        %v2796 = vmul.f32 %v2708, 1.442695
        %v2797 = vpow.pop %v2796
        %v2798 = vmul.f32 %v2709, 1.442695
        %v2799 = vpow.pop %v2798
        %v2800 = vmul.f32 %v2710, 1.442695
        %v2801 = vpow.pop %v2800
        %v2802 = vmul.f32 %v2711, 1.442695
        %v2803 = vpow.pop %v2802
        %v2804 = vmul.f32 %v2712, 1.442695
        %v2805 = vpow.pop %v2804
        %v2806 = vmul.f32 %v2713, 1.442695
        %v2807 = vpow.pop %v2806
        %v2808 = vmul.f32 %v2714, 1.442695
        %v2809 = vpow.pop %v2808
        %v2810 = vmul.f32 %v2715, 1.442695
        %v2811 = vpow.pop %v2810
        %v2812 = vmul.f32 %v2716, 1.442695
        %v2813 = vpow.pop %v2812
        %v2814 = vmul.f32 %v2717, 1.442695
        %v2815 = vpow.pop %v2814
        %v2816 = vmul.f32 %v2718, 1.442695
        %v2817 = vpow.pop %v2816
        %v2818 = vmul.f32 %v2719, 1.442695
        %v2819 = vpow.pop %v2818
        %v2820 = vmul.f32 %v2720, 1.442695
        %v2821 = vpow.pop %v2820
        %v2822 = vmul.f32 %v2721, 1.442695
        %v2823 = vpow.pop %v2822
        %v2824 = vmul.f32 %v2722, 1.442695
        %v2825 = vpow.pop %v2824
        %v2826 = vmul.f32 %v2723, 1.442695
        %v2827 = vpow.pop %v2826
        %v2828 = vmul.f32 %v2724, 1.442695
        %v2829 = vpow.pop %v2828
        %v2830 = vmul.f32 %v2725, 1.442695
        %v2831 = vpow.pop %v2830
        %v2832 = vmul.f32 %v2726, 1.442695
        %v2833 = vpow.pop %v2832
        %v2834 = vmul.f32 %v2727, 1.442695
        %v2835 = vpow.pop %v2834
        %v2836 = vmul.f32 %v2728, 1.442695
        %v2837 = vpow.pop %v2836
        %v2838 = vmul.f32 %v2729, 1.442695
        %v2839 = vpow.pop %v2838
        %v2840 = vmul.f32 %v2730, 1.442695
        %v2841 = vpow.pop %v2840
        %v2842 = vmul.f32 %v2731, 1.442695
        %v2843 = vpow.pop %v2842
        %v2844 = vmul.f32 %v2732, 1.442695
        %v2845 = vpow.pop %v2844
        %v2846 = vmul.f32 %v2733, 1.442695
        %v2847 = vpow.pop %v2846
        %v2848 = vmul.f32 %v2734, 1.442695
        %v2849 = vpow.pop %v2848
        %v2850 = vmul.f32 %v2735, 1.442695
        %v2851 = vpow.pop %v2850
        %v2852 = vmul.f32 %v2736, 1.442695
        %v2853 = vpow.pop %v2852
        %v2854 = vmul.f32 %v2737, 1.442695
        %v2855 = vpow.pop %v2854
        %v2856 = vmul.f32 %v2738, 1.442695
        %v2857 = vpow.pop %v2856
        %v2858 = vmul.f32 %v2739, 1.442695
        %v2859 = vpow.pop %v2858
        %v2860 = vmul.f32 %v2740, 1.442695
        %v2861 = vpow.pop %v2860
        %v2862 = vmul.f32 %v2741, 1.442695
        %v2863 = vpow.pop %v2862
        %v2864 = vmul.f32 %v2742, 1.442695
        %v2865 = vpow.pop %v2864
        %v2866 = vmul.f32 %v2743, 1.442695
        %v2867 = vpow.pop %v2866
        %v2868 = vmul.f32 %v2744, 1.442695
        %v2869 = vpow.pop %v2868
        %v2870 = vmul.f32 %v2745, 1.442695
        %v2871 = vpow.pop %v2870
        %v2872 = vmul.f32 %v2746, 1.442695
        %v2873 = vpow.pop %v2872
        %v2874 = vmul.f32 %v2747, 1.442695
        %v2875 = vpow.pop %v2874
        %v2876 = vadd.f32 %v2749, %v2753
        %v2877 = vadd.f32 %v2876, %v2757
        %v2878 = vadd.f32 %v2877, %v2761
        %v2879 = vadd.f32 %v2878, %v2765
        %v2880 = vadd.f32 %v2879, %v2769
        %v2881 = vadd.f32 %v2880, %v2773
        %v2882 = vadd.f32 %v2881, %v2777
        %v2883 = vadd.f32 %v2882, %v2781
        %v2884 = vadd.f32 %v2883, %v2785
        %v2885 = vadd.f32 %v2884, %v2789
        %v2886 = vadd.f32 %v2885, %v2793
        %v2887 = vadd.f32 %v2886, %v2797
        %v2888 = vadd.f32 %v2887, %v2801
        %v2889 = vadd.f32 %v2888, %v2805
        %v2890 = vadd.f32 %v2889, %v2809
        %v2891 = vadd.f32 %v2890, %v2813
        %v2892 = vadd.f32 %v2891, %v2817
        %v2893 = vadd.f32 %v2892, %v2821
        %v2894 = vadd.f32 %v2893, %v2825
        %v2895 = vadd.f32 %v2894, %v2829
        %v2896 = vadd.f32 %v2895, %v2833
        %v2897 = vadd.f32 %v2896, %v2837
        %v2898 = vadd.f32 %v2897, %v2841
        %v2899 = vadd.f32 %v2898, %v2845
        %v2900 = vadd.f32 %v2899, %v2849
        %v2901 = vadd.f32 %v2900, %v2853
        %v2902 = vadd.f32 %v2901, %v2857
        %v2903 = vadd.f32 %v2902, %v2861
        %v2904 = vadd.f32 %v2903, %v2865
        %v2905 = vadd.f32 %v2904, %v2869
        %v2906 = vadd.f32 %v2905, %v2873
        %v2907 = vrot.slane %v2906, 4
        %v2908 = vadd.f32 %v2906, %v2907
        %v2909 = vrot.slane %v2908, 2
        %v2910 = vadd.f32 %v2908, %v2909
        %v2911 = vrot.slane %v2910, 1
        %v2912 = vadd.f32 %v2910, %v2911
        %v2913 = vadd.f32 %v2751, %v2755
        %v2914 = vadd.f32 %v2913, %v2759
        %v2915 = vadd.f32 %v2914, %v2763
        %v2916 = vadd.f32 %v2915, %v2767
        %v2917 = vadd.f32 %v2916, %v2771
        %v2918 = vadd.f32 %v2917, %v2775
        %v2919 = vadd.f32 %v2918, %v2779
        %v2920 = vadd.f32 %v2919, %v2783
        %v2921 = vadd.f32 %v2920, %v2787
        %v2922 = vadd.f32 %v2921, %v2791
        %v2923 = vadd.f32 %v2922, %v2795
        %v2924 = vadd.f32 %v2923, %v2799
        %v2925 = vadd.f32 %v2924, %v2803
        %v2926 = vadd.f32 %v2925, %v2807
        %v2927 = vadd.f32 %v2926, %v2811
        %v2928 = vadd.f32 %v2927, %v2815
        %v2929 = vadd.f32 %v2928, %v2819
        %v2930 = vadd.f32 %v2929, %v2823
        %v2931 = vadd.f32 %v2930, %v2827
        %v2932 = vadd.f32 %v2931, %v2831
        %v2933 = vadd.f32 %v2932, %v2835
        %v2934 = vadd.f32 %v2933, %v2839
        %v2935 = vadd.f32 %v2934, %v2843
        %v2936 = vadd.f32 %v2935, %v2847
        %v2937 = vadd.f32 %v2936, %v2851
        %v2938 = vadd.f32 %v2937, %v2855
        %v2939 = vadd.f32 %v2938, %v2859
        %v2940 = vadd.f32 %v2939, %v2863
        %v2941 = vadd.f32 %v2940, %v2867
        %v2942 = vadd.f32 %v2941, %v2871
        %v2943 = vadd.f32 %v2942, %v2875
        %v2944 = vrot.slane %v2943, 4
        %v2945 = vadd.f32 %v2943, %v2944
        %v2946 = vrot.slane %v2945, 2
        %v2947 = vadd.f32 %v2945, %v2946
        %v2948 = vrot.slane %v2947, 1
        %v2949 = vadd.f32 %v2947, %v2948
        %2950 = vmatprep.subr.mxu0 %v2751
        %2951 = vmatpush1.msra.mxu0 %v2749
        %2952 = vmatprep.subr.mxu0 %v2755
        %2953 = vmatpush1.msra.mxu0 %v2753
        %2954 = vmatprep.subr.mxu0 %v2759
        %2955 = vmatpush1.msra.mxu0 %v2757
        %2956 = vmatprep.subr.mxu0 %v2763
        %2957 = vmatpush1.msra.mxu0 %v2761
        %2958 = vmatprep.subr.mxu0 %v2767
        %2959 = vmatpush1.msra.mxu0 %v2765
        %2960 = vmatprep.subr.mxu0 %v2771
        %2961 = vmatpush1.msra.mxu0 %v2769
        %2962 = vmatprep.subr.mxu0 %v2775
        %2963 = vmatpush1.msra.mxu0 %v2773
        %2964 = vmatprep.subr.mxu0 %v2779
        %2965 = vmatpush1.msra.mxu0 %v2777
        %2966 = vmatprep.subr.mxu0 %v2783
        %2967 = vmatpush1.msra.mxu0 %v2781
        %2968 = vmatprep.subr.mxu0 %v2787
        %2969 = vmatpush1.msra.mxu0 %v2785
        %2970 = vmatprep.subr.mxu0 %v2791
        %2971 = vmatpush1.msra.mxu0 %v2789
        %2972 = vmatprep.subr.mxu0 %v2795
        %2973 = vmatpush1.msra.mxu0 %v2793
        %2974 = vmatprep.subr.mxu0 %v2799
        %2975 = vmatpush1.msra.mxu0 %v2797
        %2976 = vmatprep.subr.mxu0 %v2803
        %2977 = vmatpush1.msra.mxu0 %v2801
        %2978 = vmatprep.subr.mxu0 %v2807
        %2979 = vmatpush1.msra.mxu0 %v2805
        %2980 = vmatprep.subr.mxu0 %v2811
        %2981 = vmatpush1.msra.mxu0 %v2809
        %2982 = vmatprep.subr.mxu0 %v2815
        %2983 = vmatpush1.msra.mxu0 %v2813
        %2984 = vmatprep.subr.mxu0 %v2819
        %2985 = vmatpush1.msra.mxu0 %v2817
        %2986 = vmatprep.subr.mxu0 %v2823
        %2987 = vmatpush1.msra.mxu0 %v2821
        %2988 = vmatprep.subr.mxu0 %v2827
        %2989 = vmatpush1.msra.mxu0 %v2825
        %2990 = vmatprep.subr.mxu0 %v2831
        %2991 = vmatpush1.msra.mxu0 %v2829
        %2992 = vmatprep.subr.mxu0 %v2835
        %2993 = vmatpush1.msra.mxu0 %v2833
        %2994 = vmatprep.subr.mxu0 %v2839
        %2995 = vmatpush1.msra.mxu0 %v2837
        %2996 = vmatprep.subr.mxu0 %v2843
        %2997 = vmatpush1.msra.mxu0 %v2841
        %2998 = vmatprep.subr.mxu0 %v2847
        %2999 = vmatpush1.msra.mxu0 %v2845
        %3000 = vmatprep.subr.mxu0 %v2851
        %3001 = vmatpush1.msra.mxu0 %v2849
        %3002 = vmatprep.subr.mxu0 %v2855
        %3003 = vmatpush1.msra.mxu0 %v2853
        %3004 = vmatprep.subr.mxu0 %v2859
        %3005 = vmatpush1.msra.mxu0 %v2857
        %3006 = vmatprep.subr.mxu0 %v2863
        %3007 = vmatpush1.msra.mxu0 %v2861
        %3008 = vmatprep.subr.mxu0 %v2867
        %3009 = vmatpush1.msra.mxu0 %v2865
        %3010 = vmatprep.subr.mxu0 %v2871
        %3011 = vmatpush1.msra.mxu0 %v2869
        %3012 = vmatprep.subr.mxu0 %v2875
        %3013 = vmatpush1.msra.mxu0 %v2873
        %3014 = vmatprep.mubr.f32.mxu0 %v2218
        %3015 = vmatmul.mubr.f32.gmra.mrb[0].mxu0 %v2217
        %v3016 = vpop.f32.mrb[0].mxu0
        %v3017 = vadd.f32 0.0, %v3016
        %v3018 = vpop.f32.mrb[0].mxu0
        %v3019 = vadd.f32 0.0, %v3018
        %3020 = vmatprep.mubr.f32.mxu0 %v2220
        %3021 = vmatmul.mubr.f32.gmra.mrb[0].mxu0 %v2219
        %v3022 = vpop.f32.mrb[0].mxu0
        %v3023 = vadd.f32 0.0, %v3022
        %v3024 = vpop.f32.mrb[0].mxu0
        %v3025 = vadd.f32 0.0, %v3024
        %3026 = vmatprep.mubr.f32.mxu0 %v2222
        %3027 = vmatmul.mubr.f32.gmra.mrb[0].mxu0 %v2221
        %v3028 = vpop.f32.mrb[0].mxu0
        %v3029 = vadd.f32 0.0, %v3028
        %v3030 = vpop.f32.mrb[0].mxu0
        %v3031 = vadd.f32 0.0, %v3030
        %3032 = vmatprep.mubr.f32.mxu0 %v2224
        %3033 = vmatmul.mubr.f32.gmra.mrb[0].mxu0 %v2223
        %v3034 = vpop.f32.mrb[0].mxu0
        %v3035 = vadd.f32 0.0, %v3034
        %v3036 = vpop.f32.mrb[0].mxu0
        %v3037 = vadd.f32 0.0, %v3036
        %3038 = vdwg.mxu0
        %v3039 = vrcp.pop %v2912
        %v3040 = vrcp.pop %v2949
        %v3041 = vmul.f32 %v3017, %v3039
        %v3042 = vmul.f32 %v3019, %v3040
        %v3043 = vmul.f32 %v3023, %v3039
        %v3044 = vmul.f32 %v3025, %v3040
        %v3045 = vmul.f32 %v3029, %v3039
        %v3046 = vmul.f32 %v3031, %v3040
        %v3047 = vmul.f32 %v3035, %v3039
        %v3048 = vmul.f32 %v3037, %v3040
        %3049 = vst [vmem:[#allocation2 + $0x40] sm:$0xff] %v3041
        %3050 = vst [vmem:[#allocation2 + $0x48] sm:$0xff] %v3042
        %3051 = vst [vmem:[#allocation2 + $0x50] sm:$0xff] %v3043
        %3052 = vst [vmem:[#allocation2 + $0x58] sm:$0xff] %v3044
        %3053 = vst [vmem:[#allocation2 + $0x60] sm:$0xff] %v3045
        %3054 = vst [vmem:[#allocation2 + $0x68] sm:$0xff] %v3046
        %3055 = vst [vmem:[#allocation2 + $0x70] sm:$0xff] %v3047
        %3056 = vst [vmem:[#allocation2 + $0x78] sm:$0xff] %v3048
        %v3057 = vld [vmem:[#allocation2 + $0x40] sm:$0xff]
        %v3058 = vld [vmem:[#allocation2 + $0x48] sm:$0xff]
        %v3059 = vld [vmem:[#allocation2 + $0x50] sm:$0xff]
        %v3060 = vld [vmem:[#allocation2 + $0x58] sm:$0xff]
        %v3061 = vld [vmem:[#allocation2 + $0x60] sm:$0xff]
        %v3062 = vld [vmem:[#allocation2 + $0x68] sm:$0xff]
        %v3063 = vld [vmem:[#allocation2 + $0x70] sm:$0xff]
        %v3064 = vld [vmem:[#allocation2 + $0x78] sm:$0xff]
        %v3065 = vmul.f32 %v3057, 0.5
        %v3066 = vmul.f32 %v3058, 0.5
        %v3067 = vmul.f32 %v3059, 0.5
        %v3068 = vmul.f32 %v3060, 0.5
        %v3069 = vmul.f32 %v3061, 0.5
        %v3070 = vmul.f32 %v3062, 0.5
        %v3071 = vmul.f32 %v3063, 0.5
        %v3072 = vmul.f32 %v3064, 0.5
        %v3073 = vtanh.pop %v3065
        %v3074 = vtanh.pop %v3066
        %v3075 = vtanh.pop %v3067
        %v3076 = vtanh.pop %v3068
        %v3077 = vtanh.pop %v3069
        %v3078 = vtanh.pop %v3070
        %v3079 = vtanh.pop %v3071
        %v3080 = vtanh.pop %v3072
        %v3081 = vadd.f32 %v3073, 1.0
        %v3082 = vadd.f32 %v3074, 1.0
        %v3083 = vadd.f32 %v3075, 1.0
        %v3084 = vadd.f32 %v3076, 1.0
        %v3085 = vadd.f32 %v3077, 1.0
        %v3086 = vadd.f32 %v3078, 1.0
        %v3087 = vadd.f32 %v3079, 1.0
        %v3088 = vadd.f32 %v3080, 1.0
        %v3089 = vmul.f32 %v3081, 0.5
        %v3090 = vmul.f32 %v3082, 0.5
        %v3091 = vmul.f32 %v3083, 0.5
        %v3092 = vmul.f32 %v3084, 0.5
        %v3093 = vmul.f32 %v3085, 0.5
        %v3094 = vmul.f32 %v3086, 0.5
        %v3095 = vmul.f32 %v3087, 0.5
        %v3096 = vmul.f32 %v3088, 0.5
        %v3097 = vmul.f32 %v1296, %v3089
        %v3098 = vmul.f32 %v1297, %v3090
        %v3099 = vmul.f32 %v1298, %v3091
        %v3100 = vmul.f32 %v1299, %v3092
        %v3101 = vmul.f32 %v1300, %v3093
        %v3102 = vmul.f32 %v1301, %v3094
        %v3103 = vmul.f32 %v1302, %v3095
        %v3104 = vmul.f32 %v1303, %v3096
        %3105 = vrot.lane.b32.xlu0 %v1328, 64
        %v3106 = vpop.permute.xlu0 %3105
        %3107 = vrot.lane.b32.xlu0 %v1329, 64
        %v3108 = vpop.permute.xlu0 %3107
        %3109 = vrot.lane.b32.xlu0 %v1330, 64
        %v3110 = vpop.permute.xlu0 %3109
        %3111 = vrot.lane.b32.xlu0 %v1331, 64
        %v3112 = vpop.permute.xlu0 %3111
        %3113 = vrot.lane.b32.xlu0 %v1332, 64
        %v3114 = vpop.permute.xlu0 %3113
        %3115 = vrot.lane.b32.xlu0 %v1333, 64
        %v3116 = vpop.permute.xlu0 %3115
        %3117 = vrot.lane.b32.xlu0 %v1334, 64
        %v3118 = vpop.permute.xlu0 %3117
        %3119 = vrot.lane.b32.xlu0 %v1335, 64
        %v3120 = vpop.permute.xlu0 %3119
        %3121 = vrot.lane.b32.xlu0 %v1336, 64
        %v3122 = vpop.permute.xlu0 %3121
        %3123 = vrot.lane.b32.xlu0 %v1337, 64
        %v3124 = vpop.permute.xlu0 %3123
        %3125 = vrot.lane.b32.xlu0 %v1338, 64
        %v3126 = vpop.permute.xlu0 %3125
        %3127 = vrot.lane.b32.xlu0 %v1339, 64
        %v3128 = vpop.permute.xlu0 %3127
        %3129 = vrot.lane.b32.xlu0 %v1340, 64
        %v3130 = vpop.permute.xlu0 %3129
        %3131 = vrot.lane.b32.xlu0 %v1341, 64
        %v3132 = vpop.permute.xlu0 %3131
        %3133 = vrot.lane.b32.xlu0 %v1342, 64
        %v3134 = vpop.permute.xlu0 %3133
        %3135 = vrot.lane.b32.xlu0 %v1343, 64
        %v3136 = vpop.permute.xlu0 %3135
        %3137 = vrot.lane.b32.xlu0 %v1360, 64
        %v3138 = vpop.permute.xlu0 %3137
        %3139 = vrot.lane.b32.xlu0 %v1361, 64
        %v3140 = vpop.permute.xlu0 %3139
        %3141 = vrot.lane.b32.xlu0 %v1362, 64
        %v3142 = vpop.permute.xlu0 %3141
        %3143 = vrot.lane.b32.xlu0 %v1363, 64
        %v3144 = vpop.permute.xlu0 %3143
        %3145 = vrot.lane.b32.xlu0 %v1364, 64
        %v3146 = vpop.permute.xlu0 %3145
        %3147 = vrot.lane.b32.xlu0 %v1365, 64
        %v3148 = vpop.permute.xlu0 %3147
        %3149 = vrot.lane.b32.xlu0 %v1366, 64
        %v3150 = vpop.permute.xlu0 %3149
        %3151 = vrot.lane.b32.xlu0 %v1367, 64
        %v3152 = vpop.permute.xlu0 %3151
        %3153 = vrot.lane.b32.xlu0 %v1368, 64
        %v3154 = vpop.permute.xlu0 %3153
        %3155 = vrot.lane.b32.xlu0 %v1369, 64
        %v3156 = vpop.permute.xlu0 %3155
        %3157 = vrot.lane.b32.xlu0 %v1370, 64
        %v3158 = vpop.permute.xlu0 %3157
        %3159 = vrot.lane.b32.xlu0 %v1371, 64
        %v3160 = vpop.permute.xlu0 %3159
        %3161 = vrot.lane.b32.xlu0 %v1372, 64
        %v3162 = vpop.permute.xlu0 %3161
        %3163 = vrot.lane.b32.xlu0 %v1373, 64
        %v3164 = vpop.permute.xlu0 %3163
        %3165 = vrot.lane.b32.xlu0 %v1374, 64
        %v3166 = vpop.permute.xlu0 %3165
        %3167 = vrot.lane.b32.xlu0 %v1375, 64
        %v3168 = vpop.permute.xlu0 %3167
        %v3169 = vsel %vm1376, %v3106, 0
        %v3171 = vsel %vm1376, %v3108, 0
        %v3173 = vsel %vm1376, %v3110, 0
        %v3175 = vsel %vm1376, %v3112, 0
        %v3177 = vsel %vm1376, %v3114, 0
        %v3179 = vsel %vm1376, %v3116, 0
        %v3181 = vsel %vm1376, %v3118, 0
        %v3183 = vsel %vm1376, %v3120, 0
        %v3185 = vsel %vm1376, %v3122, 0
        %v3187 = vsel %vm1376, %v3124, 0
        %v3189 = vsel %vm1376, %v3126, 0
        %v3191 = vsel %vm1376, %v3128, 0
        %v3193 = vsel %vm1376, %v3130, 0
        %v3195 = vsel %vm1376, %v3132, 0
        %v3197 = vsel %vm1376, %v3134, 0
        %v3199 = vsel %vm1376, %v3136, 0
        %v3201 = vsel %vm1376, %v3138, 0
        %v3203 = vsel %vm1376, %v3140, 0
        %v3205 = vsel %vm1376, %v3142, 0
        %v3207 = vsel %vm1376, %v3144, 0
        %v3209 = vsel %vm1376, %v3146, 0
        %v3211 = vsel %vm1376, %v3148, 0
        %v3213 = vsel %vm1376, %v3150, 0
        %v3215 = vsel %vm1376, %v3152, 0
        %v3217 = vsel %vm1376, %v3154, 0
        %v3219 = vsel %vm1376, %v3156, 0
        %v3221 = vsel %vm1376, %v3158, 0
        %v3223 = vsel %vm1376, %v3160, 0
        %v3225 = vsel %vm1376, %v3162, 0
        %v3227 = vsel %vm1376, %v3164, 0
        %v3229 = vsel %vm1376, %v3166, 0
        %v3231 = vsel %vm1376, %v3168, 0
        %3233 = vmatprep.subr.mxu0 %v685
        %3234 = vmatpush1.msra.mxu0 %v684
        %3235 = vmatprep.subr.mxu0 %v687
        %3236 = vmatpush1.msra.mxu0 %v686
        %3237 = vmatprep.subr.mxu0 %v689
        %3238 = vmatpush1.msra.mxu0 %v688
        %3239 = vmatprep.subr.mxu0 %v691
        %3240 = vmatpush1.msra.mxu0 %v690
        %3241 = vmatprep.subr.mxu0 0.0
        %3242 = vmatpush1.msra.mxu0 0.0
        %3243 = vmatprep.subr.mxu0 0.0
        %3244 = vmatpush1.msra.mxu0 0.0
        %3245 = vmatprep.subr.mxu0 0.0
        %3246 = vmatpush1.msra.mxu0 0.0
        %3247 = vmatprep.subr.mxu0 0.0
        %3248 = vmatpush1.msra.mxu0 0.0
        %3249 = vmatprep.subr.mxu0 0.0
        %3250 = vmatpush1.msra.mxu0 0.0
        %3251 = vmatprep.subr.mxu0 0.0
        %3252 = vmatpush1.msra.mxu0 0.0
        %3253 = vmatprep.subr.mxu0 0.0
        %3254 = vmatpush1.msra.mxu0 0.0
        %3255 = vmatprep.subr.mxu0 0.0
        %3256 = vmatpush1.msra.mxu0 0.0
        %3257 = vmatprep.subr.mxu0 0.0
        %3258 = vmatpush1.msra.mxu0 0.0
        %3259 = vmatprep.subr.mxu0 0.0
        %3260 = vmatpush1.msra.mxu0 0.0
        %3261 = vmatprep.subr.mxu0 0.0
        %3262 = vmatpush1.msra.mxu0 0.0
        %3263 = vmatprep.subr.mxu0 0.0
        %3264 = vmatpush1.msra.mxu0 0.0
        %3265 = vmatprep.subr.mxu0 0.0
        %3266 = vmatpush1.msra.mxu0 0.0
        %3267 = vmatprep.subr.mxu0 0.0
        %3268 = vmatpush1.msra.mxu0 0.0
        %3269 = vmatprep.subr.mxu0 0.0
        %3270 = vmatpush1.msra.mxu0 0.0
        %3271 = vmatprep.subr.mxu0 0.0
        %3272 = vmatpush1.msra.mxu0 0.0
        %3273 = vmatprep.subr.mxu0 0.0
        %3274 = vmatpush1.msra.mxu0 0.0
        %3275 = vmatprep.subr.mxu0 0.0
        %3276 = vmatpush1.msra.mxu0 0.0
        %3277 = vmatprep.subr.mxu0 0.0
        %3278 = vmatpush1.msra.mxu0 0.0
        %3279 = vmatprep.subr.mxu0 0.0
        %3280 = vmatpush1.msra.mxu0 0.0
        %3281 = vmatprep.subr.mxu0 0.0
        %3282 = vmatpush1.msra.mxu0 0.0
        %3283 = vmatprep.subr.mxu0 0.0
        %3284 = vmatpush1.msra.mxu0 0.0
        %3285 = vmatprep.subr.mxu0 0.0
        %3286 = vmatpush1.msra.mxu0 0.0
        %3287 = vmatprep.subr.mxu0 0.0
        %3288 = vmatpush1.msra.mxu0 0.0
        %3289 = vmatprep.subr.mxu0 0.0
        %3290 = vmatpush1.msra.mxu0 0.0
        %3291 = vmatprep.subr.mxu0 0.0
        %3292 = vmatpush1.msra.mxu0 0.0
        %3293 = vmatprep.subr.mxu0 0.0
        %3294 = vmatpush1.msra.mxu0 0.0
        %3295 = vmatprep.subr.mxu0 0.0
        %3296 = vmatpush1.msra.mxu0 0.0
        %3297 = vmatprep.mubr.f32.mxu0 0.0
        %3298 = vmatmul.mubr.f32.gmra.mrb[0].mxu0 %v3169
        %v3299 = vpop.f32.mrb[0].mxu0
        %v3300 = vadd.f32 0.0, %v3299
        %v3301 = vpop.f32.mrb[0].mxu0
        %v3302 = vadd.f32 0.0, %v3301
        %3303 = vmatprep.mubr.f32.mxu0 0.0
        %3304 = vmatmul.mubr.f32.gmra.mrb[0].mxu0 %v3171
        %v3305 = vpop.f32.mrb[0].mxu0
        %v3306 = vadd.f32 0.0, %v3305
        %v3307 = vpop.f32.mrb[0].mxu0
        %v3308 = vadd.f32 0.0, %v3307
        %3309 = vmatprep.mubr.f32.mxu0 0.0
        %3310 = vmatmul.mubr.f32.gmra.mrb[0].mxu0 %v3173
        %v3311 = vpop.f32.mrb[0].mxu0
        %v3312 = vadd.f32 0.0, %v3311
        %v3313 = vpop.f32.mrb[0].mxu0
        %v3314 = vadd.f32 0.0, %v3313
        %3315 = vmatprep.mubr.f32.mxu0 0.0
        %3316 = vmatmul.mubr.f32.gmra.mrb[0].mxu0 %v3175
        %v3317 = vpop.f32.mrb[0].mxu0
        %v3318 = vadd.f32 0.0, %v3317
        %v3319 = vpop.f32.mrb[0].mxu0
        %v3320 = vadd.f32 0.0, %v3319
        %3321 = vmatprep.mubr.f32.mxu0 0.0
        %3322 = vmatmul.mubr.f32.gmra.mrb[0].mxu0 %v3177
        %v3323 = vpop.f32.mrb[0].mxu0
        %v3324 = vadd.f32 0.0, %v3323
        %v3325 = vpop.f32.mrb[0].mxu0
        %v3326 = vadd.f32 0.0, %v3325
        %3327 = vmatprep.mubr.f32.mxu0 0.0
        %3328 = vmatmul.mubr.f32.gmra.mrb[0].mxu0 %v3179
        %v3329 = vpop.f32.mrb[0].mxu0
        %v3330 = vadd.f32 0.0, %v3329
        %v3331 = vpop.f32.mrb[0].mxu0
        %v3332 = vadd.f32 0.0, %v3331
        %3333 = vmatprep.mubr.f32.mxu0 0.0
        %3334 = vmatmul.mubr.f32.gmra.mrb[0].mxu0 %v3181
        %v3335 = vpop.f32.mrb[0].mxu0
        %v3336 = vadd.f32 0.0, %v3335
        %v3337 = vpop.f32.mrb[0].mxu0
        %v3338 = vadd.f32 0.0, %v3337
        %3339 = vmatprep.mubr.f32.mxu0 0.0
        %3340 = vmatmul.mubr.f32.gmra.mrb[0].mxu0 %v3183
        %v3341 = vpop.f32.mrb[0].mxu0
        %v3342 = vadd.f32 0.0, %v3341
        %v3343 = vpop.f32.mrb[0].mxu0
        %v3344 = vadd.f32 0.0, %v3343
        %3345 = vmatprep.mubr.f32.mxu0 0.0
        %3346 = vmatmul.mubr.f32.gmra.mrb[0].mxu0 %v3185
        %v3347 = vpop.f32.mrb[0].mxu0
        %v3348 = vadd.f32 0.0, %v3347
        %v3349 = vpop.f32.mrb[0].mxu0
        %v3350 = vadd.f32 0.0, %v3349
        %3351 = vmatprep.mubr.f32.mxu0 0.0
        %3352 = vmatmul.mubr.f32.gmra.mrb[0].mxu0 %v3187
        %v3353 = vpop.f32.mrb[0].mxu0
        %v3354 = vadd.f32 0.0, %v3353
        %v3355 = vpop.f32.mrb[0].mxu0
        %v3356 = vadd.f32 0.0, %v3355
        %3357 = vmatprep.mubr.f32.mxu0 0.0
        %3358 = vmatmul.mubr.f32.gmra.mrb[0].mxu0 %v3189
        %v3359 = vpop.f32.mrb[0].mxu0
        %v3360 = vadd.f32 0.0, %v3359
        %v3361 = vpop.f32.mrb[0].mxu0
        %v3362 = vadd.f32 0.0, %v3361
        %3363 = vmatprep.mubr.f32.mxu0 0.0
        %3364 = vmatmul.mubr.f32.gmra.mrb[0].mxu0 %v3191
        %v3365 = vpop.f32.mrb[0].mxu0
        %v3366 = vadd.f32 0.0, %v3365
        %v3367 = vpop.f32.mrb[0].mxu0
        %v3368 = vadd.f32 0.0, %v3367
        %3369 = vmatprep.mubr.f32.mxu0 0.0
        %3370 = vmatmul.mubr.f32.gmra.mrb[0].mxu0 %v3193
        %v3371 = vpop.f32.mrb[0].mxu0
        %v3372 = vadd.f32 0.0, %v3371
        %v3373 = vpop.f32.mrb[0].mxu0
        %v3374 = vadd.f32 0.0, %v3373
        %3375 = vmatprep.mubr.f32.mxu0 0.0
        %3376 = vmatmul.mubr.f32.gmra.mrb[0].mxu0 %v3195
        %v3377 = vpop.f32.mrb[0].mxu0
        %v3378 = vadd.f32 0.0, %v3377
        %v3379 = vpop.f32.mrb[0].mxu0
        %v3380 = vadd.f32 0.0, %v3379
        %3381 = vmatprep.mubr.f32.mxu0 0.0
        %3382 = vmatmul.mubr.f32.gmra.mrb[0].mxu0 %v3197
        %v3383 = vpop.f32.mrb[0].mxu0
        %v3384 = vadd.f32 0.0, %v3383
        %v3385 = vpop.f32.mrb[0].mxu0
        %v3386 = vadd.f32 0.0, %v3385
        %3387 = vmatprep.mubr.f32.mxu0 0.0
        %3388 = vmatmul.mubr.f32.gmra.mrb[0].mxu0 %v3199
        %v3389 = vpop.f32.mrb[0].mxu0
        %v3390 = vadd.f32 0.0, %v3389
        %v3391 = vpop.f32.mrb[0].mxu0
        %v3392 = vadd.f32 0.0, %v3391
        %3393 = vmatprep.mubr.f32.mxu0 0.0
        %3394 = vmatmul.mubr.f32.gmra.mrb[0].mxu0 %v3201
        %v3395 = vpop.f32.mrb[0].mxu0
        %v3396 = vadd.f32 0.0, %v3395
        %v3397 = vpop.f32.mrb[0].mxu0
        %v3398 = vadd.f32 0.0, %v3397
        %3399 = vmatprep.mubr.f32.mxu0 0.0
        %3400 = vmatmul.mubr.f32.gmra.mrb[0].mxu0 %v3203
        %v3401 = vpop.f32.mrb[0].mxu0
        %v3402 = vadd.f32 0.0, %v3401
        %v3403 = vpop.f32.mrb[0].mxu0
        %v3404 = vadd.f32 0.0, %v3403
        %3405 = vmatprep.mubr.f32.mxu0 0.0
        %3406 = vmatmul.mubr.f32.gmra.mrb[0].mxu0 %v3205
        %v3407 = vpop.f32.mrb[0].mxu0
        %v3408 = vadd.f32 0.0, %v3407
        %v3409 = vpop.f32.mrb[0].mxu0
        %v3410 = vadd.f32 0.0, %v3409
        %3411 = vmatprep.mubr.f32.mxu0 0.0
        %3412 = vmatmul.mubr.f32.gmra.mrb[0].mxu0 %v3207
        %v3413 = vpop.f32.mrb[0].mxu0
        %v3414 = vadd.f32 0.0, %v3413
        %v3415 = vpop.f32.mrb[0].mxu0
        %v3416 = vadd.f32 0.0, %v3415
        %3417 = vmatprep.mubr.f32.mxu0 0.0
        %3418 = vmatmul.mubr.f32.gmra.mrb[0].mxu0 %v3209
        %v3419 = vpop.f32.mrb[0].mxu0
        %v3420 = vadd.f32 0.0, %v3419
        %v3421 = vpop.f32.mrb[0].mxu0
        %v3422 = vadd.f32 0.0, %v3421
        %3423 = vmatprep.mubr.f32.mxu0 0.0
        %3424 = vmatmul.mubr.f32.gmra.mrb[0].mxu0 %v3211
        %v3425 = vpop.f32.mrb[0].mxu0
        %v3426 = vadd.f32 0.0, %v3425
        %v3427 = vpop.f32.mrb[0].mxu0
        %v3428 = vadd.f32 0.0, %v3427
        %3429 = vmatprep.mubr.f32.mxu0 0.0
        %3430 = vmatmul.mubr.f32.gmra.mrb[0].mxu0 %v3213
        %v3431 = vpop.f32.mrb[0].mxu0
        %v3432 = vadd.f32 0.0, %v3431
        %v3433 = vpop.f32.mrb[0].mxu0
        %v3434 = vadd.f32 0.0, %v3433
        %3435 = vmatprep.mubr.f32.mxu0 0.0
        %3436 = vmatmul.mubr.f32.gmra.mrb[0].mxu0 %v3215
        %v3437 = vpop.f32.mrb[0].mxu0
        %v3438 = vadd.f32 0.0, %v3437
        %v3439 = vpop.f32.mrb[0].mxu0
        %v3440 = vadd.f32 0.0, %v3439
        %3441 = vmatprep.mubr.f32.mxu0 0.0
        %3442 = vmatmul.mubr.f32.gmra.mrb[0].mxu0 %v3217
        %v3443 = vpop.f32.mrb[0].mxu0
        %v3444 = vadd.f32 0.0, %v3443
        %v3445 = vpop.f32.mrb[0].mxu0
        %v3446 = vadd.f32 0.0, %v3445
        %3447 = vmatprep.mubr.f32.mxu0 0.0
        %3448 = vmatmul.mubr.f32.gmra.mrb[0].mxu0 %v3219
        %v3449 = vpop.f32.mrb[0].mxu0
        %v3450 = vadd.f32 0.0, %v3449
        %v3451 = vpop.f32.mrb[0].mxu0
        %v3452 = vadd.f32 0.0, %v3451
        %3453 = vmatprep.mubr.f32.mxu0 0.0
        %3454 = vmatmul.mubr.f32.gmra.mrb[0].mxu0 %v3221
        %v3455 = vpop.f32.mrb[0].mxu0
        %v3456 = vadd.f32 0.0, %v3455
        %v3457 = vpop.f32.mrb[0].mxu0
        %v3458 = vadd.f32 0.0, %v3457
        %3459 = vmatprep.mubr.f32.mxu0 0.0
        %3460 = vmatmul.mubr.f32.gmra.mrb[0].mxu0 %v3223
        %v3461 = vpop.f32.mrb[0].mxu0
        %v3462 = vadd.f32 0.0, %v3461
        %v3463 = vpop.f32.mrb[0].mxu0
        %v3464 = vadd.f32 0.0, %v3463
        %3465 = vmatprep.mubr.f32.mxu0 0.0
        %3466 = vmatmul.mubr.f32.gmra.mrb[0].mxu0 %v3225
        %v3467 = vpop.f32.mrb[0].mxu0
        %v3468 = vadd.f32 0.0, %v3467
        %v3469 = vpop.f32.mrb[0].mxu0
        %v3470 = vadd.f32 0.0, %v3469
        %3471 = vmatprep.mubr.f32.mxu0 0.0
        %3472 = vmatmul.mubr.f32.gmra.mrb[0].mxu0 %v3227
        %v3473 = vpop.f32.mrb[0].mxu0
        %v3474 = vadd.f32 0.0, %v3473
        %v3475 = vpop.f32.mrb[0].mxu0
        %v3476 = vadd.f32 0.0, %v3475
        %3477 = vmatprep.mubr.f32.mxu0 0.0
        %3478 = vmatmul.mubr.f32.gmra.mrb[0].mxu0 %v3229
        %v3479 = vpop.f32.mrb[0].mxu0
        %v3480 = vadd.f32 0.0, %v3479
        %v3481 = vpop.f32.mrb[0].mxu0
        %v3482 = vadd.f32 0.0, %v3481
        %3483 = vmatprep.mubr.f32.mxu0 0.0
        %3484 = vmatmul.mubr.f32.gmra.mrb[0].mxu0 %v3231
        %v3485 = vpop.f32.mrb[0].mxu0
        %v3486 = vadd.f32 0.0, %v3485
        %v3487 = vpop.f32.mrb[0].mxu0
        %v3488 = vadd.f32 0.0, %v3487
        %3489 = vdwg.mxu0
        %v3490 = vmax.f32 %v3300, %v3312
        %v3491 = vmax.f32 %v3306, %v3318
        %v3492 = vmax.f32 %v3490, %v3324
        %v3493 = vmax.f32 %v3491, %v3330
        %v3494 = vmax.f32 %v3492, %v3336
        %v3495 = vmax.f32 %v3493, %v3342
        %v3496 = vmax.f32 %v3494, %v3348
        %v3497 = vmax.f32 %v3495, %v3354
        %v3498 = vmax.f32 %v3496, %v3360
        %v3499 = vmax.f32 %v3497, %v3366
        %v3500 = vmax.f32 %v3498, %v3372
        %v3501 = vmax.f32 %v3499, %v3378
        %v3502 = vmax.f32 %v3500, %v3384
        %v3503 = vmax.f32 %v3501, %v3390
        %v3504 = vmax.f32 %v3502, %v3396
        %v3505 = vmax.f32 %v3503, %v3402
        %v3506 = vmax.f32 %v3504, %v3408
        %v3507 = vmax.f32 %v3505, %v3414
        %v3508 = vmax.f32 %v3506, %v3420
        %v3509 = vmax.f32 %v3507, %v3426
        %v3510 = vmax.f32 %v3508, %v3432
        %v3511 = vmax.f32 %v3509, %v3438
        %v3512 = vmax.f32 %v3510, %v3444
        %v3513 = vmax.f32 %v3511, %v3450
        %v3514 = vmax.f32 %v3512, %v3456
        %v3515 = vmax.f32 %v3513, %v3462
        %v3516 = vmax.f32 %v3514, %v3468
        %v3517 = vmax.f32 %v3515, %v3474
        %v3518 = vmax.f32 %v3516, %v3480
        %v3519 = vmax.f32 %v3517, %v3486
        %v3520 = vmax.f32 %v3518, %v3519
        %v3521 = vrot.slane %v3520, 4
        %v3522 = vmax.f32 %v3520, %v3521
        %v3523 = vrot.slane %v3522, 2
        %v3524 = vmax.f32 %v3522, %v3523
        %v3525 = vrot.slane %v3524, 1
        %v3526 = vmax.f32 %v3524, %v3525
        %v3527 = vmax.f32 %v3302, %v3314
        %v3528 = vmax.f32 %v3308, %v3320
        %v3529 = vmax.f32 %v3527, %v3326
        %v3530 = vmax.f32 %v3528, %v3332
        %v3531 = vmax.f32 %v3529, %v3338
        %v3532 = vmax.f32 %v3530, %v3344
        %v3533 = vmax.f32 %v3531, %v3350
        %v3534 = vmax.f32 %v3532, %v3356
        %v3535 = vmax.f32 %v3533, %v3362
        %v3536 = vmax.f32 %v3534, %v3368
        %v3537 = vmax.f32 %v3535, %v3374
        %v3538 = vmax.f32 %v3536, %v3380
        %v3539 = vmax.f32 %v3537, %v3386
        %v3540 = vmax.f32 %v3538, %v3392
        %v3541 = vmax.f32 %v3539, %v3398
        %v3542 = vmax.f32 %v3540, %v3404
        %v3543 = vmax.f32 %v3541, %v3410
        %v3544 = vmax.f32 %v3542, %v3416
        %v3545 = vmax.f32 %v3543, %v3422
        %v3546 = vmax.f32 %v3544, %v3428
        %v3547 = vmax.f32 %v3545, %v3434
        %v3548 = vmax.f32 %v3546, %v3440
        %v3549 = vmax.f32 %v3547, %v3446
        %v3550 = vmax.f32 %v3548, %v3452
        %v3551 = vmax.f32 %v3549, %v3458
        %v3552 = vmax.f32 %v3550, %v3464
        %v3553 = vmax.f32 %v3551, %v3470
        %v3554 = vmax.f32 %v3552, %v3476
        %v3555 = vmax.f32 %v3553, %v3482
        %v3556 = vmax.f32 %v3554, %v3488
        %v3557 = vmax.f32 %v3555, %v3556
        %v3558 = vrot.slane %v3557, 4
        %v3559 = vmax.f32 %v3557, %v3558
        %v3560 = vrot.slane %v3559, 2
        %v3561 = vmax.f32 %v3559, %v3560
        %v3562 = vrot.slane %v3561, 1
        %v3563 = vmax.f32 %v3561, %v3562
        %v3564 = vsub.f32 %v3300, %v3526
        %v3565 = vsub.f32 %v3302, %v3563
        %v3566 = vsub.f32 %v3306, %v3526
        %v3567 = vsub.f32 %v3308, %v3563
        %v3568 = vsub.f32 %v3312, %v3526
        %v3569 = vsub.f32 %v3314, %v3563
        %v3570 = vsub.f32 %v3318, %v3526
        %v3571 = vsub.f32 %v3320, %v3563
        %v3572 = vsub.f32 %v3324, %v3526
        %v3573 = vsub.f32 %v3326, %v3563
        %v3574 = vsub.f32 %v3330, %v3526
        %v3575 = vsub.f32 %v3332, %v3563
        %v3576 = vsub.f32 %v3336, %v3526
        %v3577 = vsub.f32 %v3338, %v3563
        %v3578 = vsub.f32 %v3342, %v3526
        %v3579 = vsub.f32 %v3344, %v3563
        %v3580 = vsub.f32 %v3348, %v3526
        %v3581 = vsub.f32 %v3350, %v3563
        %v3582 = vsub.f32 %v3354, %v3526
        %v3583 = vsub.f32 %v3356, %v3563
        %v3584 = vsub.f32 %v3360, %v3526
        %v3585 = vsub.f32 %v3362, %v3563
        %v3586 = vsub.f32 %v3366, %v3526
        %v3587 = vsub.f32 %v3368, %v3563
        %v3588 = vsub.f32 %v3372, %v3526
        %v3589 = vsub.f32 %v3374, %v3563
        %v3590 = vsub.f32 %v3378, %v3526
        %v3591 = vsub.f32 %v3380, %v3563
        %v3592 = vsub.f32 %v3384, %v3526
        %v3593 = vsub.f32 %v3386, %v3563
        %v3594 = vsub.f32 %v3390, %v3526
        %v3595 = vsub.f32 %v3392, %v3563
        %v3596 = vsub.f32 %v3396, %v3526
        %v3597 = vsub.f32 %v3398, %v3563
        %v3598 = vsub.f32 %v3402, %v3526
        %v3599 = vsub.f32 %v3404, %v3563
        %v3600 = vsub.f32 %v3408, %v3526
        %v3601 = vsub.f32 %v3410, %v3563
        %v3602 = vsub.f32 %v3414, %v3526
        %v3603 = vsub.f32 %v3416, %v3563
        %v3604 = vsub.f32 %v3420, %v3526
        %v3605 = vsub.f32 %v3422, %v3563
        %v3606 = vsub.f32 %v3426, %v3526
        %v3607 = vsub.f32 %v3428, %v3563
        %v3608 = vsub.f32 %v3432, %v3526
        %v3609 = vsub.f32 %v3434, %v3563
        %v3610 = vsub.f32 %v3438, %v3526
        %v3611 = vsub.f32 %v3440, %v3563
        %v3612 = vsub.f32 %v3444, %v3526
        %v3613 = vsub.f32 %v3446, %v3563
        %v3614 = vsub.f32 %v3450, %v3526
        %v3615 = vsub.f32 %v3452, %v3563
        %v3616 = vsub.f32 %v3456, %v3526
        %v3617 = vsub.f32 %v3458, %v3563
        %v3618 = vsub.f32 %v3462, %v3526
        %v3619 = vsub.f32 %v3464, %v3563
        %v3620 = vsub.f32 %v3468, %v3526
        %v3621 = vsub.f32 %v3470, %v3563
        %v3622 = vsub.f32 %v3474, %v3526
        %v3623 = vsub.f32 %v3476, %v3563
        %v3624 = vsub.f32 %v3480, %v3526
        %v3625 = vsub.f32 %v3482, %v3563
        %v3626 = vsub.f32 %v3486, %v3526
        %v3627 = vsub.f32 %v3488, %v3563
        %v3628 = vmul.f32 %v3564, 1.442695
        %v3629 = vpow.pop %v3628
        %v3630 = vmul.f32 %v3565, 1.442695
        %v3631 = vpow.pop %v3630
        %v3632 = vmul.f32 %v3566, 1.442695
        %v3633 = vpow.pop %v3632
        %v3634 = vmul.f32 %v3567, 1.442695
        %v3635 = vpow.pop %v3634
        %v3636 = vmul.f32 %v3568, 1.442695
        %v3637 = vpow.pop %v3636
        %v3638 = vmul.f32 %v3569, 1.442695
        %v3639 = vpow.pop %v3638
        %v3640 = vmul.f32 %v3570, 1.442695
        %v3641 = vpow.pop %v3640
        %v3642 = vmul.f32 %v3571, 1.442695
        %v3643 = vpow.pop %v3642
        %v3644 = vmul.f32 %v3572, 1.442695
        %v3645 = vpow.pop %v3644
        %v3646 = vmul.f32 %v3573, 1.442695
        %v3647 = vpow.pop %v3646
        %v3648 = vmul.f32 %v3574, 1.442695
        %v3649 = vpow.pop %v3648
        %v3650 = vmul.f32 %v3575, 1.442695
        %v3651 = vpow.pop %v3650
        %v3652 = vmul.f32 %v3576, 1.442695
        %v3653 = vpow.pop %v3652
        %v3654 = vmul.f32 %v3577, 1.442695
        %v3655 = vpow.pop %v3654
        %v3656 = vmul.f32 %v3578, 1.442695
        %v3657 = vpow.pop %v3656
        %v3658 = vmul.f32 %v3579, 1.442695
        %v3659 = vpow.pop %v3658
        %v3660 = vmul.f32 %v3580, 1.442695
        %v3661 = vpow.pop %v3660
        %v3662 = vmul.f32 %v3581, 1.442695
        %v3663 = vpow.pop %v3662
        %v3664 = vmul.f32 %v3582, 1.442695
        %v3665 = vpow.pop %v3664
        %v3666 = vmul.f32 %v3583, 1.442695
        %v3667 = vpow.pop %v3666
        %v3668 = vmul.f32 %v3584, 1.442695
        %v3669 = vpow.pop %v3668
        %v3670 = vmul.f32 %v3585, 1.442695
        %v3671 = vpow.pop %v3670
        %v3672 = vmul.f32 %v3586, 1.442695
        %v3673 = vpow.pop %v3672
        %v3674 = vmul.f32 %v3587, 1.442695
        %v3675 = vpow.pop %v3674
        %v3676 = vmul.f32 %v3588, 1.442695
        %v3677 = vpow.pop %v3676
        %v3678 = vmul.f32 %v3589, 1.442695
        %v3679 = vpow.pop %v3678
        %v3680 = vmul.f32 %v3590, 1.442695
        %v3681 = vpow.pop %v3680
        %v3682 = vmul.f32 %v3591, 1.442695
        %v3683 = vpow.pop %v3682
        %v3684 = vmul.f32 %v3592, 1.442695
        %v3685 = vpow.pop %v3684
        %v3686 = vmul.f32 %v3593, 1.442695
        %v3687 = vpow.pop %v3686
        %v3688 = vmul.f32 %v3594, 1.442695
        %v3689 = vpow.pop %v3688
        %v3690 = vmul.f32 %v3595, 1.442695
        %v3691 = vpow.pop %v3690
        %v3692 = vmul.f32 %v3596, 1.442695
        %v3693 = vpow.pop %v3692
        %v3694 = vmul.f32 %v3597, 1.442695
        %v3695 = vpow.pop %v3694
        %v3696 = vmul.f32 %v3598, 1.442695
        %v3697 = vpow.pop %v3696
        %v3698 = vmul.f32 %v3599, 1.442695
        %v3699 = vpow.pop %v3698
        %v3700 = vmul.f32 %v3600, 1.442695
        %v3701 = vpow.pop %v3700
        %v3702 = vmul.f32 %v3601, 1.442695
        %v3703 = vpow.pop %v3702
        %v3704 = vmul.f32 %v3602, 1.442695
        %v3705 = vpow.pop %v3704
        %v3706 = vmul.f32 %v3603, 1.442695
        %v3707 = vpow.pop %v3706
        %v3708 = vmul.f32 %v3604, 1.442695
        %v3709 = vpow.pop %v3708
        %v3710 = vmul.f32 %v3605, 1.442695
        %v3711 = vpow.pop %v3710
        %v3712 = vmul.f32 %v3606, 1.442695
        %v3713 = vpow.pop %v3712
        %v3714 = vmul.f32 %v3607, 1.442695
        %v3715 = vpow.pop %v3714
        %v3716 = vmul.f32 %v3608, 1.442695
        %v3717 = vpow.pop %v3716
        %v3718 = vmul.f32 %v3609, 1.442695
        %v3719 = vpow.pop %v3718
        %v3720 = vmul.f32 %v3610, 1.442695
        %v3721 = vpow.pop %v3720
        %v3722 = vmul.f32 %v3611, 1.442695
        %v3723 = vpow.pop %v3722
        %v3724 = vmul.f32 %v3612, 1.442695
        %v3725 = vpow.pop %v3724
        %v3726 = vmul.f32 %v3613, 1.442695
        %v3727 = vpow.pop %v3726
        %v3728 = vmul.f32 %v3614, 1.442695
        %v3729 = vpow.pop %v3728
        %v3730 = vmul.f32 %v3615, 1.442695
        %v3731 = vpow.pop %v3730
        %v3732 = vmul.f32 %v3616, 1.442695
        %v3733 = vpow.pop %v3732
        %v3734 = vmul.f32 %v3617, 1.442695
        %v3735 = vpow.pop %v3734
        %v3736 = vmul.f32 %v3618, 1.442695
        %v3737 = vpow.pop %v3736
        %v3738 = vmul.f32 %v3619, 1.442695
        %v3739 = vpow.pop %v3738
        %v3740 = vmul.f32 %v3620, 1.442695
        %v3741 = vpow.pop %v3740
        %v3742 = vmul.f32 %v3621, 1.442695
        %v3743 = vpow.pop %v3742
        %v3744 = vmul.f32 %v3622, 1.442695
        %v3745 = vpow.pop %v3744
        %v3746 = vmul.f32 %v3623, 1.442695
        %v3747 = vpow.pop %v3746
        %v3748 = vmul.f32 %v3624, 1.442695
        %v3749 = vpow.pop %v3748
        %v3750 = vmul.f32 %v3625, 1.442695
        %v3751 = vpow.pop %v3750
        %v3752 = vmul.f32 %v3626, 1.442695
        %v3753 = vpow.pop %v3752
        %v3754 = vmul.f32 %v3627, 1.442695
        %v3755 = vpow.pop %v3754
        %v3756 = vadd.f32 %v3629, %v3633
        %v3757 = vadd.f32 %v3756, %v3637
        %v3758 = vadd.f32 %v3757, %v3641
        %v3759 = vadd.f32 %v3758, %v3645
        %v3760 = vadd.f32 %v3759, %v3649
        %v3761 = vadd.f32 %v3760, %v3653
        %v3762 = vadd.f32 %v3761, %v3657
        %v3763 = vadd.f32 %v3762, %v3661
        %v3764 = vadd.f32 %v3763, %v3665
        %v3765 = vadd.f32 %v3764, %v3669
        %v3766 = vadd.f32 %v3765, %v3673
        %v3767 = vadd.f32 %v3766, %v3677
        %v3768 = vadd.f32 %v3767, %v3681
        %v3769 = vadd.f32 %v3768, %v3685
        %v3770 = vadd.f32 %v3769, %v3689
        %v3771 = vadd.f32 %v3770, %v3693
        %v3772 = vadd.f32 %v3771, %v3697
        %v3773 = vadd.f32 %v3772, %v3701
        %v3774 = vadd.f32 %v3773, %v3705
        %v3775 = vadd.f32 %v3774, %v3709
        %v3776 = vadd.f32 %v3775, %v3713
        %v3777 = vadd.f32 %v3776, %v3717
        %v3778 = vadd.f32 %v3777, %v3721
        %v3779 = vadd.f32 %v3778, %v3725
        %v3780 = vadd.f32 %v3779, %v3729
        %v3781 = vadd.f32 %v3780, %v3733
        %v3782 = vadd.f32 %v3781, %v3737
        %v3783 = vadd.f32 %v3782, %v3741
        %v3784 = vadd.f32 %v3783, %v3745
        %v3785 = vadd.f32 %v3784, %v3749
        %v3786 = vadd.f32 %v3785, %v3753
        %v3787 = vrot.slane %v3786, 4
        %v3788 = vadd.f32 %v3786, %v3787
        %v3789 = vrot.slane %v3788, 2
        %v3790 = vadd.f32 %v3788, %v3789
        %v3791 = vrot.slane %v3790, 1
        %v3792 = vadd.f32 %v3790, %v3791
        %v3793 = vadd.f32 %v3631, %v3635
        %v3794 = vadd.f32 %v3793, %v3639
        %v3795 = vadd.f32 %v3794, %v3643
        %v3796 = vadd.f32 %v3795, %v3647
        %v3797 = vadd.f32 %v3796, %v3651
        %v3798 = vadd.f32 %v3797, %v3655
        %v3799 = vadd.f32 %v3798, %v3659
        %v3800 = vadd.f32 %v3799, %v3663
        %v3801 = vadd.f32 %v3800, %v3667
        %v3802 = vadd.f32 %v3801, %v3671
        %v3803 = vadd.f32 %v3802, %v3675
        %v3804 = vadd.f32 %v3803, %v3679
        %v3805 = vadd.f32 %v3804, %v3683
        %v3806 = vadd.f32 %v3805, %v3687
        %v3807 = vadd.f32 %v3806, %v3691
        %v3808 = vadd.f32 %v3807, %v3695
        %v3809 = vadd.f32 %v3808, %v3699
        %v3810 = vadd.f32 %v3809, %v3703
        %v3811 = vadd.f32 %v3810, %v3707
        %v3812 = vadd.f32 %v3811, %v3711
        %v3813 = vadd.f32 %v3812, %v3715
        %v3814 = vadd.f32 %v3813, %v3719
        %v3815 = vadd.f32 %v3814, %v3723
        %v3816 = vadd.f32 %v3815, %v3727
        %v3817 = vadd.f32 %v3816, %v3731
        %v3818 = vadd.f32 %v3817, %v3735
        %v3819 = vadd.f32 %v3818, %v3739
        %v3820 = vadd.f32 %v3819, %v3743
        %v3821 = vadd.f32 %v3820, %v3747
        %v3822 = vadd.f32 %v3821, %v3751
        %v3823 = vadd.f32 %v3822, %v3755
        %v3824 = vrot.slane %v3823, 4
        %v3825 = vadd.f32 %v3823, %v3824
        %v3826 = vrot.slane %v3825, 2
        %v3827 = vadd.f32 %v3825, %v3826
        %v3828 = vrot.slane %v3827, 1
        %v3829 = vadd.f32 %v3827, %v3828
        %3830 = vmatprep.subr.mxu0 %v3631
        %3831 = vmatpush1.msra.mxu0 %v3629
        %3832 = vmatprep.subr.mxu0 %v3635
        %3833 = vmatpush1.msra.mxu0 %v3633
        %3834 = vmatprep.subr.mxu0 %v3639
        %3835 = vmatpush1.msra.mxu0 %v3637
        %3836 = vmatprep.subr.mxu0 %v3643
        %3837 = vmatpush1.msra.mxu0 %v3641
        %3838 = vmatprep.subr.mxu0 %v3647
        %3839 = vmatpush1.msra.mxu0 %v3645
        %3840 = vmatprep.subr.mxu0 %v3651
        %3841 = vmatpush1.msra.mxu0 %v3649
        %3842 = vmatprep.subr.mxu0 %v3655
        %3843 = vmatpush1.msra.mxu0 %v3653
        %3844 = vmatprep.subr.mxu0 %v3659
        %3845 = vmatpush1.msra.mxu0 %v3657
        %3846 = vmatprep.subr.mxu0 %v3663
        %3847 = vmatpush1.msra.mxu0 %v3661
        %3848 = vmatprep.subr.mxu0 %v3667
        %3849 = vmatpush1.msra.mxu0 %v3665
        %3850 = vmatprep.subr.mxu0 %v3671
        %3851 = vmatpush1.msra.mxu0 %v3669
        %3852 = vmatprep.subr.mxu0 %v3675
        %3853 = vmatpush1.msra.mxu0 %v3673
        %3854 = vmatprep.subr.mxu0 %v3679
        %3855 = vmatpush1.msra.mxu0 %v3677
        %3856 = vmatprep.subr.mxu0 %v3683
        %3857 = vmatpush1.msra.mxu0 %v3681
        %3858 = vmatprep.subr.mxu0 %v3687
        %3859 = vmatpush1.msra.mxu0 %v3685
        %3860 = vmatprep.subr.mxu0 %v3691
        %3861 = vmatpush1.msra.mxu0 %v3689
        %3862 = vmatprep.subr.mxu0 %v3695
        %3863 = vmatpush1.msra.mxu0 %v3693
        %3864 = vmatprep.subr.mxu0 %v3699
        %3865 = vmatpush1.msra.mxu0 %v3697
        %3866 = vmatprep.subr.mxu0 %v3703
        %3867 = vmatpush1.msra.mxu0 %v3701
        %3868 = vmatprep.subr.mxu0 %v3707
        %3869 = vmatpush1.msra.mxu0 %v3705
        %3870 = vmatprep.subr.mxu0 %v3711
        %3871 = vmatpush1.msra.mxu0 %v3709
        %3872 = vmatprep.subr.mxu0 %v3715
        %3873 = vmatpush1.msra.mxu0 %v3713
        %3874 = vmatprep.subr.mxu0 %v3719
        %3875 = vmatpush1.msra.mxu0 %v3717
        %3876 = vmatprep.subr.mxu0 %v3723
        %3877 = vmatpush1.msra.mxu0 %v3721
        %3878 = vmatprep.subr.mxu0 %v3727
        %3879 = vmatpush1.msra.mxu0 %v3725
        %3880 = vmatprep.subr.mxu0 %v3731
        %3881 = vmatpush1.msra.mxu0 %v3729
        %3882 = vmatprep.subr.mxu0 %v3735
        %3883 = vmatpush1.msra.mxu0 %v3733
        %3884 = vmatprep.subr.mxu0 %v3739
        %3885 = vmatpush1.msra.mxu0 %v3737
        %3886 = vmatprep.subr.mxu0 %v3743
        %3887 = vmatpush1.msra.mxu0 %v3741
        %3888 = vmatprep.subr.mxu0 %v3747
        %3889 = vmatpush1.msra.mxu0 %v3745
        %3890 = vmatprep.subr.mxu0 %v3751
        %3891 = vmatpush1.msra.mxu0 %v3749
        %3892 = vmatprep.subr.mxu0 %v3755
        %3893 = vmatpush1.msra.mxu0 %v3753
        %3894 = vmatprep.mubr.f32.mxu0 %v3098
        %3895 = vmatmul.mubr.f32.gmra.mrb[0].mxu0 %v3097
        %v3896 = vpop.f32.mrb[0].mxu0
        %v3897 = vadd.f32 0.0, %v3896
        %v3898 = vpop.f32.mrb[0].mxu0
        %v3899 = vadd.f32 0.0, %v3898
        %3900 = vmatprep.mubr.f32.mxu0 %v3100
        %3901 = vmatmul.mubr.f32.gmra.mrb[0].mxu0 %v3099
        %v3902 = vpop.f32.mrb[0].mxu0
        %v3903 = vadd.f32 0.0, %v3902
        %v3904 = vpop.f32.mrb[0].mxu0
        %v3905 = vadd.f32 0.0, %v3904
        %3906 = vmatprep.mubr.f32.mxu0 %v3102
        %3907 = vmatmul.mubr.f32.gmra.mrb[0].mxu0 %v3101
        %v3908 = vpop.f32.mrb[0].mxu0
        %v3909 = vadd.f32 0.0, %v3908
        %v3910 = vpop.f32.mrb[0].mxu0
        %v3911 = vadd.f32 0.0, %v3910
        %3912 = vmatprep.mubr.f32.mxu0 %v3104
        %3913 = vmatmul.mubr.f32.gmra.mrb[0].mxu0 %v3103
        %v3914 = vpop.f32.mrb[0].mxu0
        %v3915 = vadd.f32 0.0, %v3914
        %v3916 = vpop.f32.mrb[0].mxu0
        %v3917 = vadd.f32 0.0, %v3916
        %3918 = vdwg.mxu0
        %v3919 = vrcp.pop %v3792
        %v3920 = vrcp.pop %v3829
        %v3921 = vmul.f32 %v3897, %v3919
        %v3922 = vmul.f32 %v3899, %v3920
        %v3923 = vmul.f32 %v3903, %v3919
        %v3924 = vmul.f32 %v3905, %v3920
        %v3925 = vmul.f32 %v3909, %v3919
        %v3926 = vmul.f32 %v3911, %v3920
        %v3927 = vmul.f32 %v3915, %v3919
        %v3928 = vmul.f32 %v3917, %v3920
        %3929 = vst [vmem:[#allocation2 + $0x80] sm:$0xff] %v3921
        %3930 = vst [vmem:[#allocation2 + $0x88] sm:$0xff] %v3922
        %3931 = vst [vmem:[#allocation2 + $0x90] sm:$0xff] %v3923
        %3932 = vst [vmem:[#allocation2 + $0x98] sm:$0xff] %v3924
        %3933 = vst [vmem:[#allocation2 + $0xa0] sm:$0xff] %v3925
        %3934 = vst [vmem:[#allocation2 + $0xa8] sm:$0xff] %v3926
        %3935 = vst [vmem:[#allocation2 + $0xb0] sm:$0xff] %v3927
        %3936 = vst [vmem:[#allocation2 + $0xb8] sm:$0xff] %v3928
        %v3937 = vld [vmem:[#allocation2 + $0x80] sm:$0xff]
        %v3938 = vld [vmem:[#allocation2 + $0x88] sm:$0xff]
        %v3939 = vld [vmem:[#allocation2 + $0x90] sm:$0xff]
        %v3940 = vld [vmem:[#allocation2 + $0x98] sm:$0xff]
        %v3941 = vld [vmem:[#allocation2 + $0xa0] sm:$0xff]
        %v3942 = vld [vmem:[#allocation2 + $0xa8] sm:$0xff]
        %v3943 = vld [vmem:[#allocation2 + $0xb0] sm:$0xff]
        %v3944 = vld [vmem:[#allocation2 + $0xb8] sm:$0xff]
        %v3945 = vmul.f32 %v3937, 0.5
        %v3946 = vmul.f32 %v3938, 0.5
        %v3947 = vmul.f32 %v3939, 0.5
        %v3948 = vmul.f32 %v3940, 0.5
        %v3949 = vmul.f32 %v3941, 0.5
        %v3950 = vmul.f32 %v3942, 0.5
        %v3951 = vmul.f32 %v3943, 0.5
        %v3952 = vmul.f32 %v3944, 0.5
        %v3953 = vtanh.pop %v3945
        %v3954 = vtanh.pop %v3946
        %v3955 = vtanh.pop %v3947
        %v3956 = vtanh.pop %v3948
        %v3957 = vtanh.pop %v3949
        %v3958 = vtanh.pop %v3950
        %v3959 = vtanh.pop %v3951
        %v3960 = vtanh.pop %v3952
        %v3961 = vadd.f32 %v3953, 1.0
        %v3962 = vadd.f32 %v3954, 1.0
        %v3963 = vadd.f32 %v3955, 1.0
        %v3964 = vadd.f32 %v3956, 1.0
        %v3965 = vadd.f32 %v3957, 1.0
        %v3966 = vadd.f32 %v3958, 1.0
        %v3967 = vadd.f32 %v3959, 1.0
        %v3968 = vadd.f32 %v3960, 1.0
        %v3969 = vmul.f32 %v3961, 0.5
        %v3970 = vmul.f32 %v3962, 0.5
        %v3971 = vmul.f32 %v3963, 0.5
        %v3972 = vmul.f32 %v3964, 0.5
        %v3973 = vmul.f32 %v3965, 0.5
        %v3974 = vmul.f32 %v3966, 0.5
        %v3975 = vmul.f32 %v3967, 0.5
        %v3976 = vmul.f32 %v3968, 0.5
        %v3977 = vmul.f32 %v1304, %v3969
        %v3978 = vmul.f32 %v1305, %v3970
        %v3979 = vmul.f32 %v1306, %v3971
        %v3980 = vmul.f32 %v1307, %v3972
        %v3981 = vmul.f32 %v1308, %v3973
        %v3982 = vmul.f32 %v1309, %v3974
        %v3983 = vmul.f32 %v1310, %v3975
        %v3984 = vmul.f32 %v1311, %v3976
        %3985 = vrot.lane.b32.xlu0 %v1328, 32
        %v3986 = vpop.permute.xlu0 %3985
        %3987 = vrot.lane.b32.xlu0 %v1329, 32
        %v3988 = vpop.permute.xlu0 %3987
        %3989 = vrot.lane.b32.xlu0 %v1330, 32
        %v3990 = vpop.permute.xlu0 %3989
        %3991 = vrot.lane.b32.xlu0 %v1331, 32
        %v3992 = vpop.permute.xlu0 %3991
        %3993 = vrot.lane.b32.xlu0 %v1332, 32
        %v3994 = vpop.permute.xlu0 %3993
        %3995 = vrot.lane.b32.xlu0 %v1333, 32
        %v3996 = vpop.permute.xlu0 %3995
        %3997 = vrot.lane.b32.xlu0 %v1334, 32
        %v3998 = vpop.permute.xlu0 %3997
        %3999 = vrot.lane.b32.xlu0 %v1335, 32
        %v4000 = vpop.permute.xlu0 %3999
        %4001 = vrot.lane.b32.xlu0 %v1336, 32
        %v4002 = vpop.permute.xlu0 %4001
        %4003 = vrot.lane.b32.xlu0 %v1337, 32
        %v4004 = vpop.permute.xlu0 %4003
        %4005 = vrot.lane.b32.xlu0 %v1338, 32
        %v4006 = vpop.permute.xlu0 %4005
        %4007 = vrot.lane.b32.xlu0 %v1339, 32
        %v4008 = vpop.permute.xlu0 %4007
        %4009 = vrot.lane.b32.xlu0 %v1340, 32
        %v4010 = vpop.permute.xlu0 %4009
        %4011 = vrot.lane.b32.xlu0 %v1341, 32
        %v4012 = vpop.permute.xlu0 %4011
        %4013 = vrot.lane.b32.xlu0 %v1342, 32
        %v4014 = vpop.permute.xlu0 %4013
        %4015 = vrot.lane.b32.xlu0 %v1343, 32
        %v4016 = vpop.permute.xlu0 %4015
        %4017 = vrot.lane.b32.xlu0 %v1360, 32
        %v4018 = vpop.permute.xlu0 %4017
        %4019 = vrot.lane.b32.xlu0 %v1361, 32
        %v4020 = vpop.permute.xlu0 %4019
        %4021 = vrot.lane.b32.xlu0 %v1362, 32
        %v4022 = vpop.permute.xlu0 %4021
        %4023 = vrot.lane.b32.xlu0 %v1363, 32
        %v4024 = vpop.permute.xlu0 %4023
        %4025 = vrot.lane.b32.xlu0 %v1364, 32
        %v4026 = vpop.permute.xlu0 %4025
        %4027 = vrot.lane.b32.xlu0 %v1365, 32
        %v4028 = vpop.permute.xlu0 %4027
        %4029 = vrot.lane.b32.xlu0 %v1366, 32
        %v4030 = vpop.permute.xlu0 %4029
        %4031 = vrot.lane.b32.xlu0 %v1367, 32
        %v4032 = vpop.permute.xlu0 %4031
        %4033 = vrot.lane.b32.xlu0 %v1368, 32
        %v4034 = vpop.permute.xlu0 %4033
        %4035 = vrot.lane.b32.xlu0 %v1369, 32
        %v4036 = vpop.permute.xlu0 %4035
        %4037 = vrot.lane.b32.xlu0 %v1370, 32
        %v4038 = vpop.permute.xlu0 %4037
        %4039 = vrot.lane.b32.xlu0 %v1371, 32
        %v4040 = vpop.permute.xlu0 %4039
        %4041 = vrot.lane.b32.xlu0 %v1372, 32
        %v4042 = vpop.permute.xlu0 %4041
        %4043 = vrot.lane.b32.xlu0 %v1373, 32
        %v4044 = vpop.permute.xlu0 %4043
        %4045 = vrot.lane.b32.xlu0 %v1374, 32
        %v4046 = vpop.permute.xlu0 %4045
        %4047 = vrot.lane.b32.xlu0 %v1375, 32
        %v4048 = vpop.permute.xlu0 %4047
        %v4049 = vsel %vm1376, %v3986, 0
        %v4051 = vsel %vm1376, %v3988, 0
        %v4053 = vsel %vm1376, %v3990, 0
        %v4055 = vsel %vm1376, %v3992, 0
        %v4057 = vsel %vm1376, %v3994, 0
        %v4059 = vsel %vm1376, %v3996, 0
        %v4061 = vsel %vm1376, %v3998, 0
        %v4063 = vsel %vm1376, %v4000, 0
        %v4065 = vsel %vm1376, %v4002, 0
        %v4067 = vsel %vm1376, %v4004, 0
        %v4069 = vsel %vm1376, %v4006, 0
        %v4071 = vsel %vm1376, %v4008, 0
        %v4073 = vsel %vm1376, %v4010, 0
        %v4075 = vsel %vm1376, %v4012, 0
        %v4077 = vsel %vm1376, %v4014, 0
        %v4079 = vsel %vm1376, %v4016, 0
        %v4081 = vsel %vm1376, %v4018, 0
        %v4083 = vsel %vm1376, %v4020, 0
        %v4085 = vsel %vm1376, %v4022, 0
        %v4087 = vsel %vm1376, %v4024, 0
        %v4089 = vsel %vm1376, %v4026, 0
        %v4091 = vsel %vm1376, %v4028, 0
        %v4093 = vsel %vm1376, %v4030, 0
        %v4095 = vsel %vm1376, %v4032, 0
        %v4097 = vsel %vm1376, %v4034, 0
        %v4099 = vsel %vm1376, %v4036, 0
        %v4101 = vsel %vm1376, %v4038, 0
        %v4103 = vsel %vm1376, %v4040, 0
        %v4105 = vsel %vm1376, %v4042, 0
        %v4107 = vsel %vm1376, %v4044, 0
        %v4109 = vsel %vm1376, %v4046, 0
        %v4111 = vsel %vm1376, %v4048, 0
        %4113 = vmatprep.subr.mxu0 %v693
        %4114 = vmatpush1.msra.mxu0 %v692
        %4115 = vmatprep.subr.mxu0 %v695
        %4116 = vmatpush1.msra.mxu0 %v694
        %4117 = vmatprep.subr.mxu0 %v697
        %4118 = vmatpush1.msra.mxu0 %v696
        %4119 = vmatprep.subr.mxu0 %v699
        %4120 = vmatpush1.msra.mxu0 %v698
        %4121 = vmatprep.subr.mxu0 0.0
        %4122 = vmatpush1.msra.mxu0 0.0
        %4123 = vmatprep.subr.mxu0 0.0
        %4124 = vmatpush1.msra.mxu0 0.0
        %4125 = vmatprep.subr.mxu0 0.0
        %4126 = vmatpush1.msra.mxu0 0.0
        %4127 = vmatprep.subr.mxu0 0.0
        %4128 = vmatpush1.msra.mxu0 0.0
        %4129 = vmatprep.subr.mxu0 0.0
        %4130 = vmatpush1.msra.mxu0 0.0
        %4131 = vmatprep.subr.mxu0 0.0
        %4132 = vmatpush1.msra.mxu0 0.0
        %4133 = vmatprep.subr.mxu0 0.0
        %4134 = vmatpush1.msra.mxu0 0.0
        %4135 = vmatprep.subr.mxu0 0.0
        %4136 = vmatpush1.msra.mxu0 0.0
        %4137 = vmatprep.subr.mxu0 0.0
        %4138 = vmatpush1.msra.mxu0 0.0
        %4139 = vmatprep.subr.mxu0 0.0
        %4140 = vmatpush1.msra.mxu0 0.0
        %4141 = vmatprep.subr.mxu0 0.0
        %4142 = vmatpush1.msra.mxu0 0.0
        %4143 = vmatprep.subr.mxu0 0.0
        %4144 = vmatpush1.msra.mxu0 0.0
        %4145 = vmatprep.subr.mxu0 0.0
        %4146 = vmatpush1.msra.mxu0 0.0
        %4147 = vmatprep.subr.mxu0 0.0
        %4148 = vmatpush1.msra.mxu0 0.0
        %4149 = vmatprep.subr.mxu0 0.0
        %4150 = vmatpush1.msra.mxu0 0.0
        %4151 = vmatprep.subr.mxu0 0.0
        %4152 = vmatpush1.msra.mxu0 0.0
        %4153 = vmatprep.subr.mxu0 0.0
        %4154 = vmatpush1.msra.mxu0 0.0
        %4155 = vmatprep.subr.mxu0 0.0
        %4156 = vmatpush1.msra.mxu0 0.0
        %4157 = vmatprep.subr.mxu0 0.0
        %4158 = vmatpush1.msra.mxu0 0.0
        %4159 = vmatprep.subr.mxu0 0.0
        %4160 = vmatpush1.msra.mxu0 0.0
        %4161 = vmatprep.subr.mxu0 0.0
        %4162 = vmatpush1.msra.mxu0 0.0
        %4163 = vmatprep.subr.mxu0 0.0
        %4164 = vmatpush1.msra.mxu0 0.0
        %4165 = vmatprep.subr.mxu0 0.0
        %4166 = vmatpush1.msra.mxu0 0.0
        %4167 = vmatprep.subr.mxu0 0.0
        %4168 = vmatpush1.msra.mxu0 0.0
        %4169 = vmatprep.subr.mxu0 0.0
        %4170 = vmatpush1.msra.mxu0 0.0
        %4171 = vmatprep.subr.mxu0 0.0
        %4172 = vmatpush1.msra.mxu0 0.0
        %4173 = vmatprep.subr.mxu0 0.0
        %4174 = vmatpush1.msra.mxu0 0.0
        %4175 = vmatprep.subr.mxu0 0.0
        %4176 = vmatpush1.msra.mxu0 0.0
        %4177 = vmatprep.mubr.f32.mxu0 0.0
        %4178 = vmatmul.mubr.f32.gmra.mrb[0].mxu0 %v4049
        %v4179 = vpop.f32.mrb[0].mxu0
        %v4180 = vadd.f32 0.0, %v4179
        %v4181 = vpop.f32.mrb[0].mxu0
        %v4182 = vadd.f32 0.0, %v4181
        %4183 = vmatprep.mubr.f32.mxu0 0.0
        %4184 = vmatmul.mubr.f32.gmra.mrb[0].mxu0 %v4051
        %v4185 = vpop.f32.mrb[0].mxu0
        %v4186 = vadd.f32 0.0, %v4185
        %v4187 = vpop.f32.mrb[0].mxu0
        %v4188 = vadd.f32 0.0, %v4187
        %4189 = vmatprep.mubr.f32.mxu0 0.0
        %4190 = vmatmul.mubr.f32.gmra.mrb[0].mxu0 %v4053
        %v4191 = vpop.f32.mrb[0].mxu0
        %v4192 = vadd.f32 0.0, %v4191
        %v4193 = vpop.f32.mrb[0].mxu0
        %v4194 = vadd.f32 0.0, %v4193
        %4195 = vmatprep.mubr.f32.mxu0 0.0
        %4196 = vmatmul.mubr.f32.gmra.mrb[0].mxu0 %v4055
        %v4197 = vpop.f32.mrb[0].mxu0
        %v4198 = vadd.f32 0.0, %v4197
        %v4199 = vpop.f32.mrb[0].mxu0
        %v4200 = vadd.f32 0.0, %v4199
        %4201 = vmatprep.mubr.f32.mxu0 0.0
        %4202 = vmatmul.mubr.f32.gmra.mrb[0].mxu0 %v4057
        %v4203 = vpop.f32.mrb[0].mxu0
        %v4204 = vadd.f32 0.0, %v4203
        %v4205 = vpop.f32.mrb[0].mxu0
        %v4206 = vadd.f32 0.0, %v4205
        %4207 = vmatprep.mubr.f32.mxu0 0.0
        %4208 = vmatmul.mubr.f32.gmra.mrb[0].mxu0 %v4059
        %v4209 = vpop.f32.mrb[0].mxu0
        %v4210 = vadd.f32 0.0, %v4209
        %v4211 = vpop.f32.mrb[0].mxu0
        %v4212 = vadd.f32 0.0, %v4211
        %4213 = vmatprep.mubr.f32.mxu0 0.0
        %4214 = vmatmul.mubr.f32.gmra.mrb[0].mxu0 %v4061
        %v4215 = vpop.f32.mrb[0].mxu0
        %v4216 = vadd.f32 0.0, %v4215
        %v4217 = vpop.f32.mrb[0].mxu0
        %v4218 = vadd.f32 0.0, %v4217
        %4219 = vmatprep.mubr.f32.mxu0 0.0
        %4220 = vmatmul.mubr.f32.gmra.mrb[0].mxu0 %v4063
        %v4221 = vpop.f32.mrb[0].mxu0
        %v4222 = vadd.f32 0.0, %v4221
        %v4223 = vpop.f32.mrb[0].mxu0
        %v4224 = vadd.f32 0.0, %v4223
        %4225 = vmatprep.mubr.f32.mxu0 0.0
        %4226 = vmatmul.mubr.f32.gmra.mrb[0].mxu0 %v4065
        %v4227 = vpop.f32.mrb[0].mxu0
        %v4228 = vadd.f32 0.0, %v4227
        %v4229 = vpop.f32.mrb[0].mxu0
        %v4230 = vadd.f32 0.0, %v4229
        %4231 = vmatprep.mubr.f32.mxu0 0.0
        %4232 = vmatmul.mubr.f32.gmra.mrb[0].mxu0 %v4067
        %v4233 = vpop.f32.mrb[0].mxu0
        %v4234 = vadd.f32 0.0, %v4233
        %v4235 = vpop.f32.mrb[0].mxu0
        %v4236 = vadd.f32 0.0, %v4235
        %4237 = vmatprep.mubr.f32.mxu0 0.0
        %4238 = vmatmul.mubr.f32.gmra.mrb[0].mxu0 %v4069
        %v4239 = vpop.f32.mrb[0].mxu0
        %v4240 = vadd.f32 0.0, %v4239
        %v4241 = vpop.f32.mrb[0].mxu0
        %v4242 = vadd.f32 0.0, %v4241
        %4243 = vmatprep.mubr.f32.mxu0 0.0
        %4244 = vmatmul.mubr.f32.gmra.mrb[0].mxu0 %v4071
        %v4245 = vpop.f32.mrb[0].mxu0
        %v4246 = vadd.f32 0.0, %v4245
        %v4247 = vpop.f32.mrb[0].mxu0
        %v4248 = vadd.f32 0.0, %v4247
        %4249 = vmatprep.mubr.f32.mxu0 0.0
        %4250 = vmatmul.mubr.f32.gmra.mrb[0].mxu0 %v4073
        %v4251 = vpop.f32.mrb[0].mxu0
        %v4252 = vadd.f32 0.0, %v4251
        %v4253 = vpop.f32.mrb[0].mxu0
        %v4254 = vadd.f32 0.0, %v4253
        %4255 = vmatprep.mubr.f32.mxu0 0.0
        %4256 = vmatmul.mubr.f32.gmra.mrb[0].mxu0 %v4075
        %v4257 = vpop.f32.mrb[0].mxu0
        %v4258 = vadd.f32 0.0, %v4257
        %v4259 = vpop.f32.mrb[0].mxu0
        %v4260 = vadd.f32 0.0, %v4259
        %4261 = vmatprep.mubr.f32.mxu0 0.0
        %4262 = vmatmul.mubr.f32.gmra.mrb[0].mxu0 %v4077
        %v4263 = vpop.f32.mrb[0].mxu0
        %v4264 = vadd.f32 0.0, %v4263
        %v4265 = vpop.f32.mrb[0].mxu0
        %v4266 = vadd.f32 0.0, %v4265
        %4267 = vmatprep.mubr.f32.mxu0 0.0
        %4268 = vmatmul.mubr.f32.gmra.mrb[0].mxu0 %v4079
        %v4269 = vpop.f32.mrb[0].mxu0
        %v4270 = vadd.f32 0.0, %v4269
        %v4271 = vpop.f32.mrb[0].mxu0
        %v4272 = vadd.f32 0.0, %v4271
        %4273 = vmatprep.mubr.f32.mxu0 0.0
        %4274 = vmatmul.mubr.f32.gmra.mrb[0].mxu0 %v4081
        %v4275 = vpop.f32.mrb[0].mxu0
        %v4276 = vadd.f32 0.0, %v4275
        %v4277 = vpop.f32.mrb[0].mxu0
        %v4278 = vadd.f32 0.0, %v4277
        %4279 = vmatprep.mubr.f32.mxu0 0.0
        %4280 = vmatmul.mubr.f32.gmra.mrb[0].mxu0 %v4083
        %v4281 = vpop.f32.mrb[0].mxu0
        %v4282 = vadd.f32 0.0, %v4281
        %v4283 = vpop.f32.mrb[0].mxu0
        %v4284 = vadd.f32 0.0, %v4283
        %4285 = vmatprep.mubr.f32.mxu0 0.0
        %4286 = vmatmul.mubr.f32.gmra.mrb[0].mxu0 %v4085
        %v4287 = vpop.f32.mrb[0].mxu0
        %v4288 = vadd.f32 0.0, %v4287
        %v4289 = vpop.f32.mrb[0].mxu0
        %v4290 = vadd.f32 0.0, %v4289
        %4291 = vmatprep.mubr.f32.mxu0 0.0
        %4292 = vmatmul.mubr.f32.gmra.mrb[0].mxu0 %v4087
        %v4293 = vpop.f32.mrb[0].mxu0
        %v4294 = vadd.f32 0.0, %v4293
        %v4295 = vpop.f32.mrb[0].mxu0
        %v4296 = vadd.f32 0.0, %v4295
        %4297 = vmatprep.mubr.f32.mxu0 0.0
        %4298 = vmatmul.mubr.f32.gmra.mrb[0].mxu0 %v4089
        %v4299 = vpop.f32.mrb[0].mxu0
        %v4300 = vadd.f32 0.0, %v4299
        %v4301 = vpop.f32.mrb[0].mxu0
        %v4302 = vadd.f32 0.0, %v4301
        %4303 = vmatprep.mubr.f32.mxu0 0.0
        %4304 = vmatmul.mubr.f32.gmra.mrb[0].mxu0 %v4091
        %v4305 = vpop.f32.mrb[0].mxu0
        %v4306 = vadd.f32 0.0, %v4305
        %v4307 = vpop.f32.mrb[0].mxu0
        %v4308 = vadd.f32 0.0, %v4307
        %4309 = vmatprep.mubr.f32.mxu0 0.0
        %4310 = vmatmul.mubr.f32.gmra.mrb[0].mxu0 %v4093
        %v4311 = vpop.f32.mrb[0].mxu0
        %v4312 = vadd.f32 0.0, %v4311
        %v4313 = vpop.f32.mrb[0].mxu0
        %v4314 = vadd.f32 0.0, %v4313
        %4315 = vmatprep.mubr.f32.mxu0 0.0
        %4316 = vmatmul.mubr.f32.gmra.mrb[0].mxu0 %v4095
        %v4317 = vpop.f32.mrb[0].mxu0
        %v4318 = vadd.f32 0.0, %v4317
        %v4319 = vpop.f32.mrb[0].mxu0
        %v4320 = vadd.f32 0.0, %v4319
        %4321 = vmatprep.mubr.f32.mxu0 0.0
        %4322 = vmatmul.mubr.f32.gmra.mrb[0].mxu0 %v4097
        %v4323 = vpop.f32.mrb[0].mxu0
        %v4324 = vadd.f32 0.0, %v4323
        %v4325 = vpop.f32.mrb[0].mxu0
        %v4326 = vadd.f32 0.0, %v4325
        %4327 = vmatprep.mubr.f32.mxu0 0.0
        %4328 = vmatmul.mubr.f32.gmra.mrb[0].mxu0 %v4099
        %v4329 = vpop.f32.mrb[0].mxu0
        %v4330 = vadd.f32 0.0, %v4329
        %v4331 = vpop.f32.mrb[0].mxu0
        %v4332 = vadd.f32 0.0, %v4331
        %4333 = vmatprep.mubr.f32.mxu0 0.0
        %4334 = vmatmul.mubr.f32.gmra.mrb[0].mxu0 %v4101
        %v4335 = vpop.f32.mrb[0].mxu0
        %v4336 = vadd.f32 0.0, %v4335
        %v4337 = vpop.f32.mrb[0].mxu0
        %v4338 = vadd.f32 0.0, %v4337
        %4339 = vmatprep.mubr.f32.mxu0 0.0
        %4340 = vmatmul.mubr.f32.gmra.mrb[0].mxu0 %v4103
        %v4341 = vpop.f32.mrb[0].mxu0
        %v4342 = vadd.f32 0.0, %v4341
        %v4343 = vpop.f32.mrb[0].mxu0
        %v4344 = vadd.f32 0.0, %v4343
        %4345 = vmatprep.mubr.f32.mxu0 0.0
        %4346 = vmatmul.mubr.f32.gmra.mrb[0].mxu0 %v4105
        %v4347 = vpop.f32.mrb[0].mxu0
        %v4348 = vadd.f32 0.0, %v4347
        %v4349 = vpop.f32.mrb[0].mxu0
        %v4350 = vadd.f32 0.0, %v4349
        %4351 = vmatprep.mubr.f32.mxu0 0.0
        %4352 = vmatmul.mubr.f32.gmra.mrb[0].mxu0 %v4107
        %v4353 = vpop.f32.mrb[0].mxu0
        %v4354 = vadd.f32 0.0, %v4353
        %v4355 = vpop.f32.mrb[0].mxu0
        %v4356 = vadd.f32 0.0, %v4355
        %4357 = vmatprep.mubr.f32.mxu0 0.0
        %4358 = vmatmul.mubr.f32.gmra.mrb[0].mxu0 %v4109
        %v4359 = vpop.f32.mrb[0].mxu0
        %v4360 = vadd.f32 0.0, %v4359
        %v4361 = vpop.f32.mrb[0].mxu0
        %v4362 = vadd.f32 0.0, %v4361
        %4363 = vmatprep.mubr.f32.mxu0 0.0
        %4364 = vmatmul.mubr.f32.gmra.mrb[0].mxu0 %v4111
        %v4365 = vpop.f32.mrb[0].mxu0
        %v4366 = vadd.f32 0.0, %v4365
        %v4367 = vpop.f32.mrb[0].mxu0
        %v4368 = vadd.f32 0.0, %v4367
        %4369 = vdwg.mxu0
        %v4370 = vmax.f32 %v4180, %v4192
        %v4371 = vmax.f32 %v4186, %v4198
        %v4372 = vmax.f32 %v4370, %v4204
        %v4373 = vmax.f32 %v4371, %v4210
        %v4374 = vmax.f32 %v4372, %v4216
        %v4375 = vmax.f32 %v4373, %v4222
        %v4376 = vmax.f32 %v4374, %v4228
        %v4377 = vmax.f32 %v4375, %v4234
        %v4378 = vmax.f32 %v4376, %v4240
        %v4379 = vmax.f32 %v4377, %v4246
        %v4380 = vmax.f32 %v4378, %v4252
        %v4381 = vmax.f32 %v4379, %v4258
        %v4382 = vmax.f32 %v4380, %v4264
        %v4383 = vmax.f32 %v4381, %v4270
        %v4384 = vmax.f32 %v4382, %v4276
        %v4385 = vmax.f32 %v4383, %v4282
        %v4386 = vmax.f32 %v4384, %v4288
        %v4387 = vmax.f32 %v4385, %v4294
        %v4388 = vmax.f32 %v4386, %v4300
        %v4389 = vmax.f32 %v4387, %v4306
        %v4390 = vmax.f32 %v4388, %v4312
        %v4391 = vmax.f32 %v4389, %v4318
        %v4392 = vmax.f32 %v4390, %v4324
        %v4393 = vmax.f32 %v4391, %v4330
        %v4394 = vmax.f32 %v4392, %v4336
        %v4395 = vmax.f32 %v4393, %v4342
        %v4396 = vmax.f32 %v4394, %v4348
        %v4397 = vmax.f32 %v4395, %v4354
        %v4398 = vmax.f32 %v4396, %v4360
        %v4399 = vmax.f32 %v4397, %v4366
        %v4400 = vmax.f32 %v4398, %v4399
        %v4401 = vrot.slane %v4400, 4
        %v4402 = vmax.f32 %v4400, %v4401
        %v4403 = vrot.slane %v4402, 2
        %v4404 = vmax.f32 %v4402, %v4403
        %v4405 = vrot.slane %v4404, 1
        %v4406 = vmax.f32 %v4404, %v4405
        %v4407 = vmax.f32 %v4182, %v4194
        %v4408 = vmax.f32 %v4188, %v4200
        %v4409 = vmax.f32 %v4407, %v4206
        %v4410 = vmax.f32 %v4408, %v4212
        %v4411 = vmax.f32 %v4409, %v4218
        %v4412 = vmax.f32 %v4410, %v4224
        %v4413 = vmax.f32 %v4411, %v4230
        %v4414 = vmax.f32 %v4412, %v4236
        %v4415 = vmax.f32 %v4413, %v4242
        %v4416 = vmax.f32 %v4414, %v4248
        %v4417 = vmax.f32 %v4415, %v4254
        %v4418 = vmax.f32 %v4416, %v4260
        %v4419 = vmax.f32 %v4417, %v4266
        %v4420 = vmax.f32 %v4418, %v4272
        %v4421 = vmax.f32 %v4419, %v4278
        %v4422 = vmax.f32 %v4420, %v4284
        %v4423 = vmax.f32 %v4421, %v4290
        %v4424 = vmax.f32 %v4422, %v4296
        %v4425 = vmax.f32 %v4423, %v4302
        %v4426 = vmax.f32 %v4424, %v4308
        %v4427 = vmax.f32 %v4425, %v4314
        %v4428 = vmax.f32 %v4426, %v4320
        %v4429 = vmax.f32 %v4427, %v4326
        %v4430 = vmax.f32 %v4428, %v4332
        %v4431 = vmax.f32 %v4429, %v4338
        %v4432 = vmax.f32 %v4430, %v4344
        %v4433 = vmax.f32 %v4431, %v4350
        %v4434 = vmax.f32 %v4432, %v4356
        %v4435 = vmax.f32 %v4433, %v4362
        %v4436 = vmax.f32 %v4434, %v4368
        %v4437 = vmax.f32 %v4435, %v4436
        %v4438 = vrot.slane %v4437, 4
        %v4439 = vmax.f32 %v4437, %v4438
        %v4440 = vrot.slane %v4439, 2
        %v4441 = vmax.f32 %v4439, %v4440
        %v4442 = vrot.slane %v4441, 1
        %v4443 = vmax.f32 %v4441, %v4442
        %v4444 = vsub.f32 %v4180, %v4406
        %v4445 = vsub.f32 %v4182, %v4443
        %v4446 = vsub.f32 %v4186, %v4406
        %v4447 = vsub.f32 %v4188, %v4443
        %v4448 = vsub.f32 %v4192, %v4406
        %v4449 = vsub.f32 %v4194, %v4443
        %v4450 = vsub.f32 %v4198, %v4406
        %v4451 = vsub.f32 %v4200, %v4443
        %v4452 = vsub.f32 %v4204, %v4406
        %v4453 = vsub.f32 %v4206, %v4443
        %v4454 = vsub.f32 %v4210, %v4406
        %v4455 = vsub.f32 %v4212, %v4443
        %v4456 = vsub.f32 %v4216, %v4406
        %v4457 = vsub.f32 %v4218, %v4443
        %v4458 = vsub.f32 %v4222, %v4406
        %v4459 = vsub.f32 %v4224, %v4443
        %v4460 = vsub.f32 %v4228, %v4406
        %v4461 = vsub.f32 %v4230, %v4443
        %v4462 = vsub.f32 %v4234, %v4406
        %v4463 = vsub.f32 %v4236, %v4443
        %v4464 = vsub.f32 %v4240, %v4406
        %v4465 = vsub.f32 %v4242, %v4443
        %v4466 = vsub.f32 %v4246, %v4406
        %v4467 = vsub.f32 %v4248, %v4443
        %v4468 = vsub.f32 %v4252, %v4406
        %v4469 = vsub.f32 %v4254, %v4443
        %v4470 = vsub.f32 %v4258, %v4406
        %v4471 = vsub.f32 %v4260, %v4443
        %v4472 = vsub.f32 %v4264, %v4406
        %v4473 = vsub.f32 %v4266, %v4443
        %v4474 = vsub.f32 %v4270, %v4406
        %v4475 = vsub.f32 %v4272, %v4443
        %v4476 = vsub.f32 %v4276, %v4406
        %v4477 = vsub.f32 %v4278, %v4443
        %v4478 = vsub.f32 %v4282, %v4406
        %v4479 = vsub.f32 %v4284, %v4443
        %v4480 = vsub.f32 %v4288, %v4406
        %v4481 = vsub.f32 %v4290, %v4443
        %v4482 = vsub.f32 %v4294, %v4406
        %v4483 = vsub.f32 %v4296, %v4443
        %v4484 = vsub.f32 %v4300, %v4406
        %v4485 = vsub.f32 %v4302, %v4443
        %v4486 = vsub.f32 %v4306, %v4406
        %v4487 = vsub.f32 %v4308, %v4443
        %v4488 = vsub.f32 %v4312, %v4406
        %v4489 = vsub.f32 %v4314, %v4443
        %v4490 = vsub.f32 %v4318, %v4406
        %v4491 = vsub.f32 %v4320, %v4443
        %v4492 = vsub.f32 %v4324, %v4406
        %v4493 = vsub.f32 %v4326, %v4443
        %v4494 = vsub.f32 %v4330, %v4406
        %v4495 = vsub.f32 %v4332, %v4443
        %v4496 = vsub.f32 %v4336, %v4406
        %v4497 = vsub.f32 %v4338, %v4443
        %v4498 = vsub.f32 %v4342, %v4406
        %v4499 = vsub.f32 %v4344, %v4443
        %v4500 = vsub.f32 %v4348, %v4406
        %v4501 = vsub.f32 %v4350, %v4443
        %v4502 = vsub.f32 %v4354, %v4406
        %v4503 = vsub.f32 %v4356, %v4443
        %v4504 = vsub.f32 %v4360, %v4406
        %v4505 = vsub.f32 %v4362, %v4443
        %v4506 = vsub.f32 %v4366, %v4406
        %v4507 = vsub.f32 %v4368, %v4443
        %v4508 = vmul.f32 %v4444, 1.442695
        %v4509 = vpow.pop %v4508
        %v4510 = vmul.f32 %v4445, 1.442695
        %v4511 = vpow.pop %v4510
        %v4512 = vmul.f32 %v4446, 1.442695
        %v4513 = vpow.pop %v4512
        %v4514 = vmul.f32 %v4447, 1.442695
        %v4515 = vpow.pop %v4514
        %v4516 = vmul.f32 %v4448, 1.442695
        %v4517 = vpow.pop %v4516
        %v4518 = vmul.f32 %v4449, 1.442695
        %v4519 = vpow.pop %v4518
        %v4520 = vmul.f32 %v4450, 1.442695
        %v4521 = vpow.pop %v4520
        %v4522 = vmul.f32 %v4451, 1.442695
        %v4523 = vpow.pop %v4522
        %v4524 = vmul.f32 %v4452, 1.442695
        %v4525 = vpow.pop %v4524
        %v4526 = vmul.f32 %v4453, 1.442695
        %v4527 = vpow.pop %v4526
        %v4528 = vmul.f32 %v4454, 1.442695
        %v4529 = vpow.pop %v4528
        %v4530 = vmul.f32 %v4455, 1.442695
        %v4531 = vpow.pop %v4530
        %v4532 = vmul.f32 %v4456, 1.442695
        %v4533 = vpow.pop %v4532
        %v4534 = vmul.f32 %v4457, 1.442695
        %v4535 = vpow.pop %v4534
        %v4536 = vmul.f32 %v4458, 1.442695
        %v4537 = vpow.pop %v4536
        %v4538 = vmul.f32 %v4459, 1.442695
        %v4539 = vpow.pop %v4538
        %v4540 = vmul.f32 %v4460, 1.442695
        %v4541 = vpow.pop %v4540
        %v4542 = vmul.f32 %v4461, 1.442695
        %v4543 = vpow.pop %v4542
        %v4544 = vmul.f32 %v4462, 1.442695
        %v4545 = vpow.pop %v4544
        %v4546 = vmul.f32 %v4463, 1.442695
        %v4547 = vpow.pop %v4546
        %v4548 = vmul.f32 %v4464, 1.442695
        %v4549 = vpow.pop %v4548
        %v4550 = vmul.f32 %v4465, 1.442695
        %v4551 = vpow.pop %v4550
        %v4552 = vmul.f32 %v4466, 1.442695
        %v4553 = vpow.pop %v4552
        %v4554 = vmul.f32 %v4467, 1.442695
        %v4555 = vpow.pop %v4554
        %v4556 = vmul.f32 %v4468, 1.442695
        %v4557 = vpow.pop %v4556
        %v4558 = vmul.f32 %v4469, 1.442695
        %v4559 = vpow.pop %v4558
        %v4560 = vmul.f32 %v4470, 1.442695
        %v4561 = vpow.pop %v4560
        %v4562 = vmul.f32 %v4471, 1.442695
        %v4563 = vpow.pop %v4562
        %v4564 = vmul.f32 %v4472, 1.442695
        %v4565 = vpow.pop %v4564
        %v4566 = vmul.f32 %v4473, 1.442695
        %v4567 = vpow.pop %v4566
        %v4568 = vmul.f32 %v4474, 1.442695
        %v4569 = vpow.pop %v4568
        %v4570 = vmul.f32 %v4475, 1.442695
        %v4571 = vpow.pop %v4570
        %v4572 = vmul.f32 %v4476, 1.442695
        %v4573 = vpow.pop %v4572
        %v4574 = vmul.f32 %v4477, 1.442695
        %v4575 = vpow.pop %v4574
        %v4576 = vmul.f32 %v4478, 1.442695
        %v4577 = vpow.pop %v4576
        %v4578 = vmul.f32 %v4479, 1.442695
        %v4579 = vpow.pop %v4578
        %v4580 = vmul.f32 %v4480, 1.442695
        %v4581 = vpow.pop %v4580
        %v4582 = vmul.f32 %v4481, 1.442695
        %v4583 = vpow.pop %v4582
        %v4584 = vmul.f32 %v4482, 1.442695
        %v4585 = vpow.pop %v4584
        %v4586 = vmul.f32 %v4483, 1.442695
        %v4587 = vpow.pop %v4586
        %v4588 = vmul.f32 %v4484, 1.442695
        %v4589 = vpow.pop %v4588
        %v4590 = vmul.f32 %v4485, 1.442695
        %v4591 = vpow.pop %v4590
        %v4592 = vmul.f32 %v4486, 1.442695
        %v4593 = vpow.pop %v4592
        %v4594 = vmul.f32 %v4487, 1.442695
        %v4595 = vpow.pop %v4594
        %v4596 = vmul.f32 %v4488, 1.442695
        %v4597 = vpow.pop %v4596
        %v4598 = vmul.f32 %v4489, 1.442695
        %v4599 = vpow.pop %v4598
        %v4600 = vmul.f32 %v4490, 1.442695
        %v4601 = vpow.pop %v4600
        %v4602 = vmul.f32 %v4491, 1.442695
        %v4603 = vpow.pop %v4602
        %v4604 = vmul.f32 %v4492, 1.442695
        %v4605 = vpow.pop %v4604
        %v4606 = vmul.f32 %v4493, 1.442695
        %v4607 = vpow.pop %v4606
        %v4608 = vmul.f32 %v4494, 1.442695
        %v4609 = vpow.pop %v4608
        %v4610 = vmul.f32 %v4495, 1.442695
        %v4611 = vpow.pop %v4610
        %v4612 = vmul.f32 %v4496, 1.442695
        %v4613 = vpow.pop %v4612
        %v4614 = vmul.f32 %v4497, 1.442695
        %v4615 = vpow.pop %v4614
        %v4616 = vmul.f32 %v4498, 1.442695
        %v4617 = vpow.pop %v4616
        %v4618 = vmul.f32 %v4499, 1.442695
        %v4619 = vpow.pop %v4618
        %v4620 = vmul.f32 %v4500, 1.442695
        %v4621 = vpow.pop %v4620
        %v4622 = vmul.f32 %v4501, 1.442695
        %v4623 = vpow.pop %v4622
        %v4624 = vmul.f32 %v4502, 1.442695
        %v4625 = vpow.pop %v4624
        %v4626 = vmul.f32 %v4503, 1.442695
        %v4627 = vpow.pop %v4626
        %v4628 = vmul.f32 %v4504, 1.442695
        %v4629 = vpow.pop %v4628
        %v4630 = vmul.f32 %v4505, 1.442695
        %v4631 = vpow.pop %v4630
        %v4632 = vmul.f32 %v4506, 1.442695
        %v4633 = vpow.pop %v4632
        %v4634 = vmul.f32 %v4507, 1.442695
        %v4635 = vpow.pop %v4634
        %v4636 = vadd.f32 %v4509, %v4513
        %v4637 = vadd.f32 %v4636, %v4517
        %v4638 = vadd.f32 %v4637, %v4521
        %v4639 = vadd.f32 %v4638, %v4525
        %v4640 = vadd.f32 %v4639, %v4529
        %v4641 = vadd.f32 %v4640, %v4533
        %v4642 = vadd.f32 %v4641, %v4537
        %v4643 = vadd.f32 %v4642, %v4541
        %v4644 = vadd.f32 %v4643, %v4545
        %v4645 = vadd.f32 %v4644, %v4549
        %v4646 = vadd.f32 %v4645, %v4553
        %v4647 = vadd.f32 %v4646, %v4557
        %v4648 = vadd.f32 %v4647, %v4561
        %v4649 = vadd.f32 %v4648, %v4565
        %v4650 = vadd.f32 %v4649, %v4569
        %v4651 = vadd.f32 %v4650, %v4573
        %v4652 = vadd.f32 %v4651, %v4577
        %v4653 = vadd.f32 %v4652, %v4581
        %v4654 = vadd.f32 %v4653, %v4585
        %v4655 = vadd.f32 %v4654, %v4589
        %v4656 = vadd.f32 %v4655, %v4593
        %v4657 = vadd.f32 %v4656, %v4597
        %v4658 = vadd.f32 %v4657, %v4601
        %v4659 = vadd.f32 %v4658, %v4605
        %v4660 = vadd.f32 %v4659, %v4609
        %v4661 = vadd.f32 %v4660, %v4613
        %v4662 = vadd.f32 %v4661, %v4617
        %v4663 = vadd.f32 %v4662, %v4621
        %v4664 = vadd.f32 %v4663, %v4625
        %v4665 = vadd.f32 %v4664, %v4629
        %v4666 = vadd.f32 %v4665, %v4633
        %v4667 = vrot.slane %v4666, 4
        %v4668 = vadd.f32 %v4666, %v4667
        %v4669 = vrot.slane %v4668, 2
        %v4670 = vadd.f32 %v4668, %v4669
        %v4671 = vrot.slane %v4670, 1
        %v4672 = vadd.f32 %v4670, %v4671
        %v4673 = vadd.f32 %v4511, %v4515
        %v4674 = vadd.f32 %v4673, %v4519
        %v4675 = vadd.f32 %v4674, %v4523
        %v4676 = vadd.f32 %v4675, %v4527
        %v4677 = vadd.f32 %v4676, %v4531
        %v4678 = vadd.f32 %v4677, %v4535
        %v4679 = vadd.f32 %v4678, %v4539
        %v4680 = vadd.f32 %v4679, %v4543
        %v4681 = vadd.f32 %v4680, %v4547
        %v4682 = vadd.f32 %v4681, %v4551
        %v4683 = vadd.f32 %v4682, %v4555
        %v4684 = vadd.f32 %v4683, %v4559
        %v4685 = vadd.f32 %v4684, %v4563
        %v4686 = vadd.f32 %v4685, %v4567
        %v4687 = vadd.f32 %v4686, %v4571
        %v4688 = vadd.f32 %v4687, %v4575
        %v4689 = vadd.f32 %v4688, %v4579
        %v4690 = vadd.f32 %v4689, %v4583
        %v4691 = vadd.f32 %v4690, %v4587
        %v4692 = vadd.f32 %v4691, %v4591
        %v4693 = vadd.f32 %v4692, %v4595
        %v4694 = vadd.f32 %v4693, %v4599
        %v4695 = vadd.f32 %v4694, %v4603
        %v4696 = vadd.f32 %v4695, %v4607
        %v4697 = vadd.f32 %v4696, %v4611
        %v4698 = vadd.f32 %v4697, %v4615
        %v4699 = vadd.f32 %v4698, %v4619
        %v4700 = vadd.f32 %v4699, %v4623
        %v4701 = vadd.f32 %v4700, %v4627
        %v4702 = vadd.f32 %v4701, %v4631
        %v4703 = vadd.f32 %v4702, %v4635
        %v4704 = vrot.slane %v4703, 4
        %v4705 = vadd.f32 %v4703, %v4704
        %v4706 = vrot.slane %v4705, 2
        %v4707 = vadd.f32 %v4705, %v4706
        %v4708 = vrot.slane %v4707, 1
        %v4709 = vadd.f32 %v4707, %v4708
        %4710 = vmatprep.subr.mxu0 %v4511
        %4711 = vmatpush1.msra.mxu0 %v4509
        %4712 = vmatprep.subr.mxu0 %v4515
        %4713 = vmatpush1.msra.mxu0 %v4513
        %4714 = vmatprep.subr.mxu0 %v4519
        %4715 = vmatpush1.msra.mxu0 %v4517
        %4716 = vmatprep.subr.mxu0 %v4523
        %4717 = vmatpush1.msra.mxu0 %v4521
        %4718 = vmatprep.subr.mxu0 %v4527
        %4719 = vmatpush1.msra.mxu0 %v4525
        %4720 = vmatprep.subr.mxu0 %v4531
        %4721 = vmatpush1.msra.mxu0 %v4529
        %4722 = vmatprep.subr.mxu0 %v4535
        %4723 = vmatpush1.msra.mxu0 %v4533
        %4724 = vmatprep.subr.mxu0 %v4539
        %4725 = vmatpush1.msra.mxu0 %v4537
        %4726 = vmatprep.subr.mxu0 %v4543
        %4727 = vmatpush1.msra.mxu0 %v4541
        %4728 = vmatprep.subr.mxu0 %v4547
        %4729 = vmatpush1.msra.mxu0 %v4545
        %4730 = vmatprep.subr.mxu0 %v4551
        %4731 = vmatpush1.msra.mxu0 %v4549
        %4732 = vmatprep.subr.mxu0 %v4555
        %4733 = vmatpush1.msra.mxu0 %v4553
        %4734 = vmatprep.subr.mxu0 %v4559
        %4735 = vmatpush1.msra.mxu0 %v4557
        %4736 = vmatprep.subr.mxu0 %v4563
        %4737 = vmatpush1.msra.mxu0 %v4561
        %4738 = vmatprep.subr.mxu0 %v4567
        %4739 = vmatpush1.msra.mxu0 %v4565
        %4740 = vmatprep.subr.mxu0 %v4571
        %4741 = vmatpush1.msra.mxu0 %v4569
        %4742 = vmatprep.subr.mxu0 %v4575
        %4743 = vmatpush1.msra.mxu0 %v4573
        %4744 = vmatprep.subr.mxu0 %v4579
        %4745 = vmatpush1.msra.mxu0 %v4577
        %4746 = vmatprep.subr.mxu0 %v4583
        %4747 = vmatpush1.msra.mxu0 %v4581
        %4748 = vmatprep.subr.mxu0 %v4587
        %4749 = vmatpush1.msra.mxu0 %v4585
        %4750 = vmatprep.subr.mxu0 %v4591
        %4751 = vmatpush1.msra.mxu0 %v4589
        %4752 = vmatprep.subr.mxu0 %v4595
        %4753 = vmatpush1.msra.mxu0 %v4593
        %4754 = vmatprep.subr.mxu0 %v4599
        %4755 = vmatpush1.msra.mxu0 %v4597
        %4756 = vmatprep.subr.mxu0 %v4603
        %4757 = vmatpush1.msra.mxu0 %v4601
        %4758 = vmatprep.subr.mxu0 %v4607
        %4759 = vmatpush1.msra.mxu0 %v4605
        %4760 = vmatprep.subr.mxu0 %v4611
        %4761 = vmatpush1.msra.mxu0 %v4609
        %4762 = vmatprep.subr.mxu0 %v4615
        %4763 = vmatpush1.msra.mxu0 %v4613
        %4764 = vmatprep.subr.mxu0 %v4619
        %4765 = vmatpush1.msra.mxu0 %v4617
        %4766 = vmatprep.subr.mxu0 %v4623
        %4767 = vmatpush1.msra.mxu0 %v4621
        %4768 = vmatprep.subr.mxu0 %v4627
        %4769 = vmatpush1.msra.mxu0 %v4625
        %4770 = vmatprep.subr.mxu0 %v4631
        %4771 = vmatpush1.msra.mxu0 %v4629
        %4772 = vmatprep.subr.mxu0 %v4635
        %4773 = vmatpush1.msra.mxu0 %v4633
        %4774 = vmatprep.mubr.f32.mxu0 %v3978
        %4775 = vmatmul.mubr.f32.gmra.mrb[0].mxu0 %v3977
        %v4776 = vpop.f32.mrb[0].mxu0
        %v4777 = vadd.f32 0.0, %v4776
        %v4778 = vpop.f32.mrb[0].mxu0
        %v4779 = vadd.f32 0.0, %v4778
        %4780 = vmatprep.mubr.f32.mxu0 %v3980
        %4781 = vmatmul.mubr.f32.gmra.mrb[0].mxu0 %v3979
        %v4782 = vpop.f32.mrb[0].mxu0
        %v4783 = vadd.f32 0.0, %v4782
        %v4784 = vpop.f32.mrb[0].mxu0
        %v4785 = vadd.f32 0.0, %v4784
        %4786 = vmatprep.mubr.f32.mxu0 %v3982
        %4787 = vmatmul.mubr.f32.gmra.mrb[0].mxu0 %v3981
        %v4788 = vpop.f32.mrb[0].mxu0
        %v4789 = vadd.f32 0.0, %v4788
        %v4790 = vpop.f32.mrb[0].mxu0
        %v4791 = vadd.f32 0.0, %v4790
        %4792 = vmatprep.mubr.f32.mxu0 %v3984
        %4793 = vmatmul.mubr.f32.gmra.mrb[0].mxu0 %v3983
        %v4794 = vpop.f32.mrb[0].mxu0
        %v4795 = vadd.f32 0.0, %v4794
        %v4796 = vpop.f32.mrb[0].mxu0
        %v4797 = vadd.f32 0.0, %v4796
        %4798 = vdwg.mxu0
        %v4799 = vrcp.pop %v4672
        %v4800 = vrcp.pop %v4709
        %v4801 = vmul.f32 %v4777, %v4799
        %v4802 = vmul.f32 %v4779, %v4800
        %v4803 = vmul.f32 %v4783, %v4799
        %v4804 = vmul.f32 %v4785, %v4800
        %v4805 = vmul.f32 %v4789, %v4799
        %v4806 = vmul.f32 %v4791, %v4800
        %v4807 = vmul.f32 %v4795, %v4799
        %v4808 = vmul.f32 %v4797, %v4800
        %4809 = vst [vmem:[#allocation2 + $0xc0] sm:$0xff] %v4801
        %4810 = vst [vmem:[#allocation2 + $0xc8] sm:$0xff] %v4802
        %4811 = vst [vmem:[#allocation2 + $0xd0] sm:$0xff] %v4803
        %4812 = vst [vmem:[#allocation2 + $0xd8] sm:$0xff] %v4804
        %4813 = vst [vmem:[#allocation2 + $0xe0] sm:$0xff] %v4805
        %4814 = vst [vmem:[#allocation2 + $0xe8] sm:$0xff] %v4806
        %4815 = vst [vmem:[#allocation2 + $0xf0] sm:$0xff] %v4807
        %4816 = vst [vmem:[#allocation2 + $0xf8] sm:$0xff] %v4808
        %s4817 = scalar_lea.vmem [#allocation10], 384
        %v4818 = vld [vmem:[%s4817] sm:$0xff]
        %v4819 = vld [vmem:[%s4817 + $0x8] sm:$0xff]
        %v4820 = vld [vmem:[%s4817 + $0x10] sm:$0xff]
        %v4821 = vld [vmem:[%s4817 + $0x18] sm:$0xff]
        %v4822 = vld [vmem:[%s4817 + $0x20] sm:$0xff]
        %v4823 = vld [vmem:[%s4817 + $0x28] sm:$0xff]
        %v4824 = vld [vmem:[%s4817 + $0x30] sm:$0xff]
        %v4825 = vld [vmem:[%s4817 + $0x38] sm:$0xff]
        %v4826 = vld [vmem:[%s4817 + $0x40] sm:$0xff]
        %v4827 = vld [vmem:[%s4817 + $0x48] sm:$0xff]
        %v4828 = vld [vmem:[%s4817 + $0x50] sm:$0xff]
        %v4829 = vld [vmem:[%s4817 + $0x58] sm:$0xff]
        %v4830 = vld [vmem:[%s4817 + $0x60] sm:$0xff]
        %v4831 = vld [vmem:[%s4817 + $0x68] sm:$0xff]
        %v4832 = vld [vmem:[%s4817 + $0x70] sm:$0xff]
        %v4833 = vld [vmem:[%s4817 + $0x78] sm:$0xff]
        %v4834 = vld [vmem:[#allocation2] sm:$0xff]
        %v4835 = vld [vmem:[#allocation2 + $0x8] sm:$0xff]
        %v4836 = vld [vmem:[#allocation2 + $0x10] sm:$0xff]
        %v4837 = vld [vmem:[#allocation2 + $0x18] sm:$0xff]
        %v4838 = vld [vmem:[#allocation2 + $0x20] sm:$0xff]
        %v4839 = vld [vmem:[#allocation2 + $0x28] sm:$0xff]
        %v4840 = vld [vmem:[#allocation2 + $0x30] sm:$0xff]
        %v4841 = vld [vmem:[#allocation2 + $0x38] sm:$0xff]
        %v4842 = vld [vmem:[#allocation2 + $0x40] sm:$0xff]
        %v4843 = vld [vmem:[#allocation2 + $0x48] sm:$0xff]
        %v4844 = vld [vmem:[#allocation2 + $0x50] sm:$0xff]
        %v4845 = vld [vmem:[#allocation2 + $0x58] sm:$0xff]
        %v4846 = vld [vmem:[#allocation2 + $0x60] sm:$0xff]
        %v4847 = vld [vmem:[#allocation2 + $0x68] sm:$0xff]
        %v4848 = vld [vmem:[#allocation2 + $0x70] sm:$0xff]
        %v4849 = vld [vmem:[#allocation2 + $0x78] sm:$0xff]
        %v4850 = vld [vmem:[#allocation2 + $0x80] sm:$0xff]
        %v4851 = vld [vmem:[#allocation2 + $0x88] sm:$0xff]
        %v4852 = vld [vmem:[#allocation2 + $0x90] sm:$0xff]
        %v4853 = vld [vmem:[#allocation2 + $0x98] sm:$0xff]
        %v4854 = vld [vmem:[#allocation2 + $0xa0] sm:$0xff]
        %v4855 = vld [vmem:[#allocation2 + $0xa8] sm:$0xff]
        %v4856 = vld [vmem:[#allocation2 + $0xb0] sm:$0xff]
        %v4857 = vld [vmem:[#allocation2 + $0xb8] sm:$0xff]
        %v4858 = vld [vmem:[#allocation2 + $0xc0] sm:$0xff]
        %v4859 = vld [vmem:[#allocation2 + $0xc8] sm:$0xff]
        %v4860 = vld [vmem:[#allocation2 + $0xd0] sm:$0xff]
        %v4861 = vld [vmem:[#allocation2 + $0xd8] sm:$0xff]
        %v4862 = vld [vmem:[#allocation2 + $0xe0] sm:$0xff]
        %v4863 = vld [vmem:[#allocation2 + $0xe8] sm:$0xff]
        %v4864 = vld [vmem:[#allocation2 + $0xf0] sm:$0xff]
        %v4865 = vld [vmem:[#allocation2 + $0xf8] sm:$0xff]
        %v4866 = vld [vmem:[%s4] sm:$0xff]
        %v4867 = vld [vmem:[%s4 + $0x8] sm:$0xff]
        %v4868 = vld [vmem:[%s4 + $0x10] sm:$0xff]
        %v4869 = vld [vmem:[%s4 + $0x18] sm:$0xff]
        %v4870 = vld [vmem:[%s4 + $0x20] sm:$0xff]
        %v4871 = vld [vmem:[%s4 + $0x28] sm:$0xff]
        %v4872 = vld [vmem:[%s4 + $0x30] sm:$0xff]
        %v4873 = vld [vmem:[%s4 + $0x38] sm:$0xff]
        %v4874 = vld [vmem:[%s4 + $0x40] sm:$0xff]
        %v4875 = vld [vmem:[%s4 + $0x48] sm:$0xff]
        %v4876 = vld [vmem:[%s4 + $0x50] sm:$0xff]
        %v4877 = vld [vmem:[%s4 + $0x58] sm:$0xff]
        %v4878 = vld [vmem:[%s4 + $0x60] sm:$0xff]
        %v4879 = vld [vmem:[%s4 + $0x68] sm:$0xff]
        %v4880 = vld [vmem:[%s4 + $0x70] sm:$0xff]
        %v4881 = vld [vmem:[%s4 + $0x78] sm:$0xff]
        %4883 = vset.pattern.permute.xlu0 3
        %4884 = vperm.xlu0 %4883, %v4866
        %v4885 = vpop.permute.xlu0 %4884
        %4888 = vset.pattern.permute.xlu0 3
        %4889 = vperm.xlu0 %4888, %v4867
        %v4890 = vpop.permute.xlu0 %4889
        %4893 = vset.pattern.permute.xlu0 3
        %4894 = vperm.xlu0 %4893, %v4868
        %v4895 = vpop.permute.xlu0 %4894
        %4898 = vset.pattern.permute.xlu0 3
        %4899 = vperm.xlu0 %4898, %v4869
        %v4900 = vpop.permute.xlu0 %4899
        %4903 = vset.pattern.permute.xlu0 3
        %4904 = vperm.xlu0 %4903, %v4870
        %v4905 = vpop.permute.xlu0 %4904
        %4908 = vset.pattern.permute.xlu0 3
        %4909 = vperm.xlu0 %4908, %v4871
        %v4910 = vpop.permute.xlu0 %4909
        %4913 = vset.pattern.permute.xlu0 3
        %4914 = vperm.xlu0 %4913, %v4872
        %v4915 = vpop.permute.xlu0 %4914
        %4918 = vset.pattern.permute.xlu0 3
        %4919 = vperm.xlu0 %4918, %v4873
        %v4920 = vpop.permute.xlu0 %4919
        %4923 = vset.pattern.permute.xlu0 3
        %4924 = vperm.xlu0 %4923, %v4874
        %v4925 = vpop.permute.xlu0 %4924
        %4928 = vset.pattern.permute.xlu0 3
        %4929 = vperm.xlu0 %4928, %v4875
        %v4930 = vpop.permute.xlu0 %4929
        %4933 = vset.pattern.permute.xlu0 3
        %4934 = vperm.xlu0 %4933, %v4876
        %v4935 = vpop.permute.xlu0 %4934
        %4938 = vset.pattern.permute.xlu0 3
        %4939 = vperm.xlu0 %4938, %v4877
        %v4940 = vpop.permute.xlu0 %4939
        %4943 = vset.pattern.permute.xlu0 3
        %4944 = vperm.xlu0 %4943, %v4878
        %v4945 = vpop.permute.xlu0 %4944
        %4948 = vset.pattern.permute.xlu0 3
        %4949 = vperm.xlu0 %4948, %v4879
        %v4950 = vpop.permute.xlu0 %4949
        %4953 = vset.pattern.permute.xlu0 3
        %4954 = vperm.xlu0 %4953, %v4880
        %v4955 = vpop.permute.xlu0 %4954
        %4958 = vset.pattern.permute.xlu0 3
        %4959 = vperm.xlu0 %4958, %v4881
        %v4960 = vpop.permute.xlu0 %4959
        %4962 = vmatprep.subr.mxu0 %v4835
        %4963 = vmatpush1.msra.mxu0 %v4834
        %4964 = vmatprep.subr.mxu0 %v4837
        %4965 = vmatpush1.msra.mxu0 %v4836
        %4966 = vmatprep.subr.mxu0 %v4839
        %4967 = vmatpush1.msra.mxu0 %v4838
        %4968 = vmatprep.subr.mxu0 %v4841
        %4969 = vmatpush1.msra.mxu0 %v4840
        %4970 = vmatprep.subr.mxu0 %v4843
        %4971 = vmatpush1.msra.mxu0 %v4842
        %4972 = vmatprep.subr.mxu0 %v4845
        %4973 = vmatpush1.msra.mxu0 %v4844
        %4974 = vmatprep.subr.mxu0 %v4847
        %4975 = vmatpush1.msra.mxu0 %v4846
        %4976 = vmatprep.subr.mxu0 %v4849
        %4977 = vmatpush1.msra.mxu0 %v4848
        %4978 = vmatprep.subr.mxu0 %v4851
        %4979 = vmatpush1.msra.mxu0 %v4850
        %4980 = vmatprep.subr.mxu0 %v4853
        %4981 = vmatpush1.msra.mxu0 %v4852
        %4982 = vmatprep.subr.mxu0 %v4855
        %4983 = vmatpush1.msra.mxu0 %v4854
        %4984 = vmatprep.subr.mxu0 %v4857
        %4985 = vmatpush1.msra.mxu0 %v4856
        %4986 = vmatprep.subr.mxu0 %v4859
        %4987 = vmatpush1.msra.mxu0 %v4858
        %4988 = vmatprep.subr.mxu0 %v4861
        %4989 = vmatpush1.msra.mxu0 %v4860
        %4990 = vmatprep.subr.mxu0 %v4863
        %4991 = vmatpush1.msra.mxu0 %v4862
        %4992 = vmatprep.subr.mxu0 %v4865
        %4993 = vmatpush1.msra.mxu0 %v4864
        %4994 = vmatprep.subr.mxu0 0.0
        %4995 = vmatpush1.msra.mxu0 0.0
        %4996 = vmatprep.subr.mxu0 0.0
        %4997 = vmatpush1.msra.mxu0 0.0
        %4998 = vmatprep.subr.mxu0 0.0
        %4999 = vmatpush1.msra.mxu0 0.0
        %5000 = vmatprep.subr.mxu0 0.0
        %5001 = vmatpush1.msra.mxu0 0.0
        %5002 = vmatprep.subr.mxu0 0.0
        %5003 = vmatpush1.msra.mxu0 0.0
        %5004 = vmatprep.subr.mxu0 0.0
        %5005 = vmatpush1.msra.mxu0 0.0
        %5006 = vmatprep.subr.mxu0 0.0
        %5007 = vmatpush1.msra.mxu0 0.0
        %5008 = vmatprep.subr.mxu0 0.0
        %5009 = vmatpush1.msra.mxu0 0.0
        %5010 = vmatprep.subr.mxu0 0.0
        %5011 = vmatpush1.msra.mxu0 0.0
        %5012 = vmatprep.subr.mxu0 0.0
        %5013 = vmatpush1.msra.mxu0 0.0
        %5014 = vmatprep.subr.mxu0 0.0
        %5015 = vmatpush1.msra.mxu0 0.0
        %5016 = vmatprep.subr.mxu0 0.0
        %5017 = vmatpush1.msra.mxu0 0.0
        %5018 = vmatprep.subr.mxu0 0.0
        %5019 = vmatpush1.msra.mxu0 0.0
        %5020 = vmatprep.subr.mxu0 0.0
        %5021 = vmatpush1.msra.mxu0 0.0
        %5022 = vmatprep.subr.mxu0 0.0
        %5023 = vmatpush1.msra.mxu0 0.0
        %5024 = vmatprep.subr.mxu0 0.0
        %5025 = vmatpush1.msra.mxu0 0.0
        %5026 = vmatprep.mubr.f32.mxu0 0.0
        %5027 = vmatmul.mubr.f32.gmra.mrb[0].mxu0 %v4818
        %v5028 = vpop.f32.mrb[0].mxu0
        %v5029 = vadd.f32 %v4885, %v5028
        %v5030 = vpop.f32.mrb[0].mxu0
        %v5031 = vadd.f32 %v4885, %v5030
        %5032 = vmatprep.mubr.f32.mxu0 0.0
        %5033 = vmatmul.mubr.f32.gmra.mrb[0].mxu0 %v4819
        %v5034 = vpop.f32.mrb[0].mxu0
        %v5035 = vadd.f32 %v4890, %v5034
        %v5036 = vpop.f32.mrb[0].mxu0
        %v5037 = vadd.f32 %v4890, %v5036
        %5038 = vmatprep.mubr.f32.mxu0 0.0
        %5039 = vmatmul.mubr.f32.gmra.mrb[0].mxu0 %v4820
        %v5040 = vpop.f32.mrb[0].mxu0
        %v5041 = vadd.f32 %v4895, %v5040
        %v5042 = vpop.f32.mrb[0].mxu0
        %v5043 = vadd.f32 %v4895, %v5042
        %5044 = vmatprep.mubr.f32.mxu0 0.0
        %5045 = vmatmul.mubr.f32.gmra.mrb[0].mxu0 %v4821
        %v5046 = vpop.f32.mrb[0].mxu0
        %v5047 = vadd.f32 %v4900, %v5046
        %v5048 = vpop.f32.mrb[0].mxu0
        %v5049 = vadd.f32 %v4900, %v5048
        %5050 = vmatprep.mubr.f32.mxu0 0.0
        %5051 = vmatmul.mubr.f32.gmra.mrb[0].mxu0 %v4822
        %v5052 = vpop.f32.mrb[0].mxu0
        %v5053 = vadd.f32 %v4905, %v5052
        %v5054 = vpop.f32.mrb[0].mxu0
        %v5055 = vadd.f32 %v4905, %v5054
        %5056 = vmatprep.mubr.f32.mxu0 0.0
        %5057 = vmatmul.mubr.f32.gmra.mrb[0].mxu0 %v4823
        %v5058 = vpop.f32.mrb[0].mxu0
        %v5059 = vadd.f32 %v4910, %v5058
        %v5060 = vpop.f32.mrb[0].mxu0
        %v5061 = vadd.f32 %v4910, %v5060
        %5062 = vmatprep.mubr.f32.mxu0 0.0
        %5063 = vmatmul.mubr.f32.gmra.mrb[0].mxu0 %v4824
        %v5064 = vpop.f32.mrb[0].mxu0
        %v5065 = vadd.f32 %v4915, %v5064
        %v5066 = vpop.f32.mrb[0].mxu0
        %v5067 = vadd.f32 %v4915, %v5066
        %5068 = vmatprep.mubr.f32.mxu0 0.0
        %5069 = vmatmul.mubr.f32.gmra.mrb[0].mxu0 %v4825
        %v5070 = vpop.f32.mrb[0].mxu0
        %v5071 = vadd.f32 %v4920, %v5070
        %v5072 = vpop.f32.mrb[0].mxu0
        %v5073 = vadd.f32 %v4920, %v5072
        %5074 = vmatprep.mubr.f32.mxu0 0.0
        %5075 = vmatmul.mubr.f32.gmra.mrb[0].mxu0 %v4826
        %v5076 = vpop.f32.mrb[0].mxu0
        %v5077 = vadd.f32 %v4925, %v5076
        %v5078 = vpop.f32.mrb[0].mxu0
        %v5079 = vadd.f32 %v4925, %v5078
        %5080 = vmatprep.mubr.f32.mxu0 0.0
        %5081 = vmatmul.mubr.f32.gmra.mrb[0].mxu0 %v4827
        %v5082 = vpop.f32.mrb[0].mxu0
        %v5083 = vadd.f32 %v4930, %v5082
        %v5084 = vpop.f32.mrb[0].mxu0
        %v5085 = vadd.f32 %v4930, %v5084
        %5086 = vmatprep.mubr.f32.mxu0 0.0
        %5087 = vmatmul.mubr.f32.gmra.mrb[0].mxu0 %v4828
        %v5088 = vpop.f32.mrb[0].mxu0
        %v5089 = vadd.f32 %v4935, %v5088
        %v5090 = vpop.f32.mrb[0].mxu0
        %v5091 = vadd.f32 %v4935, %v5090
        %5092 = vmatprep.mubr.f32.mxu0 0.0
        %5093 = vmatmul.mubr.f32.gmra.mrb[0].mxu0 %v4829
        %v5094 = vpop.f32.mrb[0].mxu0
        %v5095 = vadd.f32 %v4940, %v5094
        %v5096 = vpop.f32.mrb[0].mxu0
        %v5097 = vadd.f32 %v4940, %v5096
        %5098 = vmatprep.mubr.f32.mxu0 0.0
        %5099 = vmatmul.mubr.f32.gmra.mrb[0].mxu0 %v4830
        %v5100 = vpop.f32.mrb[0].mxu0
        %v5101 = vadd.f32 %v4945, %v5100
        %v5102 = vpop.f32.mrb[0].mxu0
        %v5103 = vadd.f32 %v4945, %v5102
        %5104 = vmatprep.mubr.f32.mxu0 0.0
        %5105 = vmatmul.mubr.f32.gmra.mrb[0].mxu0 %v4831
        %v5106 = vpop.f32.mrb[0].mxu0
        %v5107 = vadd.f32 %v4950, %v5106
        %v5108 = vpop.f32.mrb[0].mxu0
        %v5109 = vadd.f32 %v4950, %v5108
        %5110 = vmatprep.mubr.f32.mxu0 0.0
        %5111 = vmatmul.mubr.f32.gmra.mrb[0].mxu0 %v4832
        %v5112 = vpop.f32.mrb[0].mxu0
        %v5113 = vadd.f32 %v4955, %v5112
        %v5114 = vpop.f32.mrb[0].mxu0
        %v5115 = vadd.f32 %v4955, %v5114
        %5116 = vmatprep.mubr.f32.mxu0 0.0
        %5117 = vmatmul.mubr.f32.gmra.mrb[0].mxu0 %v4833
        %v5118 = vpop.f32.mrb[0].mxu0
        %v5119 = vadd.f32 %v4960, %v5118
        %v5120 = vpop.f32.mrb[0].mxu0
        %v5121 = vadd.f32 %v4960, %v5120
        %5122 = vdwg.mxu0
        %v5123 = vmax.f32 %v5029, 0.0
        %v5124 = vmax.f32 %v5031, 0.0
        %v5125 = vmax.f32 %v5035, 0.0
        %v5126 = vmax.f32 %v5037, 0.0
        %v5127 = vmax.f32 %v5041, 0.0
        %v5128 = vmax.f32 %v5043, 0.0
        %v5129 = vmax.f32 %v5047, 0.0
        %v5130 = vmax.f32 %v5049, 0.0
        %v5131 = vmax.f32 %v5053, 0.0
        %v5132 = vmax.f32 %v5055, 0.0
        %v5133 = vmax.f32 %v5059, 0.0
        %v5134 = vmax.f32 %v5061, 0.0
        %v5135 = vmax.f32 %v5065, 0.0
        %v5136 = vmax.f32 %v5067, 0.0
        %v5137 = vmax.f32 %v5071, 0.0
        %v5138 = vmax.f32 %v5073, 0.0
        %v5139 = vmax.f32 %v5077, 0.0
        %v5140 = vmax.f32 %v5079, 0.0
        %v5141 = vmax.f32 %v5083, 0.0
        %v5142 = vmax.f32 %v5085, 0.0
        %v5143 = vmax.f32 %v5089, 0.0
        %v5144 = vmax.f32 %v5091, 0.0
        %v5145 = vmax.f32 %v5095, 0.0
        %v5146 = vmax.f32 %v5097, 0.0
        %v5147 = vmax.f32 %v5101, 0.0
        %v5148 = vmax.f32 %v5103, 0.0
        %v5149 = vmax.f32 %v5107, 0.0
        %v5150 = vmax.f32 %v5109, 0.0
        %v5151 = vmax.f32 %v5113, 0.0
        %v5152 = vmax.f32 %v5115, 0.0
        %v5153 = vmax.f32 %v5119, 0.0
        %v5154 = vmax.f32 %v5121, 0.0
        %s5155 = sld [smem:[#allocation3]]
        %v5156 = vld [vmem:[%s320] sm:$0xff]
        %v5157 = vld [vmem:[%s320 + $0x8] sm:$0xff]
        %v5158 = vld [vmem:[%s320 + $0x10] sm:$0xff]
        %v5159 = vld [vmem:[%s320 + $0x18] sm:$0xff]
        %v5160 = vld [vmem:[%s320 + $0x20] sm:$0xff]
        %v5161 = vld [vmem:[%s320 + $0x28] sm:$0xff]
        %v5162 = vld [vmem:[%s320 + $0x30] sm:$0xff]
        %v5163 = vld [vmem:[%s320 + $0x38] sm:$0xff]
        %v5164 = vld [vmem:[%s320 + $0x40] sm:$0xff]
        %v5165 = vld [vmem:[%s320 + $0x48] sm:$0xff]
        %v5166 = vld [vmem:[%s320 + $0x50] sm:$0xff]
        %v5167 = vld [vmem:[%s320 + $0x58] sm:$0xff]
        %v5168 = vld [vmem:[%s320 + $0x60] sm:$0xff]
        %v5169 = vld [vmem:[%s320 + $0x68] sm:$0xff]
        %v5170 = vld [vmem:[%s320 + $0x70] sm:$0xff]
        %v5171 = vld [vmem:[%s320 + $0x78] sm:$0xff]
        %v5172 = vld [vmem:[%s320 + $0x80] sm:$0xff]
        %v5173 = vld [vmem:[%s320 + $0x88] sm:$0xff]
        %v5174 = vld [vmem:[%s320 + $0x90] sm:$0xff]
        %v5175 = vld [vmem:[%s320 + $0x98] sm:$0xff]
        %v5176 = vld [vmem:[%s320 + $0xa0] sm:$0xff]
        %v5177 = vld [vmem:[%s320 + $0xa8] sm:$0xff]
        %v5178 = vld [vmem:[%s320 + $0xb0] sm:$0xff]
        %v5179 = vld [vmem:[%s320 + $0xb8] sm:$0xff]
        %v5180 = vld [vmem:[%s320 + $0xc0] sm:$0xff]
        %v5181 = vld [vmem:[%s320 + $0xc8] sm:$0xff]
        %v5182 = vld [vmem:[%s320 + $0xd0] sm:$0xff]
        %v5183 = vld [vmem:[%s320 + $0xd8] sm:$0xff]
        %v5184 = vld [vmem:[%s320 + $0xe0] sm:$0xff]
        %v5185 = vld [vmem:[%s320 + $0xe8] sm:$0xff]
        %v5186 = vld [vmem:[%s320 + $0xf0] sm:$0xff]
        %v5187 = vld [vmem:[%s320 + $0xf8] sm:$0xff]
        %v5188 = vstv %s5155
        %v5189 = vmul.f32 %v5188, %v5123
        %v5190 = vmul.f32 %v5188, %v5124
        %v5191 = vmul.f32 %v5188, %v5125
        %v5192 = vmul.f32 %v5188, %v5126
        %v5193 = vmul.f32 %v5188, %v5127
        %v5194 = vmul.f32 %v5188, %v5128
        %v5195 = vmul.f32 %v5188, %v5129
        %v5196 = vmul.f32 %v5188, %v5130
        %v5197 = vmul.f32 %v5188, %v5131
        %v5198 = vmul.f32 %v5188, %v5132
        %v5199 = vmul.f32 %v5188, %v5133
        %v5200 = vmul.f32 %v5188, %v5134
        %v5201 = vmul.f32 %v5188, %v5135
        %v5202 = vmul.f32 %v5188, %v5136
        %v5203 = vmul.f32 %v5188, %v5137
        %v5204 = vmul.f32 %v5188, %v5138
        %v5205 = vmul.f32 %v5188, %v5139
        %v5206 = vmul.f32 %v5188, %v5140
        %v5207 = vmul.f32 %v5188, %v5141
        %v5208 = vmul.f32 %v5188, %v5142
        %v5209 = vmul.f32 %v5188, %v5143
        %v5210 = vmul.f32 %v5188, %v5144
        %v5211 = vmul.f32 %v5188, %v5145
        %v5212 = vmul.f32 %v5188, %v5146
        %v5213 = vmul.f32 %v5188, %v5147
        %v5214 = vmul.f32 %v5188, %v5148
        %v5215 = vmul.f32 %v5188, %v5149
        %v5216 = vmul.f32 %v5188, %v5150
        %v5217 = vmul.f32 %v5188, %v5151
        %v5218 = vmul.f32 %v5188, %v5152
        %v5219 = vmul.f32 %v5188, %v5153
        %v5220 = vmul.f32 %v5188, %v5154
        %v5221 = vadd.f32 %v5156, %v5189
        %v5222 = vadd.f32 %v5157, %v5190
        %v5223 = vadd.f32 %v5158, %v5191
        %v5224 = vadd.f32 %v5159, %v5192
        %v5225 = vadd.f32 %v5160, %v5193
        %v5226 = vadd.f32 %v5161, %v5194
        %v5227 = vadd.f32 %v5162, %v5195
        %v5228 = vadd.f32 %v5163, %v5196
        %v5229 = vadd.f32 %v5164, %v5197
        %v5230 = vadd.f32 %v5165, %v5198
        %v5231 = vadd.f32 %v5166, %v5199
        %v5232 = vadd.f32 %v5167, %v5200
        %v5233 = vadd.f32 %v5168, %v5201
        %v5234 = vadd.f32 %v5169, %v5202
        %v5235 = vadd.f32 %v5170, %v5203
        %v5236 = vadd.f32 %v5171, %v5204
        %v5237 = vadd.f32 %v5172, %v5205
        %v5238 = vadd.f32 %v5173, %v5206
        %v5239 = vadd.f32 %v5174, %v5207
        %v5240 = vadd.f32 %v5175, %v5208
        %v5241 = vadd.f32 %v5176, %v5209
        %v5242 = vadd.f32 %v5177, %v5210
        %v5243 = vadd.f32 %v5178, %v5211
        %v5244 = vadd.f32 %v5179, %v5212
        %v5245 = vadd.f32 %v5180, %v5213
        %v5246 = vadd.f32 %v5181, %v5214
        %v5247 = vadd.f32 %v5182, %v5215
        %v5248 = vadd.f32 %v5183, %v5216
        %v5249 = vadd.f32 %v5184, %v5217
        %v5250 = vadd.f32 %v5185, %v5218
        %v5251 = vadd.f32 %v5186, %v5219
        %v5252 = vadd.f32 %v5187, %v5220
        %5253 = vst [vmem:[%s362] sm:$0xff] %v5221
        %5254 = vst [vmem:[%s362 + $0x8] sm:$0xff] %v5222
        %5255 = vst [vmem:[%s362 + $0x10] sm:$0xff] %v5223
        %5256 = vst [vmem:[%s362 + $0x18] sm:$0xff] %v5224
        %5257 = vst [vmem:[%s362 + $0x20] sm:$0xff] %v5225
        %5258 = vst [vmem:[%s362 + $0x28] sm:$0xff] %v5226
        %5259 = vst [vmem:[%s362 + $0x30] sm:$0xff] %v5227
        %5260 = vst [vmem:[%s362 + $0x38] sm:$0xff] %v5228
        %5261 = vst [vmem:[%s362 + $0x40] sm:$0xff] %v5229
        %5262 = vst [vmem:[%s362 + $0x48] sm:$0xff] %v5230
        %5263 = vst [vmem:[%s362 + $0x50] sm:$0xff] %v5231
        %5264 = vst [vmem:[%s362 + $0x58] sm:$0xff] %v5232
        %5265 = vst [vmem:[%s362 + $0x60] sm:$0xff] %v5233
        %5266 = vst [vmem:[%s362 + $0x68] sm:$0xff] %v5234
        %5267 = vst [vmem:[%s362 + $0x70] sm:$0xff] %v5235
        %5268 = vst [vmem:[%s362 + $0x78] sm:$0xff] %v5236
        %5269 = vst [vmem:[%s362 + $0x80] sm:$0xff] %v5237
        %5270 = vst [vmem:[%s362 + $0x88] sm:$0xff] %v5238
        %5271 = vst [vmem:[%s362 + $0x90] sm:$0xff] %v5239
        %5272 = vst [vmem:[%s362 + $0x98] sm:$0xff] %v5240
        %5273 = vst [vmem:[%s362 + $0xa0] sm:$0xff] %v5241
        %5274 = vst [vmem:[%s362 + $0xa8] sm:$0xff] %v5242
        %5275 = vst [vmem:[%s362 + $0xb0] sm:$0xff] %v5243
        %5276 = vst [vmem:[%s362 + $0xb8] sm:$0xff] %v5244
        %5277 = vst [vmem:[%s362 + $0xc0] sm:$0xff] %v5245
        %5278 = vst [vmem:[%s362 + $0xc8] sm:$0xff] %v5246
        %5279 = vst [vmem:[%s362 + $0xd0] sm:$0xff] %v5247
        %5280 = vst [vmem:[%s362 + $0xd8] sm:$0xff] %v5248
        %5281 = vst [vmem:[%s362 + $0xe0] sm:$0xff] %v5249
        %5282 = vst [vmem:[%s362 + $0xe8] sm:$0xff] %v5250
        %5283 = vst [vmem:[%s362 + $0xf0] sm:$0xff] %v5251
        %5284 = vst [vmem:[%s362 + $0xf8] sm:$0xff] %v5252
        %s5285 = sand.u32 %s177, 1
        %s5286 = scalar_lea.sflag [#allocation6], %s5285
        %s5287 = sand.u32 %s177, 1
        %s5288 = smul.addr %s5287, 256
        %s5289 = scalar_lea.vmem [#allocation12], %s5288
        // Predicated region
        $region61: #{tpu_custom_call.1} parent=43 // pred_check
          %p5290 = pneg %p187
        $region62: #{tpu_custom_call.1} parent=43 // pred_check_branch
          %5292 = sbr.rel (%p5290) target = $region64
        $region63: #{tpu_custom_call.1} parent=43 // pred_region
          %s5294 = ssub.s32 4096, 4096
          %5295 = vsyncadd %s5286, %s5294
          %s5296 = smul.addr %s28, 32
          %s5297 = smul.addr %s5296, 128
          %s5298 = scalar_lea.hbm %s6, %s5297
          %s5299 = sshll.u32 %s5289, 4
          %s5300 = int_to_ptr.vmem [resolvable:$true] %s5299
          %5305 = dma.vmem_to_hbm [thread:$0]  %s5300, 4096, %s5298, %s5286, 256, 256, 16
        $region64: #{tpu_custom_call.1} parent=43 // pred_fallthru
          _
      $region44: #{tpu_custom_call.1} parent=5 // pred_fallthru
        _
      %p5306 = scmp.le.s32.totalorder 2, %s23
      // Predicated region
      $region65: #{tpu_custom_call.1} parent=5 // pred_check
        %p5307 = pneg %p5306
      $region66: #{tpu_custom_call.1} parent=5 // pred_check_branch
        %5309 = sbr.rel (%p5307) target = $region68
      $region67: #{tpu_custom_call.1} parent=5 // pred_region
        %s5310 = ssub.s32 %s23, 2
        // Predicated region
        $region69: #{tpu_custom_call.1} parent=67 // pred_check
          %p5311 = pneg %p193
        $region70: #{tpu_custom_call.1} parent=67 // pred_check_branch
          %5313 = sbr.rel (%p5311) target = $region72
        $region71: #{tpu_custom_call.1} parent=67 // pred_region
          %s5314 = sand.u32 %s178, 1
          %s5315 = scalar_lea.sflag [#allocation6], %s5314
          %s5316 = sand.u32 %s178, 1
          %s5317 = smul.addr %s5316, 256
          %s5318 = scalar_lea.vmem [#allocation12], %s5317
          %5319 = dma.done %s5315, 4096
        $region72: #{tpu_custom_call.1} parent=67 // pred_fallthru
          _
      $region68: #{tpu_custom_call.1} parent=5 // pred_fallthru
        _
    $region6: #{tpu_custom_call.1} parent=1 // loop_footer
      %s27 = sadd.s32 1, %s23
    $region7: #{tpu_custom_call.1} parent=1 // loop_footer_branch
      %22 = sbr.rel target = $region3
    $region8: #{tpu_custom_call.1} parent=1 // loop_exit
      _
    %5320 = vsyncpa [#allocation5], 1
    %s5321 = scalar_lea.sflag [#allocation5], 1
    %5322 = vsyncpa %s5321, 1
    %5323 = vsyncpa [#allocation8], 1
    %s5324 = scalar_lea.sflag [#allocation8], 1
    %5325 = vsyncpa %s5324, 1
    %5326 = vsyncpa [#allocation11], 1
    %5327 = vsyncpa [#allocation6], 1
    %s5328 = scalar_lea.sflag [#allocation6], 1
    %5329 = vsyncpa %s5328, 1

</llo_original>
